<compile_context>
chip_gen: v6e
topology: v6e:2x2x1
jax: 0.10.0
libtpu: 0.0.40
codegen_flags: <defaults>
</compile_context>

<pallas_src>
import functools
import math

import jax
import jax.numpy as jnp
from jax.experimental import pallas as pl
from jax.experimental.pallas import tpu as pltpu

LN_EPS = 1e-6
NEG_INF = -1e9


# ----------------------------------------------------------------------------
# In-kernel helpers
# ----------------------------------------------------------------------------
def _layernorm(x, gamma, beta):
    mean = jnp.mean(x, axis=-1, keepdims=True)
    var = jnp.mean((x - mean) ** 2, axis=-1, keepdims=True)
    return (x - mean) * jax.lax.rsqrt(var + LN_EPS) * gamma + beta


def _mha(q, k, v, mask, n_heads):
    """Multi-head attention for one batch row.

    q: (Tq, D) f32, scale already folded into the Q projection.
    k, v: (Tk, D) f32.  mask: (Mq, Tk), Mq in {1, Tq}; 0 => masked out.
    Returns (context (Tq, D) f32, probabilities (H, Tq, Tk) f32).
    """
    Tq, D = q.shape
    Tk = k.shape[0]
    dk = D // n_heads
    bf16 = jnp.bfloat16

    qh = q.reshape(Tq, n_heads, dk).astype(bf16)
    kh = k.reshape(Tk, n_heads, dk).astype(bf16)
    vh = v.reshape(Tk, n_heads, dk).astype(bf16)

    # One batched contraction over all heads (no per-head lane slices, no k.T).
    s = jnp.einsum('qhd,khd->hqk', qh, kh,
                   preferred_element_type=jnp.float32)          # (H, Tq, Tk)
    s = jnp.where(mask[None, :, :] == 0, NEG_INF, s)
    s_max = jnp.max(s, axis=-1, keepdims=True)
    e = jnp.exp(s - s_max)
    p = e / jnp.sum(e, axis=-1, keepdims=True)                  # exact softmax

    ctx = jnp.einsum('hqk,khd->qhd', p.astype(bf16), vh,
                     preferred_element_type=jnp.float32)        # (Tq, H, dk)
    return ctx.reshape(Tq, D), p


# ----------------------------------------------------------------------------
# Fused decoder-layer kernel (one batch row per grid step)
# ----------------------------------------------------------------------------
def decoder_kernel(x_ref, enc_ref, tmask_ref, smask_ref,
                   g1_ref, b1_ref, wqkv_ref, bqkv_ref, wo1_ref, bo1_ref,
                   g2_ref, b2_ref, wq2_ref, bq2_ref, wkv2_ref, bkv2_ref,
                   wo2_ref, bo2_ref,
                   g3_ref, b3_ref, w1_ref, bf1_ref, w2_ref, bf2_ref,
                   out_ref, self_s_ref, cross_s_ref, *, n_heads):
    f32, bf16 = jnp.float32, jnp.bfloat16
    x = x_ref[0].astype(f32)                                    # (Tq, D)
    Tq, D = x.shape

    # ---- self-attention sublayer: LN1 -> fused QKV -> MHA -> Wo -> residual ----
    n1 = _layernorm(x, g1_ref[...], b1_ref[...]).astype(bf16)   # cast once
    qkv = jnp.dot(n1, wqkv_ref[...], preferred_element_type=f32) + bqkv_ref[...]
    ctx1, p1 = _mha(qkv[:, :D], qkv[:, D:2 * D], qkv[:, 2 * D:],
                    tmask_ref[0], n_heads)
    self_s_ref[0] = p1.astype(self_s_ref.dtype)
    o1 = jnp.dot(ctx1.astype(bf16), wo1_ref[...],
                 preferred_element_type=f32) + bo1_ref[...]
    x1 = x + o1                                                 # dropout_1 identity

    # ---- cross-attention sublayer: LN2 -> Q proj; fused KV from encoder_o ----
    n2 = _layernorm(x1, g2_ref[...], b2_ref[...]).astype(bf16)
    q2 = jnp.dot(n2, wq2_ref[...], preferred_element_type=f32) + bq2_ref[...]
    enc = enc_ref[0].astype(bf16)                               # cast once
    kv2 = jnp.dot(enc, wkv2_ref[...], preferred_element_type=f32) + bkv2_ref[...]
    ctx2, p2 = _mha(q2, kv2[:, :D], kv2[:, D:], smask_ref[0], n_heads)
    cross_s_ref[0] = p2.astype(cross_s_ref.dtype)
    o2 = jnp.dot(ctx2.astype(bf16), wo2_ref[...],
                 preferred_element_type=f32) + bo2_ref[...]
    x2 = x1 + o2                                                # dropout_2 identity

    # ---- feed-forward sublayer: LN3 -> FF1 -> ReLU -> FF2 -> residual ----
    n3 = _layernorm(x2, g3_ref[...], b3_ref[...]).astype(bf16)
    h1 = jnp.maximum(jnp.dot(n3, w1_ref[...], preferred_element_type=f32)
                     + bf1_ref[...], 0.0)
    h2 = jnp.dot(h1.astype(bf16), w2_ref[...],
                 preferred_element_type=f32) + bf2_ref[...]
    out_ref[0] = (x2 + h2).astype(out_ref.dtype)                # dropout_3 identity


# ----------------------------------------------------------------------------
# Wrapper
# ----------------------------------------------------------------------------
def _const_spec(arr):
    nd = arr.ndim
    # Grid-invariant weight block (stays resident in VMEM across grid steps).
    # TODO(synk): pipeline_mode=pl.Buffered(1) to drop the useless second buffer.
    return pl.BlockSpec(arr.shape, lambda b: (0,) * nd)


def decoder_forward(params, x, encoder_o, src_mask, tgt_mask, h):
    B, Tq, D = x.shape
    Ts = encoder_o.shape[1]
    Mq_t = tgt_mask.shape[1]
    Mq_s = src_mask.shape[1]
    dk = D // h
    scale = 1.0 / math.sqrt(dk)
    bf16 = jnp.bfloat16

    sa, ca, ff = params["self_attn"], params["cross_attn"], params["ff"]
    d_ff = ff["w1"].shape[1]

    # Fused QKV for self-attention; 1/sqrt(dk) folded into the Q columns.
    wqkv = jnp.concatenate([sa["wq"] * scale, sa["wk"], sa["wv"]], axis=1).astype(bf16)
    bqkv = jnp.concatenate([sa["bq"] * scale, sa["bk"], sa["bv"]]).reshape(1, 3 * D)
    wo1 = sa["wo"].astype(bf16)
    bo1 = sa["bo"].reshape(1, D)

    # Cross-attention: Q separate (consumes LN2(x)), K/V fused (consume encoder_o).
    wq2 = (ca["wq"] * scale).astype(bf16)
    bq2 = (ca["bq"] * scale).reshape(1, D)
    wkv2 = jnp.concatenate([ca["wk"], ca["wv"]], axis=1).astype(bf16)
    bkv2 = jnp.concatenate([ca["bk"], ca["bv"]]).reshape(1, 2 * D)
    wo2 = ca["wo"].astype(bf16)
    bo2 = ca["bo"].reshape(1, D)

    w1 = ff["w1"].astype(bf16)
    b1f = ff["b1"].reshape(1, d_ff)
    w2 = ff["w2"].astype(bf16)
    b2f = ff["b2"].reshape(1, D)

    weights = (params["norm1_g"].reshape(1, D), params["norm1_b"].reshape(1, D),
               wqkv, bqkv, wo1, bo1,
               params["norm2_g"].reshape(1, D), params["norm2_b"].reshape(1, D),
               wq2, bq2, wkv2, bkv2, wo2, bo2,
               params["norm3_g"].reshape(1, D), params["norm3_b"].reshape(1, D),
               w1, b1f, w2, b2f)

    in_specs = [pl.BlockSpec((1, Tq, D), lambda b: (b, 0, 0)),
                pl.BlockSpec((1, Ts, D), lambda b: (b, 0, 0)),
                pl.BlockSpec((1, Mq_t, Tq), lambda b: (b, 0, 0)),
                pl.BlockSpec((1, Mq_s, Ts), lambda b: (b, 0, 0))]
    in_specs += [_const_spec(w) for w in weights]

    kern = functools.partial(decoder_kernel, n_heads=h)
    x_o, self_s, cross_s = pl.pallas_call(
        kern,
        out_shape=(jax.ShapeDtypeStruct((B, Tq, D), x.dtype),
                   jax.ShapeDtypeStruct((B, h, Tq, Tq), jnp.float32),
                   jax.ShapeDtypeStruct((B, h, Tq, Ts), jnp.float32)),
        grid=(B,),
        in_specs=in_specs,
        out_specs=(pl.BlockSpec((1, Tq, D), lambda b: (b, 0, 0)),
                   pl.BlockSpec((1, h, Tq, Tq), lambda b: (b, 0, 0, 0)),
                   pl.BlockSpec((1, h, Tq, Ts), lambda b: (b, 0, 0, 0))),
        compiler_params=pltpu.CompilerParams(dimension_semantics=("parallel",)),
    )(x, encoder_o, tgt_mask, src_mask, *weights)
    return x_o, self_s, cross_s


# ----------------------------------------------------------------------------
# Deterministic parameter init
# ----------------------------------------------------------------------------
def init_params(key, d_model, h, d_ff):
    ks = jax.random.split(key, 12)

    def lin(k, fan_in, fan_out):
        return 0.02 * jax.random.normal(k, (fan_in, fan_out), jnp.float32)

    def attn_params(keys):
        return {
            "wq": lin(keys[0], d_model, d_model), "bq": jnp.zeros((d_model,), jnp.float32),
            "wk": lin(keys[1], d_model, d_model), "bk": jnp.zeros((d_model,), jnp.float32),
            "wv": lin(keys[2], d_model, d_model), "bv": jnp.zeros((d_model,), jnp.float32),
            "wo": lin(keys[3], d_model, d_model), "bo": jnp.zeros((d_model,), jnp.float32),
        }

    return {
        "norm1_g": jnp.ones((d_model,), jnp.float32), "norm1_b": jnp.zeros((d_model,), jnp.float32),
        "norm2_g": jnp.ones((d_model,), jnp.float32), "norm2_b": jnp.zeros((d_model,), jnp.float32),
        "norm3_g": jnp.ones((d_model,), jnp.float32), "norm3_b": jnp.zeros((d_model,), jnp.float32),
        "self_attn": attn_params(ks[0:4]),
        "cross_attn": attn_params(ks[4:8]),
        "ff": {
            "w1": lin(ks[8], d_model, d_ff), "b1": jnp.zeros((d_ff,), jnp.float32),
            "w2": lin(ks[9], d_ff, d_model), "b2": jnp.zeros((d_model,), jnp.float32),
        },
    }


if __name__ == "__main__":
    B, h, d_model = 2, 4, 32
    tgt_len, src_len = 8, 16
    d_ff = 4 * d_model

    key = jax.random.PRNGKey(0)
    k_x, k_enc, k_p = jax.random.split(key, 3)

    x = jax.random.normal(k_x, (B, tgt_len, d_model), jnp.float32)
    encoder_o = jax.random.normal(k_enc, (B, src_len, d_model), jnp.float32)
    src_mask = jnp.ones((B, 1, src_len), jnp.float32)
    tgt_mask = jnp.broadcast_to(
        jnp.tril(jnp.ones((tgt_len, tgt_len), jnp.float32)), (B, tgt_len, tgt_len)
    )

    params = init_params(k_p, d_model, h, d_ff)

    x_o, self_s, cross_s = decoder_forward(params, x, encoder_o, src_mask, tgt_mask, h)
    jax.block_until_ready((x_o, self_s, cross_s))

    assert x_o.shape == (B, tgt_len, d_model)
    assert self_s.shape == (B, h, tgt_len, tgt_len)
    assert cross_s.shape == (B, h, tgt_len, src_len)
    assert bool(jnp.all(jnp.isfinite(x_o)))
    assert bool(jnp.all(jnp.isfinite(self_s))) and bool(jnp.all(jnp.isfinite(cross_s)))
    print("KERNEL_OK")
</pallas_src>

<mosaic_0001>
module attributes {stable_mosaic.version = 11 : i64} {
  func.func @decoder_kernel(%arg0: i32, %arg1: memref<1x8x32xf32, #tpu.memory_space<vmem>>, %arg2: memref<1x16x32xf32, #tpu.memory_space<vmem>>, %arg3: memref<1x8x8xf32, #tpu.memory_space<vmem>>, %arg4: memref<1x1x16xf32, #tpu.memory_space<vmem>>, %arg5: memref<1x32xf32, #tpu.memory_space<vmem>>, %arg6: memref<1x32xf32, #tpu.memory_space<vmem>>, %arg7: memref<32x96xbf16, #tpu.memory_space<vmem>>, %arg8: memref<1x96xf32, #tpu.memory_space<vmem>>, %arg9: memref<32x32xbf16, #tpu.memory_space<vmem>>, %arg10: memref<1x32xf32, #tpu.memory_space<vmem>>, %arg11: memref<1x32xf32, #tpu.memory_space<vmem>>, %arg12: memref<1x32xf32, #tpu.memory_space<vmem>>, %arg13: memref<32x32xbf16, #tpu.memory_space<vmem>>, %arg14: memref<1x32xf32, #tpu.memory_space<vmem>>, %arg15: memref<32x64xbf16, #tpu.memory_space<vmem>>, %arg16: memref<1x64xf32, #tpu.memory_space<vmem>>, %arg17: memref<32x32xbf16, #tpu.memory_space<vmem>>, %arg18: memref<1x32xf32, #tpu.memory_space<vmem>>, %arg19: memref<1x32xf32, #tpu.memory_space<vmem>>, %arg20: memref<1x32xf32, #tpu.memory_space<vmem>>, %arg21: memref<32x128xbf16, #tpu.memory_space<vmem>>, %arg22: memref<1x128xf32, #tpu.memory_space<vmem>>, %arg23: memref<128x32xbf16, #tpu.memory_space<vmem>>, %arg24: memref<1x32xf32, #tpu.memory_space<vmem>>, %arg25: memref<1x8x32xf32, #tpu.memory_space<vmem>>, %arg26: memref<1x4x8x8xf32, #tpu.memory_space<vmem>>, %arg27: memref<1x4x8x16xf32, #tpu.memory_space<vmem>>) attributes {dimension_semantics = [#tpu.dimension_semantics<parallel>], iteration_bounds = array<i64: 2>, scalar_prefetch = 0 : i64, scratch_operands = 0 : i64, tpu.core_type = #tpu.core_type<tc>, window_params = [{transform_indices = @transform_0, window_bounds = array<i64: 1, 8, 32>}, {transform_indices = @transform_1, window_bounds = array<i64: 1, 16, 32>}, {transform_indices = @transform_2, window_bounds = array<i64: 1, 8, 8>}, {transform_indices = @transform_3, window_bounds = array<i64: 1, 1, 16>}, {pipeline_mode = #tpu.pipeline_mode<synchronous>, transform_indices = @transform_4, window_bounds = array<i64: 1, 32>}, {pipeline_mode = #tpu.pipeline_mode<synchronous>, transform_indices = @transform_5, window_bounds = array<i64: 1, 32>}, {pipeline_mode = #tpu.pipeline_mode<synchronous>, transform_indices = @transform_6, window_bounds = array<i64: 32, 96>}, {pipeline_mode = #tpu.pipeline_mode<synchronous>, transform_indices = @transform_7, window_bounds = array<i64: 1, 96>}, {pipeline_mode = #tpu.pipeline_mode<synchronous>, transform_indices = @transform_8, window_bounds = array<i64: 32, 32>}, {pipeline_mode = #tpu.pipeline_mode<synchronous>, transform_indices = @transform_9, window_bounds = array<i64: 1, 32>}, {pipeline_mode = #tpu.pipeline_mode<synchronous>, transform_indices = @transform_10, window_bounds = array<i64: 1, 32>}, {pipeline_mode = #tpu.pipeline_mode<synchronous>, transform_indices = @transform_11, window_bounds = array<i64: 1, 32>}, {pipeline_mode = #tpu.pipeline_mode<synchronous>, transform_indices = @transform_12, window_bounds = array<i64: 32, 32>}, {pipeline_mode = #tpu.pipeline_mode<synchronous>, transform_indices = @transform_13, window_bounds = array<i64: 1, 32>}, {pipeline_mode = #tpu.pipeline_mode<synchronous>, transform_indices = @transform_14, window_bounds = array<i64: 32, 64>}, {pipeline_mode = #tpu.pipeline_mode<synchronous>, transform_indices = @transform_15, window_bounds = array<i64: 1, 64>}, {pipeline_mode = #tpu.pipeline_mode<synchronous>, transform_indices = @transform_16, window_bounds = array<i64: 32, 32>}, {pipeline_mode = #tpu.pipeline_mode<synchronous>, transform_indices = @transform_17, window_bounds = array<i64: 1, 32>}, {pipeline_mode = #tpu.pipeline_mode<synchronous>, transform_indices = @transform_18, window_bounds = array<i64: 1, 32>}, {pipeline_mode = #tpu.pipeline_mode<synchronous>, transform_indices = @transform_19, window_bounds = array<i64: 1, 32>}, {pipeline_mode = #tpu.pipeline_mode<synchronous>, transform_indices = @transform_20, window_bounds = array<i64: 32, 128>}, {pipeline_mode = #tpu.pipeline_mode<synchronous>, transform_indices = @transform_21, window_bounds = array<i64: 1, 128>}, {pipeline_mode = #tpu.pipeline_mode<synchronous>, transform_indices = @transform_22, window_bounds = array<i64: 128, 32>}, {pipeline_mode = #tpu.pipeline_mode<synchronous>, transform_indices = @transform_23, window_bounds = array<i64: 1, 32>}, {transform_indices = @transform_24, window_bounds = array<i64: 1, 8, 32>}, {transform_indices = @transform_25, window_bounds = array<i64: 1, 4, 8, 8>}, {transform_indices = @transform_26, window_bounds = array<i64: 1, 4, 8, 16>}]} {
    %c0 = arith.constant 0 : index
    %c0_0 = arith.constant 0 : index
    %c0_1 = arith.constant 0 : index
    %0 = vector.load %arg1[%c0, %c0_0, %c0_1] : memref<1x8x32xf32, #tpu.memory_space<vmem>>, vector<1x8x32xf32>
    %1 = vector.shape_cast %0 : vector<1x8x32xf32> to vector<8x32xf32>
    %c0_2 = arith.constant 0 : index
    %c0_3 = arith.constant 0 : index
    %2 = vector.load %arg5[%c0_2, %c0_3] : memref<1x32xf32, #tpu.memory_space<vmem>>, vector<1x32xf32>
    %c0_4 = arith.constant 0 : index
    %c0_5 = arith.constant 0 : index
    %3 = vector.load %arg6[%c0_4, %c0_5] : memref<1x32xf32, #tpu.memory_space<vmem>>, vector<1x32xf32>
    %cst = arith.constant dense<0.000000e+00> : vector<8xf32>
    %4 = vector.multi_reduction <add>, %1, %cst [1] : vector<8x32xf32> to vector<8xf32>
    %5 = vector.shape_cast %4 : vector<8xf32> to vector<8x1xf32>
    %cst_6 = arith.constant 3.200000e+01 : f32
    %6 = vector.broadcast %cst_6 : f32 to vector<8x1xf32>
    %7 = arith.divf %5, %6 : vector<8x1xf32>
    %8 = vector.broadcast %7 : vector<8x1xf32> to vector<8x32xf32>
    %9 = arith.subf %1, %8 : vector<8x32xf32>
    %10 = arith.mulf %9, %9 : vector<8x32xf32>
    %cst_7 = arith.constant dense<0.000000e+00> : vector<8xf32>
    %11 = vector.multi_reduction <add>, %10, %cst_7 [1] : vector<8x32xf32> to vector<8xf32>
    %12 = vector.shape_cast %11 : vector<8xf32> to vector<8x1xf32>
    %cst_8 = arith.constant 3.200000e+01 : f32
    %13 = vector.broadcast %cst_8 : f32 to vector<8x1xf32>
    %14 = arith.divf %12, %13 : vector<8x1xf32>
    %15 = vector.broadcast %7 : vector<8x1xf32> to vector<8x32xf32>
    %16 = arith.subf %1, %15 : vector<8x32xf32>
    %cst_9 = arith.constant 9.99999997E-7 : f32
    %17 = vector.broadcast %cst_9 : f32 to vector<8x1xf32>
    %18 = arith.addf %14, %17 : vector<8x1xf32>
    %19 = math.rsqrt %18 : vector<8x1xf32>
    %20 = vector.broadcast %19 : vector<8x1xf32> to vector<8x32xf32>
    %21 = arith.mulf %16, %20 : vector<8x32xf32>
    %22 = vector.broadcast %2 : vector<1x32xf32> to vector<8x32xf32>
    %23 = arith.mulf %21, %22 : vector<8x32xf32>
    %24 = vector.broadcast %3 : vector<1x32xf32> to vector<8x32xf32>
    %25 = arith.addf %23, %24 : vector<8x32xf32>
    %26 = arith.truncf %25 : vector<8x32xf32> to vector<8x32xbf16>
    %c0_10 = arith.constant 0 : index
    %c0_11 = arith.constant 0 : index
    %27 = vector.load %arg7[%c0_10, %c0_11] : memref<32x96xbf16, #tpu.memory_space<vmem>>, vector<32x96xbf16>
    %cst_12 = arith.constant dense<0.000000e+00> : vector<8x96xf32>
    %28 = tpu.matmul %26, %27, %cst_12 {dimension_numbers = #tpu.dot_dimension_numbers<[1], [0], [0], [1], [0, 0, 1, 1], [], []>} : vector<8x32xbf16>, vector<32x96xbf16>, vector<8x96xf32> -> vector<8x96xf32>
    %c0_13 = arith.constant 0 : index
    %c0_14 = arith.constant 0 : index
    %29 = vector.load %arg8[%c0_13, %c0_14] : memref<1x96xf32, #tpu.memory_space<vmem>>, vector<1x96xf32>
    %30 = vector.broadcast %29 : vector<1x96xf32> to vector<8x96xf32>
    %31 = arith.addf %28, %30 : vector<8x96xf32>
    %32 = vector.extract_strided_slice %31 {offsets = [0, 0], sizes = [8, 32], strides = [1, 1]} : vector<8x96xf32> to vector<8x32xf32>
    %33 = vector.extract_strided_slice %31 {offsets = [0, 32], sizes = [8, 32], strides = [1, 1]} : vector<8x96xf32> to vector<8x32xf32>
    %34 = vector.extract_strided_slice %31 {offsets = [0, 64], sizes = [8, 32], strides = [1, 1]} : vector<8x96xf32> to vector<8x32xf32>
    %c0_15 = arith.constant 0 : index
    %c0_16 = arith.constant 0 : index
    %c0_17 = arith.constant 0 : index
    %35 = vector.load %arg3[%c0_15, %c0_16, %c0_17] : memref<1x8x8xf32, #tpu.memory_space<vmem>>, vector<1x8x8xf32>
    %36 = vector.shape_cast %35 : vector<1x8x8xf32> to vector<8x8xf32>
    %37 = vector.shape_cast %32 : vector<8x32xf32> to vector<8x4x8xf32>
    %38 = arith.truncf %37 : vector<8x4x8xf32> to vector<8x4x8xbf16>
    %39 = vector.shape_cast %33 : vector<8x32xf32> to vector<8x4x8xf32>
    %40 = arith.truncf %39 : vector<8x4x8xf32> to vector<8x4x8xbf16>
    %41 = vector.shape_cast %34 : vector<8x32xf32> to vector<8x4x8xf32>
    %42 = arith.truncf %41 : vector<8x4x8xf32> to vector<8x4x8xbf16>
    "tpu.trace_start"() <{level = 10 : i32, message = "qhd,khd->hqk"}> : () -> ()
    %cst_18 = arith.constant dense<0.000000e+00> : vector<4x8x8xf32>
    %43 = tpu.matmul %38, %40, %cst_18 {dimension_numbers = #tpu.dot_dimension_numbers<[2], [2], [0], [0], [0, 1, 0, 0, 1, 0], [1], [1]>} : vector<8x4x8xbf16>, vector<8x4x8xbf16>, vector<4x8x8xf32> -> vector<4x8x8xf32>
    "tpu.trace_stop"() : () -> ()
    %44 = vector.shape_cast %36 : vector<8x8xf32> to vector<1x8x8xf32>
    %cst_19 = arith.constant 0.000000e+00 : f32
    %45 = vector.broadcast %cst_19 : f32 to vector<1x8x8xf32>
    %46 = arith.cmpf oeq, %44, %45 : vector<1x8x8xf32>
    %cst_20 = arith.constant -1.000000e+09 : f32
    %47 = vector.shape_cast %46 : vector<1x8x8xi1> to vector<1x8x8xi1>
    %48 = vector.broadcast %47 : vector<1x8x8xi1> to vector<4x8x8xi1>
    %49 = vector.broadcast %cst_20 : f32 to vector<4x8x8xf32>
    %50 = arith.select %48, %49, %43 : vector<4x8x8xi1>, vector<4x8x8xf32>
    %cst_21 = arith.constant dense<0xFF800000> : vector<4x8xf32>
    %51 = vector.multi_reduction <maximumf>, %50, %cst_21 [2] : vector<4x8x8xf32> to vector<4x8xf32>
    %52 = vector.shape_cast %51 : vector<4x8xf32> to vector<4x8x1xf32>
    %53 = vector.broadcast %52 : vector<4x8x1xf32> to vector<4x8x8xf32>
    %54 = arith.subf %50, %53 : vector<4x8x8xf32>
    %55 = math.exp %54 : vector<4x8x8xf32>
    %cst_22 = arith.constant dense<0.000000e+00> : vector<4x8xf32>
    %56 = vector.multi_reduction <add>, %55, %cst_22 [2] : vector<4x8x8xf32> to vector<4x8xf32>
    %57 = vector.shape_cast %56 : vector<4x8xf32> to vector<4x8x1xf32>
    %58 = vector.broadcast %57 : vector<4x8x1xf32> to vector<4x8x8xf32>
    %59 = arith.divf %55, %58 : vector<4x8x8xf32>
    %60 = arith.truncf %59 : vector<4x8x8xf32> to vector<4x8x8xbf16>
    "tpu.trace_start"() <{level = 10 : i32, message = "hqk,khd->qhd"}> : () -> ()
    %cst_23 = arith.constant dense<0.000000e+00> : vector<4x8x8xf32>
    %61 = tpu.matmul %42, %60, %cst_23 {dimension_numbers = #tpu.dot_dimension_numbers<[0], [2], [2], [1], [0, 1, 0, 2, 1, 1], [1], [0]>} : vector<8x4x8xbf16>, vector<4x8x8xbf16>, vector<4x8x8xf32> -> vector<4x8x8xf32>
    %62 = tpu.transpose %61, [2, 0, 1] : vector<4x8x8xf32> -> vector<8x4x8xf32>
    "tpu.trace_stop"() : () -> ()
    %63 = vector.shape_cast %62 : vector<8x4x8xf32> to vector<8x32xf32>
    %c0_24 = arith.constant 0 : index
    %c0_25 = arith.constant 0 : index
    %c0_26 = arith.constant 0 : index
    %c0_27 = arith.constant 0 : index
    %64 = vector.load %arg26[%c0_24, %c0_25, %c0_26, %c0_27] : memref<1x4x8x8xf32, #tpu.memory_space<vmem>>, vector<1x4x8x8xf32>
    %65 = vector.shape_cast %64 : vector<1x4x8x8xf32> to vector<4x8x8xf32>
    %66 = vector.shape_cast %59 : vector<4x8x8xf32> to vector<1x4x8x8xf32>
    tpu.vector_store %arg26[%c0_24, %c0_25, %c0_26, %c0_27], %66 {strides = array<i32>} : memref<1x4x8x8xf32, #tpu.memory_space<vmem>>, vector<1x4x8x8xf32>,
    %67 = arith.truncf %63 : vector<8x32xf32> to vector<8x32xbf16>
    %c0_28 = arith.constant 0 : index
    %c0_29 = arith.constant 0 : index
    %68 = vector.load %arg9[%c0_28, %c0_29] : memref<32x32xbf16, #tpu.memory_space<vmem>>, vector<32x32xbf16>
    %cst_30 = arith.constant dense<0.000000e+00> : vector<8x32xf32>
    %69 = tpu.matmul %67, %68, %cst_30 {dimension_numbers = #tpu.dot_dimension_numbers<[1], [0], [0], [1], [0, 0, 1, 1], [], []>} : vector<8x32xbf16>, vector<32x32xbf16>, vector<8x32xf32> -> vector<8x32xf32>
    %c0_31 = arith.constant 0 : index
    %c0_32 = arith.constant 0 : index
    %70 = vector.load %arg10[%c0_31, %c0_32] : memref<1x32xf32, #tpu.memory_space<vmem>>, vector<1x32xf32>
    %71 = vector.broadcast %70 : vector<1x32xf32> to vector<8x32xf32>
    %72 = arith.addf %69, %71 : vector<8x32xf32>
    %73 = arith.addf %1, %72 : vector<8x32xf32>
    %c0_33 = arith.constant 0 : index
    %c0_34 = arith.constant 0 : index
    %74 = vector.load %arg11[%c0_33, %c0_34] : memref<1x32xf32, #tpu.memory_space<vmem>>, vector<1x32xf32>
    %c0_35 = arith.constant 0 : index
    %c0_36 = arith.constant 0 : index
    %75 = vector.load %arg12[%c0_35, %c0_36] : memref<1x32xf32, #tpu.memory_space<vmem>>, vector<1x32xf32>
    %cst_37 = arith.constant dense<0.000000e+00> : vector<8xf32>
    %76 = vector.multi_reduction <add>, %73, %cst_37 [1] : vector<8x32xf32> to vector<8xf32>
    %77 = vector.shape_cast %76 : vector<8xf32> to vector<8x1xf32>
    %cst_38 = arith.constant 3.200000e+01 : f32
    %78 = vector.broadcast %cst_38 : f32 to vector<8x1xf32>
    %79 = arith.divf %77, %78 : vector<8x1xf32>
    %80 = vector.broadcast %79 : vector<8x1xf32> to vector<8x32xf32>
    %81 = arith.subf %73, %80 : vector<8x32xf32>
    %82 = arith.mulf %81, %81 : vector<8x32xf32>
    %cst_39 = arith.constant dense<0.000000e+00> : vector<8xf32>
    %83 = vector.multi_reduction <add>, %82, %cst_39 [1] : vector<8x32xf32> to vector<8xf32>
    %84 = vector.shape_cast %83 : vector<8xf32> to vector<8x1xf32>
    %cst_40 = arith.constant 3.200000e+01 : f32
    %85 = vector.broadcast %cst_40 : f32 to vector<8x1xf32>
    %86 = arith.divf %84, %85 : vector<8x1xf32>
    %87 = vector.broadcast %79 : vector<8x1xf32> to vector<8x32xf32>
    %88 = arith.subf %73, %87 : vector<8x32xf32>
    %cst_41 = arith.constant 9.99999997E-7 : f32
    %89 = vector.broadcast %cst_41 : f32 to vector<8x1xf32>
    %90 = arith.addf %86, %89 : vector<8x1xf32>
    %91 = math.rsqrt %90 : vector<8x1xf32>
    %92 = vector.broadcast %91 : vector<8x1xf32> to vector<8x32xf32>
    %93 = arith.mulf %88, %92 : vector<8x32xf32>
    %94 = vector.broadcast %74 : vector<1x32xf32> to vector<8x32xf32>
    %95 = arith.mulf %93, %94 : vector<8x32xf32>
    %96 = vector.broadcast %75 : vector<1x32xf32> to vector<8x32xf32>
    %97 = arith.addf %95, %96 : vector<8x32xf32>
    %98 = arith.truncf %97 : vector<8x32xf32> to vector<8x32xbf16>
    %c0_42 = arith.constant 0 : index
    %c0_43 = arith.constant 0 : index
    %99 = vector.load %arg13[%c0_42, %c0_43] : memref<32x32xbf16, #tpu.memory_space<vmem>>, vector<32x32xbf16>
    %cst_44 = arith.constant dense<0.000000e+00> : vector<8x32xf32>
    %100 = tpu.matmul %98, %99, %cst_44 {dimension_numbers = #tpu.dot_dimension_numbers<[1], [0], [0], [1], [0, 0, 1, 1], [], []>} : vector<8x32xbf16>, vector<32x32xbf16>, vector<8x32xf32> -> vector<8x32xf32>
    %c0_45 = arith.constant 0 : index
    %c0_46 = arith.constant 0 : index
    %101 = vector.load %arg14[%c0_45, %c0_46] : memref<1x32xf32, #tpu.memory_space<vmem>>, vector<1x32xf32>
    %102 = vector.broadcast %101 : vector<1x32xf32> to vector<8x32xf32>
    %103 = arith.addf %100, %102 : vector<8x32xf32>
    %c0_47 = arith.constant 0 : index
    %c0_48 = arith.constant 0 : index
    %c0_49 = arith.constant 0 : index
    %104 = vector.load %arg2[%c0_47, %c0_48, %c0_49] : memref<1x16x32xf32, #tpu.memory_space<vmem>>, vector<1x16x32xf32>
    %105 = vector.shape_cast %104 : vector<1x16x32xf32> to vector<16x32xf32>
    %106 = arith.truncf %105 : vector<16x32xf32> to vector<16x32xbf16>
    %c0_50 = arith.constant 0 : index
    %c0_51 = arith.constant 0 : index
    %107 = vector.load %arg15[%c0_50, %c0_51] : memref<32x64xbf16, #tpu.memory_space<vmem>>, vector<32x64xbf16>
    %cst_52 = arith.constant dense<0.000000e+00> : vector<16x64xf32>
    %108 = tpu.matmul %106, %107, %cst_52 {dimension_numbers = #tpu.dot_dimension_numbers<[1], [0], [0], [1], [0, 0, 1, 1], [], []>} : vector<16x32xbf16>, vector<32x64xbf16>, vector<16x64xf32> -> vector<16x64xf32>
    %c0_53 = arith.constant 0 : index
    %c0_54 = arith.constant 0 : index
    %109 = vector.load %arg16[%c0_53, %c0_54] : memref<1x64xf32, #tpu.memory_space<vmem>>, vector<1x64xf32>
    %110 = vector.broadcast %109 : vector<1x64xf32> to vector<16x64xf32>
    %111 = arith.addf %108, %110 : vector<16x64xf32>
    %112 = vector.extract_strided_slice %111 {offsets = [0, 0], sizes = [16, 32], strides = [1, 1]} : vector<16x64xf32> to vector<16x32xf32>
    %113 = vector.extract_strided_slice %111 {offsets = [0, 32], sizes = [16, 32], strides = [1, 1]} : vector<16x64xf32> to vector<16x32xf32>
    %c0_55 = arith.constant 0 : index
    %c0_56 = arith.constant 0 : index
    %c0_57 = arith.constant 0 : index
    %114 = vector.load %arg4[%c0_55, %c0_56, %c0_57] : memref<1x1x16xf32, #tpu.memory_space<vmem>>, vector<1x1x16xf32>
    %115 = vector.shape_cast %114 : vector<1x1x16xf32> to vector<1x16xf32>
    %116 = vector.shape_cast %103 : vector<8x32xf32> to vector<8x4x8xf32>
    %117 = arith.truncf %116 : vector<8x4x8xf32> to vector<8x4x8xbf16>
    %118 = vector.shape_cast %112 : vector<16x32xf32> to vector<16x4x8xf32>
    %119 = arith.truncf %118 : vector<16x4x8xf32> to vector<16x4x8xbf16>
    %120 = vector.shape_cast %113 : vector<16x32xf32> to vector<16x4x8xf32>
    %121 = arith.truncf %120 : vector<16x4x8xf32> to vector<16x4x8xbf16>
    "tpu.trace_start"() <{level = 10 : i32, message = "qhd,khd->hqk"}> : () -> ()
    %cst_58 = arith.constant dense<0.000000e+00> : vector<4x8x16xf32>
    %122 = tpu.matmul %117, %119, %cst_58 {dimension_numbers = #tpu.dot_dimension_numbers<[2], [2], [0], [0], [0, 1, 0, 0, 1, 0], [1], [1]>} : vector<8x4x8xbf16>, vector<16x4x8xbf16>, vector<4x8x16xf32> -> vector<4x8x16xf32>
    "tpu.trace_stop"() : () -> ()
    %123 = vector.shape_cast %115 : vector<1x16xf32> to vector<1x1x16xf32>
    %cst_59 = arith.constant 0.000000e+00 : f32
    %124 = vector.broadcast %cst_59 : f32 to vector<1x1x16xf32>
    %125 = arith.cmpf oeq, %123, %124 : vector<1x1x16xf32>
    %cst_60 = arith.constant -1.000000e+09 : f32
    %126 = vector.shape_cast %125 : vector<1x1x16xi1> to vector<1x1x16xi1>
    %127 = vector.broadcast %126 : vector<1x1x16xi1> to vector<4x8x16xi1>
    %128 = vector.broadcast %cst_60 : f32 to vector<4x8x16xf32>
    %129 = arith.select %127, %128, %122 : vector<4x8x16xi1>, vector<4x8x16xf32>
    %cst_61 = arith.constant dense<0xFF800000> : vector<4x8xf32>
    %130 = vector.multi_reduction <maximumf>, %129, %cst_61 [2] : vector<4x8x16xf32> to vector<4x8xf32>
    %131 = vector.shape_cast %130 : vector<4x8xf32> to vector<4x8x1xf32>
    %132 = vector.broadcast %131 : vector<4x8x1xf32> to vector<4x8x16xf32>
    %133 = arith.subf %129, %132 : vector<4x8x16xf32>
    %134 = math.exp %133 : vector<4x8x16xf32>
    %cst_62 = arith.constant dense<0.000000e+00> : vector<4x8xf32>
    %135 = vector.multi_reduction <add>, %134, %cst_62 [2] : vector<4x8x16xf32> to vector<4x8xf32>
    %136 = vector.shape_cast %135 : vector<4x8xf32> to vector<4x8x1xf32>
    %137 = vector.broadcast %136 : vector<4x8x1xf32> to vector<4x8x16xf32>
    %138 = arith.divf %134, %137 : vector<4x8x16xf32>
    %139 = arith.truncf %138 : vector<4x8x16xf32> to vector<4x8x16xbf16>
    "tpu.trace_start"() <{level = 10 : i32, message = "hqk,khd->qhd"}> : () -> ()
    %cst_63 = arith.constant dense<0.000000e+00> : vector<4x8x8xf32>
    %140 = tpu.matmul %121, %139, %cst_63 {dimension_numbers = #tpu.dot_dimension_numbers<[0], [2], [2], [1], [0, 1, 0, 2, 1, 1], [1], [0]>} : vector<16x4x8xbf16>, vector<4x8x16xbf16>, vector<4x8x8xf32> -> vector<4x8x8xf32>
    %141 = tpu.transpose %140, [2, 0, 1] : vector<4x8x8xf32> -> vector<8x4x8xf32>
    "tpu.trace_stop"() : () -> ()
    %142 = vector.shape_cast %141 : vector<8x4x8xf32> to vector<8x32xf32>
    %c0_64 = arith.constant 0 : index
    %c0_65 = arith.constant 0 : index
    %c0_66 = arith.constant 0 : index
    %c0_67 = arith.constant 0 : index
    %143 = vector.load %arg27[%c0_64, %c0_65, %c0_66, %c0_67] : memref<1x4x8x16xf32, #tpu.memory_space<vmem>>, vector<1x4x8x16xf32>
    %144 = vector.shape_cast %143 : vector<1x4x8x16xf32> to vector<4x8x16xf32>
    %145 = vector.shape_cast %138 : vector<4x8x16xf32> to vector<1x4x8x16xf32>
    tpu.vector_store %arg27[%c0_64, %c0_65, %c0_66, %c0_67], %145 {strides = array<i32>} : memref<1x4x8x16xf32, #tpu.memory_space<vmem>>, vector<1x4x8x16xf32>,
    %146 = arith.truncf %142 : vector<8x32xf32> to vector<8x32xbf16>
    %c0_68 = arith.constant 0 : index
    %c0_69 = arith.constant 0 : index
    %147 = vector.load %arg17[%c0_68, %c0_69] : memref<32x32xbf16, #tpu.memory_space<vmem>>, vector<32x32xbf16>
    %cst_70 = arith.constant dense<0.000000e+00> : vector<8x32xf32>
    %148 = tpu.matmul %146, %147, %cst_70 {dimension_numbers = #tpu.dot_dimension_numbers<[1], [0], [0], [1], [0, 0, 1, 1], [], []>} : vector<8x32xbf16>, vector<32x32xbf16>, vector<8x32xf32> -> vector<8x32xf32>
    %c0_71 = arith.constant 0 : index
    %c0_72 = arith.constant 0 : index
    %149 = vector.load %arg18[%c0_71, %c0_72] : memref<1x32xf32, #tpu.memory_space<vmem>>, vector<1x32xf32>
    %150 = vector.broadcast %149 : vector<1x32xf32> to vector<8x32xf32>
    %151 = arith.addf %148, %150 : vector<8x32xf32>
    %152 = arith.addf %73, %151 : vector<8x32xf32>
    %c0_73 = arith.constant 0 : index
    %c0_74 = arith.constant 0 : index
    %153 = vector.load %arg19[%c0_73, %c0_74] : memref<1x32xf32, #tpu.memory_space<vmem>>, vector<1x32xf32>
    %c0_75 = arith.constant 0 : index
    %c0_76 = arith.constant 0 : index
    %154 = vector.load %arg20[%c0_75, %c0_76] : memref<1x32xf32, #tpu.memory_space<vmem>>, vector<1x32xf32>
    %cst_77 = arith.constant dense<0.000000e+00> : vector<8xf32>
    %155 = vector.multi_reduction <add>, %152, %cst_77 [1] : vector<8x32xf32> to vector<8xf32>
    %156 = vector.shape_cast %155 : vector<8xf32> to vector<8x1xf32>
    %cst_78 = arith.constant 3.200000e+01 : f32
    %157 = vector.broadcast %cst_78 : f32 to vector<8x1xf32>
    %158 = arith.divf %156, %157 : vector<8x1xf32>
    %159 = vector.broadcast %158 : vector<8x1xf32> to vector<8x32xf32>
    %160 = arith.subf %152, %159 : vector<8x32xf32>
    %161 = arith.mulf %160, %160 : vector<8x32xf32>
    %cst_79 = arith.constant dense<0.000000e+00> : vector<8xf32>
    %162 = vector.multi_reduction <add>, %161, %cst_79 [1] : vector<8x32xf32> to vector<8xf32>
    %163 = vector.shape_cast %162 : vector<8xf32> to vector<8x1xf32>
    %cst_80 = arith.constant 3.200000e+01 : f32
    %164 = vector.broadcast %cst_80 : f32 to vector<8x1xf32>
    %165 = arith.divf %163, %164 : vector<8x1xf32>
    %166 = vector.broadcast %158 : vector<8x1xf32> to vector<8x32xf32>
    %167 = arith.subf %152, %166 : vector<8x32xf32>
    %cst_81 = arith.constant 9.99999997E-7 : f32
    %168 = vector.broadcast %cst_81 : f32 to vector<8x1xf32>
    %169 = arith.addf %165, %168 : vector<8x1xf32>
    %170 = math.rsqrt %169 : vector<8x1xf32>
    %171 = vector.broadcast %170 : vector<8x1xf32> to vector<8x32xf32>
    %172 = arith.mulf %167, %171 : vector<8x32xf32>
    %173 = vector.broadcast %153 : vector<1x32xf32> to vector<8x32xf32>
    %174 = arith.mulf %172, %173 : vector<8x32xf32>
    %175 = vector.broadcast %154 : vector<1x32xf32> to vector<8x32xf32>
    %176 = arith.addf %174, %175 : vector<8x32xf32>
    %177 = arith.truncf %176 : vector<8x32xf32> to vector<8x32xbf16>
    %c0_82 = arith.constant 0 : index
    %c0_83 = arith.constant 0 : index
    %178 = vector.load %arg21[%c0_82, %c0_83] : memref<32x128xbf16, #tpu.memory_space<vmem>>, vector<32x128xbf16>
    %cst_84 = arith.constant dense<0.000000e+00> : vector<8x128xf32>
    %179 = tpu.matmul %177, %178, %cst_84 {dimension_numbers = #tpu.dot_dimension_numbers<[1], [0], [0], [1], [0, 0, 1, 1], [], []>} : vector<8x32xbf16>, vector<32x128xbf16>, vector<8x128xf32> -> vector<8x128xf32>
    %c0_85 = arith.constant 0 : index
    %c0_86 = arith.constant 0 : index
    %180 = vector.load %arg22[%c0_85, %c0_86] : memref<1x128xf32, #tpu.memory_space<vmem>>, vector<1x128xf32>
    %181 = vector.broadcast %180 : vector<1x128xf32> to vector<8x128xf32>
    %182 = arith.addf %179, %181 : vector<8x128xf32>
    %cst_87 = arith.constant 0.000000e+00 : f32
    %183 = vector.broadcast %cst_87 : f32 to vector<8x128xf32>
    %184 = arith.maximumf %182, %183 : vector<8x128xf32>
    %185 = arith.truncf %184 : vector<8x128xf32> to vector<8x128xbf16>
    %c0_88 = arith.constant 0 : index
    %c0_89 = arith.constant 0 : index
    %186 = vector.load %arg23[%c0_88, %c0_89] : memref<128x32xbf16, #tpu.memory_space<vmem>>, vector<128x32xbf16>
    %cst_90 = arith.constant dense<0.000000e+00> : vector<8x32xf32>
    %187 = tpu.matmul %185, %186, %cst_90 {dimension_numbers = #tpu.dot_dimension_numbers<[1], [0], [0], [1], [0, 0, 1, 1], [], []>} : vector<8x128xbf16>, vector<128x32xbf16>, vector<8x32xf32> -> vector<8x32xf32>
    %c0_91 = arith.constant 0 : index
    %c0_92 = arith.constant 0 : index
    %188 = vector.load %arg24[%c0_91, %c0_92] : memref<1x32xf32, #tpu.memory_space<vmem>>, vector<1x32xf32>
    %189 = vector.broadcast %188 : vector<1x32xf32> to vector<8x32xf32>
    %190 = arith.addf %187, %189 : vector<8x32xf32>
    %191 = arith.addf %152, %190 : vector<8x32xf32>
    %c0_93 = arith.constant 0 : index
    %c0_94 = arith.constant 0 : index
    %c0_95 = arith.constant 0 : index
    %192 = vector.load %arg25[%c0_93, %c0_94, %c0_95] : memref<1x8x32xf32, #tpu.memory_space<vmem>>, vector<1x8x32xf32>
    %193 = vector.shape_cast %192 : vector<1x8x32xf32> to vector<8x32xf32>
    %194 = vector.shape_cast %191 : vector<8x32xf32> to vector<1x8x32xf32>
    tpu.vector_store %arg25[%c0_93, %c0_94, %c0_95], %194 {strides = array<i32>} : memref<1x8x32xf32, #tpu.memory_space<vmem>>, vector<1x8x32xf32>,
    return
  }
  func.func @transform_0(%arg0: i32) -> (i32, i32, i32) {
    %c0_i32 = arith.constant 0 : i32
    %c0_i32_0 = arith.constant 0 : i32
    %c0_i32_1 = arith.constant 0 : i32
    return %arg0, %c0_i32, %c0_i32_0 : i32, i32, i32
  }
  func.func @transform_1(%arg0: i32) -> (i32, i32, i32) {
    %c0_i32 = arith.constant 0 : i32
    %c0_i32_0 = arith.constant 0 : i32
    %c0_i32_1 = arith.constant 0 : i32
    return %arg0, %c0_i32, %c0_i32_0 : i32, i32, i32
  }
  func.func @transform_2(%arg0: i32) -> (i32, i32, i32) {
    %c0_i32 = arith.constant 0 : i32
    %c0_i32_0 = arith.constant 0 : i32
    %c0_i32_1 = arith.constant 0 : i32
    return %arg0, %c0_i32, %c0_i32_0 : i32, i32, i32
  }
  func.func @transform_3(%arg0: i32) -> (i32, i32, i32) {
    %c0_i32 = arith.constant 0 : i32
    %c0_i32_0 = arith.constant 0 : i32
    %c0_i32_1 = arith.constant 0 : i32
    return %arg0, %c0_i32, %c0_i32_0 : i32, i32, i32
  }
  func.func @transform_4(%arg0: i32) -> (i32, i32) {
    %c0_i32 = arith.constant 0 : i32
    %c0_i32_0 = arith.constant 0 : i32
    %c0_i32_1 = arith.constant 0 : i32
    return %c0_i32, %c0_i32_0 : i32, i32
  }
  func.func @transform_5(%arg0: i32) -> (i32, i32) {
    %c0_i32 = arith.constant 0 : i32
    %c0_i32_0 = arith.constant 0 : i32
    %c0_i32_1 = arith.constant 0 : i32
    return %c0_i32, %c0_i32_0 : i32, i32
  }
  func.func @transform_6(%arg0: i32) -> (i32, i32) {
    %c0_i32 = arith.constant 0 : i32
    %c0_i32_0 = arith.constant 0 : i32
    %c0_i32_1 = arith.constant 0 : i32
    return %c0_i32, %c0_i32_0 : i32, i32
  }
  func.func @transform_7(%arg0: i32) -> (i32, i32) {
    %c0_i32 = arith.constant 0 : i32
    %c0_i32_0 = arith.constant 0 : i32
    %c0_i32_1 = arith.constant 0 : i32
    return %c0_i32, %c0_i32_0 : i32, i32
  }
  func.func @transform_8(%arg0: i32) -> (i32, i32) {
    %c0_i32 = arith.constant 0 : i32
    %c0_i32_0 = arith.constant 0 : i32
    %c0_i32_1 = arith.constant 0 : i32
    return %c0_i32, %c0_i32_0 : i32, i32
  }
  func.func @transform_9(%arg0: i32) -> (i32, i32) {
    %c0_i32 = arith.constant 0 : i32
    %c0_i32_0 = arith.constant 0 : i32
    %c0_i32_1 = arith.constant 0 : i32
    return %c0_i32, %c0_i32_0 : i32, i32
  }
  func.func @transform_10(%arg0: i32) -> (i32, i32) {
    %c0_i32 = arith.constant 0 : i32
    %c0_i32_0 = arith.constant 0 : i32
    %c0_i32_1 = arith.constant 0 : i32
    return %c0_i32, %c0_i32_0 : i32, i32
  }
  func.func @transform_11(%arg0: i32) -> (i32, i32) {
    %c0_i32 = arith.constant 0 : i32
    %c0_i32_0 = arith.constant 0 : i32
    %c0_i32_1 = arith.constant 0 : i32
    return %c0_i32, %c0_i32_0 : i32, i32
  }
  func.func @transform_12(%arg0: i32) -> (i32, i32) {
    %c0_i32 = arith.constant 0 : i32
    %c0_i32_0 = arith.constant 0 : i32
    %c0_i32_1 = arith.constant 0 : i32
    return %c0_i32, %c0_i32_0 : i32, i32
  }
  func.func @transform_13(%arg0: i32) -> (i32, i32) {
    %c0_i32 = arith.constant 0 : i32
    %c0_i32_0 = arith.constant 0 : i32
    %c0_i32_1 = arith.constant 0 : i32
    return %c0_i32, %c0_i32_0 : i32, i32
  }
  func.func @transform_14(%arg0: i32) -> (i32, i32) {
    %c0_i32 = arith.constant 0 : i32
    %c0_i32_0 = arith.constant 0 : i32
    %c0_i32_1 = arith.constant 0 : i32
    return %c0_i32, %c0_i32_0 : i32, i32
  }
  func.func @transform_15(%arg0: i32) -> (i32, i32) {
    %c0_i32 = arith.constant 0 : i32
    %c0_i32_0 = arith.constant 0 : i32
    %c0_i32_1 = arith.constant 0 : i32
    return %c0_i32, %c0_i32_0 : i32, i32
  }
  func.func @transform_16(%arg0: i32) -> (i32, i32) {
    %c0_i32 = arith.constant 0 : i32
    %c0_i32_0 = arith.constant 0 : i32
    %c0_i32_1 = arith.constant 0 : i32
    return %c0_i32, %c0_i32_0 : i32, i32
  }
  func.func @transform_17(%arg0: i32) -> (i32, i32) {
    %c0_i32 = arith.constant 0 : i32
    %c0_i32_0 = arith.constant 0 : i32
    %c0_i32_1 = arith.constant 0 : i32
    return %c0_i32, %c0_i32_0 : i32, i32
  }
  func.func @transform_18(%arg0: i32) -> (i32, i32) {
    %c0_i32 = arith.constant 0 : i32
    %c0_i32_0 = arith.constant 0 : i32
    %c0_i32_1 = arith.constant 0 : i32
    return %c0_i32, %c0_i32_0 : i32, i32
  }
  func.func @transform_19(%arg0: i32) -> (i32, i32) {
    %c0_i32 = arith.constant 0 : i32
    %c0_i32_0 = arith.constant 0 : i32
    %c0_i32_1 = arith.constant 0 : i32
    return %c0_i32, %c0_i32_0 : i32, i32
  }
  func.func @transform_20(%arg0: i32) -> (i32, i32) {
    %c0_i32 = arith.constant 0 : i32
    %c0_i32_0 = arith.constant 0 : i32
    %c0_i32_1 = arith.constant 0 : i32
    return %c0_i32, %c0_i32_0 : i32, i32
  }
  func.func @transform_21(%arg0: i32) -> (i32, i32) {
    %c0_i32 = arith.constant 0 : i32
    %c0_i32_0 = arith.constant 0 : i32
    %c0_i32_1 = arith.constant 0 : i32
    return %c0_i32, %c0_i32_0 : i32, i32
  }
  func.func @transform_22(%arg0: i32) -> (i32, i32) {
    %c0_i32 = arith.constant 0 : i32
    %c0_i32_0 = arith.constant 0 : i32
    %c0_i32_1 = arith.constant 0 : i32
    return %c0_i32, %c0_i32_0 : i32, i32
  }
  func.func @transform_23(%arg0: i32) -> (i32, i32) {
    %c0_i32 = arith.constant 0 : i32
    %c0_i32_0 = arith.constant 0 : i32
    %c0_i32_1 = arith.constant 0 : i32
    return %c0_i32, %c0_i32_0 : i32, i32
  }
  func.func @transform_24(%arg0: i32) -> (i32, i32, i32) {
    %c0_i32 = arith.constant 0 : i32
    %c0_i32_0 = arith.constant 0 : i32
    %c0_i32_1 = arith.constant 0 : i32
    return %arg0, %c0_i32, %c0_i32_0 : i32, i32, i32
  }
  func.func @transform_25(%arg0: i32) -> (i32, i32, i32, i32) {
    %c0_i32 = arith.constant 0 : i32
    %c0_i32_0 = arith.constant 0 : i32
    %c0_i32_1 = arith.constant 0 : i32
    %c0_i32_2 = arith.constant 0 : i32
    return %arg0, %c0_i32, %c0_i32_0, %c0_i32_1 : i32, i32, i32, i32
  }
  func.func @transform_26(%arg0: i32) -> (i32, i32, i32, i32) {
    %c0_i32 = arith.constant 0 : i32
    %c0_i32_0 = arith.constant 0 : i32
    %c0_i32_1 = arith.constant 0 : i32
    %c0_i32_2 = arith.constant 0 : i32
    return %arg0, %c0_i32, %c0_i32_0, %c0_i32_1 : i32, i32, i32, i32
  }
}

</mosaic_0001>

<llo_original>
// kernel: tpu_custom_call.1
$region0: #{tpu_custom_call.1}
  #allocation0 [shape = 'u32[]', space=smem, size = 0x4, offset = 0x4, fixed_abs, tag = 'smem constant byte address 0x4 - core index']
  #allocation1 [shape = 'u32[144,128]{1,0:T(1,128)}', space=vmem, size = 0x12000, scoped, tag = 'internal scratch']
  %s0 = inlined_call_operand.vmem [shape: f32[2,8,32], index: 0, kind: input, shape index: {}]
  %s1 = inlined_call_operand.vmem [shape: f32[2,16,32], index: 1, kind: input, shape index: {}]
  %s2 = inlined_call_operand.vmem [shape: f32[2,8,8], index: 2, kind: input, shape index: {}]
  %s3 = inlined_call_operand.hbm [shape: f32[2,1,16], index: 3, kind: input, shape index: {}]
  %s4 = inlined_call_operand.hbm [shape: f32[1,32], index: 4, kind: input, shape index: {}]
  %s5 = inlined_call_operand.hbm [shape: f32[1,32], index: 5, kind: input, shape index: {}]
  %s6 = inlined_call_operand.vmem [shape: bf16[32,96], index: 6, kind: input, shape index: {}]
  %s7 = inlined_call_operand.hbm [shape: f32[1,96], index: 7, kind: input, shape index: {}]
  %s8 = inlined_call_operand.hbm [shape: bf16[32,32], index: 8, kind: input, shape index: {}]
  %s9 = inlined_call_operand.hbm [shape: f32[1,32], index: 9, kind: input, shape index: {}]
  %s10 = inlined_call_operand.hbm [shape: f32[1,32], index: 10, kind: input, shape index: {}]
  %s11 = inlined_call_operand.hbm [shape: f32[1,32], index: 11, kind: input, shape index: {}]
  %s12 = inlined_call_operand.vmem [shape: bf16[32,32], index: 12, kind: input, shape index: {}]
  %s13 = inlined_call_operand.hbm [shape: f32[1,32], index: 13, kind: input, shape index: {}]
  %s14 = inlined_call_operand.hbm [shape: bf16[32,64], index: 14, kind: input, shape index: {}]
  %s15 = inlined_call_operand.hbm [shape: f32[1,64], index: 15, kind: input, shape index: {}]
  %s16 = inlined_call_operand.hbm [shape: bf16[32,32], index: 16, kind: input, shape index: {}]
  %s17 = inlined_call_operand.hbm [shape: f32[1,32], index: 17, kind: input, shape index: {}]
  %s18 = inlined_call_operand.hbm [shape: f32[1,32], index: 18, kind: input, shape index: {}]
  %s19 = inlined_call_operand.vmem [shape: f32[1,32], index: 19, kind: input, shape index: {}]
  %s20 = inlined_call_operand.hbm [shape: bf16[32,128], index: 20, kind: input, shape index: {}]
  %s21 = inlined_call_operand.vmem [shape: f32[1,128], index: 21, kind: input, shape index: {}]
  %s22 = inlined_call_operand.vmem [shape: bf16[128,32], index: 22, kind: input, shape index: {}]
  %s23 = inlined_call_operand.vmem [shape: f32[1,32], index: 23, kind: input, shape index: {}]
  %s24 = inlined_call_operand.hbm [shape: f32[2,8,32], index: 24, kind: output, shape index: {0}]
  %s25 = inlined_call_operand.hbm [shape: f32[2,4,8,8], index: 25, kind: output, shape index: {1}]
  %s26 = inlined_call_operand.hbm [shape: f32[2,4,8,16], index: 26, kind: output, shape index: {2}]
  %27 = xla_tuple %s24, %s25, %s26
  %s28 = sld [smem:[#allocation0]]
  $region205: #{tpu_custom_call.1} parent=0
    _
  %s30 = ssub.s32 1, %s28
  %s31 = scalar_select 0, %s30, %s28
  $region1: #{tpu_custom_call.1} parent=0
    #allocation2 [shape = 'u8[1024]{0}', space=vmem, size = 0x400, scoped, tag = 'input window, operand 3']
    #allocation3 [shape = 's32[2]{0}', space=sflag, size = 0x8, scoped, tag = 'scoped memory for tpu_custom_call.1']
    #allocation4 [shape = 's32[2]{0}', space=sflag, size = 0x8, scoped, tag = 'scoped memory for tpu_custom_call.1']
    #allocation5 [shape = 'u8[512]{0}', space=vmem, size = 0x400, scoped, tag = 'input window, operand 4, single buffered']
    #allocation6 [shape = 's32[1]{0}', space=sflag, size = 0x4, scoped, tag = 'scoped memory for tpu_custom_call.1']
    #allocation7 [shape = 'u8[512]{0}', space=vmem, size = 0x400, scoped, tag = 'input window, operand 5, single buffered']
    #allocation8 [shape = 'u8[512]{0}', space=vmem, size = 0x400, scoped, tag = 'input window, operand 7, single buffered']
    #allocation9 [shape = 's32[1]{0}', space=sflag, size = 0x4, scoped, tag = 'scoped memory for tpu_custom_call.1']
    #allocation10 [shape = 'u8[8192]{0}', space=vmem, size = 0x2000, scoped, tag = 'input window, operand 8, single buffered']
    #allocation11 [shape = 'u8[512]{0}', space=vmem, size = 0x400, scoped, tag = 'input window, operand 9, single buffered']
    #allocation12 [shape = 's32[1]{0}', space=sflag, size = 0x4, scoped, tag = 'scoped memory for tpu_custom_call.1']
    #allocation13 [shape = 'u8[512]{0}', space=vmem, size = 0x400, scoped, tag = 'input window, operand 10, single buffered']
    #allocation14 [shape = 'u8[512]{0}', space=vmem, size = 0x400, scoped, tag = 'input window, operand 11, single buffered']
    #allocation15 [shape = 's32[1]{0}', space=sflag, size = 0x4, scoped, tag = 'scoped memory for tpu_custom_call.1']
    #allocation16 [shape = 'u8[512]{0}', space=vmem, size = 0x400, scoped, tag = 'input window, operand 13, single buffered']
    #allocation17 [shape = 'u8[8192]{0}', space=vmem, size = 0x2000, scoped, tag = 'input window, operand 14, single buffered']
    #allocation18 [shape = 's32[1]{0}', space=sflag, size = 0x4, scoped, tag = 'scoped memory for tpu_custom_call.1']
    #allocation19 [shape = 'u8[512]{0}', space=vmem, size = 0x400, scoped, tag = 'input window, operand 15, single buffered']
    #allocation20 [shape = 'u8[8192]{0}', space=vmem, size = 0x2000, scoped, tag = 'input window, operand 16, single buffered']
    #allocation21 [shape = 's32[1]{0}', space=sflag, size = 0x4, scoped, tag = 'scoped memory for tpu_custom_call.1']
    #allocation22 [shape = 'u8[512]{0}', space=vmem, size = 0x400, scoped, tag = 'input window, operand 17, single buffered']
    #allocation23 [shape = 'u8[512]{0}', space=vmem, size = 0x400, scoped, tag = 'input window, operand 18, single buffered']
    #allocation24 [shape = 's32[1]{0}', space=sflag, size = 0x4, scoped, tag = 'scoped memory for tpu_custom_call.1']
    #allocation25 [shape = 'u8[8192]{0}', space=vmem, size = 0x2000, scoped, tag = 'input window, operand 20, single buffered']
    #allocation26 [shape = 'u8[8192]{0}', space=vmem, size = 0x2000, scoped, tag = 'output window, operand 0']
    #allocation27 [shape = 'u8[32768]{0}', space=vmem, size = 0x8000, scoped, tag = 'output window, operand 1']
    #allocation28 [shape = 's32[2]{0}', space=sflag, size = 0x8, scoped, tag = 'scoped memory for tpu_custom_call.1']
    #allocation29 [shape = 'u8[32768]{0}', space=vmem, size = 0x8000, scoped, tag = 'output window, operand 2']
    %32 = vsyncpa [#allocation3], 0
    %s33 = scalar_lea.sflag [#allocation3], 1
    %34 = vsyncpa %s33, 0
    %35 = vsyncpa [#allocation6], 0
    %36 = vsyncpa [#allocation9], 0
    %37 = vsyncpa [#allocation12], 0
    %38 = vsyncpa [#allocation15], 0
    %39 = vsyncpa [#allocation18], 0
    %40 = vsyncpa [#allocation21], 0
    %41 = vsyncpa [#allocation24], 0
    %42 = vsyncpa [#allocation4], 0
    %s43 = scalar_lea.sflag [#allocation4], 1
    %44 = vsyncpa %s43, 0
    %45 = vsyncpa [#allocation28], 0
    %s46 = scalar_lea.sflag [#allocation28], 1
    %47 = vsyncpa %s46, 0
    loop: start=0, step=1, limit=4
    $region2: #{tpu_custom_call.1} parent=1 // loop_pre_header
      _
    $region3: #{tpu_custom_call.1} parent=1 // loop_header
      %s49 = sphi 0, %s53
      %p50 = scmp.ge.s32.totalorder %s49, 4
      %s59 = sphi 0, %s61
      %s62 = sphi 0, %s59
      %s63 = sphi 0, %s62
      %s79 = sphi 0, %s63
      %s85 = sphi 0, %s87
      %s88 = sphi 0, %s85
      %s89 = sphi 0, %s88
      %s105 = sphi 0, %s89
      %s111 = sphi 0, %s113
      %s114 = sphi 0, %s111
      %s115 = sphi 0, %s114
      %s131 = sphi 0, %s115
      %s137 = sphi 0, %s139
      %s140 = sphi 0, %s137
      %s141 = sphi 0, %s140
      %s157 = sphi 0, %s141
      %s161 = sphi 0, %s161
      %s163 = sphi 0, %s161
      %s164 = sphi 0, %s163
      %s178 = sphi 0, %s164
      %s182 = sphi 0, %s182
      %s184 = sphi 0, %s182
      %s185 = sphi 0, %s184
      %s199 = sphi 0, %s185
      %s203 = sphi 0, %s203
      %s205 = sphi 0, %s203
      %s206 = sphi 0, %s205
      %s220 = sphi 0, %s206
      %s224 = sphi 0, %s224
      %s226 = sphi 0, %s224
      %s227 = sphi 0, %s226
      %s241 = sphi 0, %s227
      %s245 = sphi 0, %s245
      %s247 = sphi 0, %s245
      %s248 = sphi 0, %s247
      %s262 = sphi 0, %s248
      %s266 = sphi 0, %s266
      %s268 = sphi 0, %s266
      %s269 = sphi 0, %s268
      %s283 = sphi 0, %s269
      %s287 = sphi 0, %s287
      %s289 = sphi 0, %s287
      %s290 = sphi 0, %s289
      %s304 = sphi 0, %s290
      %s308 = sphi 0, %s308
      %s310 = sphi 0, %s308
      %s311 = sphi 0, %s310
      %s325 = sphi 0, %s311
      %s329 = sphi 0, %s329
      %s331 = sphi 0, %s329
      %s332 = sphi 0, %s331
      %s346 = sphi 0, %s332
      %s350 = sphi 0, %s350
      %s352 = sphi 0, %s350
      %s353 = sphi 0, %s352
      %s367 = sphi 0, %s353
      %s371 = sphi 0, %s371
      %s373 = sphi 0, %s371
      %s374 = sphi 0, %s373
      %s388 = sphi 0, %s374
      %s392 = sphi 0, %s392
      %s394 = sphi 0, %s392
      %s395 = sphi 0, %s394
      %s409 = sphi 0, %s395
      %s413 = sphi 0, %s413
      %s415 = sphi 0, %s413
      %s416 = sphi 0, %s415
      %s430 = sphi 0, %s416
      %s434 = sphi 0, %s434
      %s436 = sphi 0, %s434
      %s437 = sphi 0, %s436
      %s451 = sphi 0, %s437
      %s455 = sphi 0, %s455
      %s457 = sphi 0, %s455
      %s458 = sphi 0, %s457
      %s472 = sphi 0, %s458
      %s476 = sphi 0, %s476
      %s478 = sphi 0, %s476
      %s479 = sphi 0, %s478
      %s493 = sphi 0, %s479
      %s497 = sphi 0, %s497
      %s499 = sphi 0, %s497
      %s500 = sphi 0, %s499
      %s514 = sphi 0, %s500
      %s518 = sphi 0, %s518
      %s520 = sphi 0, %s518
      %s521 = sphi 0, %s520
      %s535 = sphi 0, %s521
      %s539 = sphi 0, %s539
      %s541 = sphi 0, %s539
      %s542 = sphi 0, %s541
      %s556 = sphi 0, %s542
      %s560 = sphi 0, %s560
      %s562 = sphi 0, %s560
      %s563 = sphi 0, %s562
      %s577 = sphi 0, %s563
      %s583 = sphi 0, %s585
      %s586 = sphi 0, %s583
      %s587 = sphi 0, %s586
      %s603 = sphi 0, %s587
      %s609 = sphi 0, %s611
      %s612 = sphi 0, %s609
      %s613 = sphi 0, %s612
      %s629 = sphi 0, %s613
      %s635 = sphi 0, %s637
      %s638 = sphi 0, %s635
      %s639 = sphi 0, %s638
      %s655 = sphi 0, %s639
    $region4: #{tpu_custom_call.1} parent=1 // loop_header_branch
      %52 = sbr.rel (%p50) target = $region8
    $region5: #{tpu_custom_call.1} parent=1 // loop_body
      %s54 = ssub.s32 %s49, 1
      %s55 = ssub.s32 %s49, 2
      %s56 = sadd.s32 %s49, 1
      %s57 = ssub.s32 %s49, %s56
      %p58 = scmp.eq.s32.totalorder %s57, 0
      %s60 = sadd.s32 %s59, 1
      %s61 = scalar_select %p58, %s59, %s60
      %p64 = pneg %p58
      %p65 = scmp.eq.s32.totalorder %s49, 1
      %p66 = por %p64, %p65
      %p67 = scmp.ne.s32.totalorder %s59, %s62
      %p68 = scmp.eq.s32.totalorder %s49, 0
      %p69 = por %p67, %p68
      %p70 = scmp.ne.s32.totalorder %s59, %s62
      %p71 = scmp.eq.s32.totalorder %s54, 1
      %p72 = por %p70, %p71
      %p73 = scmp.ne.s32.totalorder %s62, %s63
      %p74 = scmp.eq.s32.totalorder %s54, 0
      %p75 = por %p73, %p74
      %p76 = scmp.ne.s32.totalorder %s62, %s63
      %p77 = scmp.eq.s32.totalorder %s55, 1
      %p78 = por %p76, %p77
      %p80 = scmp.ne.s32.totalorder %s63, %s79
      %p81 = scmp.eq.s32.totalorder %s55, 0
      %p82 = por %p80, %p81
      %s83 = ssub.s32 %s49, %s56
      %p84 = scmp.eq.s32.totalorder %s83, 0
      %s86 = sadd.s32 %s85, 1
      %s87 = scalar_select %p84, %s85, %s86
      %p90 = pneg %p84
      %p91 = scmp.eq.s32.totalorder %s49, 1
      %p92 = por %p90, %p91
      %p93 = scmp.ne.s32.totalorder %s85, %s88
      %p94 = scmp.eq.s32.totalorder %s49, 0
      %p95 = por %p93, %p94
      %p96 = scmp.ne.s32.totalorder %s85, %s88
      %p97 = scmp.eq.s32.totalorder %s54, 1
      %p98 = por %p96, %p97
      %p99 = scmp.ne.s32.totalorder %s88, %s89
      %p100 = scmp.eq.s32.totalorder %s54, 0
      %p101 = por %p99, %p100
      %p102 = scmp.ne.s32.totalorder %s88, %s89
      %p103 = scmp.eq.s32.totalorder %s55, 1
      %p104 = por %p102, %p103
      %p106 = scmp.ne.s32.totalorder %s89, %s105
      %p107 = scmp.eq.s32.totalorder %s55, 0
      %p108 = por %p106, %p107
      %s109 = ssub.s32 %s49, %s56
      %p110 = scmp.eq.s32.totalorder %s109, 0
      %s112 = sadd.s32 %s111, 1
      %s113 = scalar_select %p110, %s111, %s112
      %p116 = pneg %p110
      %p117 = scmp.eq.s32.totalorder %s49, 1
      %p118 = por %p116, %p117
      %p119 = scmp.ne.s32.totalorder %s111, %s114
      %p120 = scmp.eq.s32.totalorder %s49, 0
      %p121 = por %p119, %p120
      %p122 = scmp.ne.s32.totalorder %s111, %s114
      %p123 = scmp.eq.s32.totalorder %s54, 1
      %p124 = por %p122, %p123
      %p125 = scmp.ne.s32.totalorder %s114, %s115
      %p126 = scmp.eq.s32.totalorder %s54, 0
      %p127 = por %p125, %p126
      %p128 = scmp.ne.s32.totalorder %s114, %s115
      %p129 = scmp.eq.s32.totalorder %s55, 1
      %p130 = por %p128, %p129
      %p132 = scmp.ne.s32.totalorder %s115, %s131
      %p133 = scmp.eq.s32.totalorder %s55, 0
      %p134 = por %p132, %p133
      %s135 = ssub.s32 %s49, %s56
      %p136 = scmp.eq.s32.totalorder %s135, 0
      %s138 = sadd.s32 %s137, 1
      %s139 = scalar_select %p136, %s137, %s138
      %p142 = pneg %p136
      %p143 = scmp.eq.s32.totalorder %s49, 1
      %p144 = por %p142, %p143
      %p145 = scmp.ne.s32.totalorder %s137, %s140
      %p146 = scmp.eq.s32.totalorder %s49, 0
      %p147 = por %p145, %p146
      %p148 = scmp.ne.s32.totalorder %s137, %s140
      %p149 = scmp.eq.s32.totalorder %s54, 1
      %p150 = por %p148, %p149
      %p151 = scmp.ne.s32.totalorder %s140, %s141
      %p152 = scmp.eq.s32.totalorder %s54, 0
      %p153 = por %p151, %p152
      %p154 = scmp.ne.s32.totalorder %s140, %s141
      %p155 = scmp.eq.s32.totalorder %s55, 1
      %p156 = por %p154, %p155
      %p158 = scmp.ne.s32.totalorder %s141, %s157
      %p159 = scmp.eq.s32.totalorder %s55, 0
      %p160 = por %p158, %p159
      %s162 = sadd.s32 %s161, 1
      %p165 = scmp.eq.s32.totalorder %s49, 1
      %p166 = scmp.ne.s32.totalorder %s161, %s163
      %p167 = scmp.eq.s32.totalorder %s49, 0
      %p168 = por %p166, %p167
      %p169 = scmp.ne.s32.totalorder %s161, %s163
      %p170 = scmp.eq.s32.totalorder %s54, 1
      %p171 = por %p169, %p170
      %p172 = scmp.ne.s32.totalorder %s163, %s164
      %p173 = scmp.eq.s32.totalorder %s54, 0
      %p174 = por %p172, %p173
      %p175 = scmp.ne.s32.totalorder %s163, %s164
      %p176 = scmp.eq.s32.totalorder %s55, 1
      %p177 = por %p175, %p176
      %p179 = scmp.ne.s32.totalorder %s164, %s178
      %p180 = scmp.eq.s32.totalorder %s55, 0
      %p181 = por %p179, %p180
      %s183 = sadd.s32 %s182, 1
      %p186 = scmp.eq.s32.totalorder %s49, 1
      %p187 = scmp.ne.s32.totalorder %s182, %s184
      %p188 = scmp.eq.s32.totalorder %s49, 0
      %p189 = por %p187, %p188
      %p190 = scmp.ne.s32.totalorder %s182, %s184
      %p191 = scmp.eq.s32.totalorder %s54, 1
      %p192 = por %p190, %p191
      %p193 = scmp.ne.s32.totalorder %s184, %s185
      %p194 = scmp.eq.s32.totalorder %s54, 0
      %p195 = por %p193, %p194
      %p196 = scmp.ne.s32.totalorder %s184, %s185
      %p197 = scmp.eq.s32.totalorder %s55, 1
      %p198 = por %p196, %p197
      %p200 = scmp.ne.s32.totalorder %s185, %s199
      %p201 = scmp.eq.s32.totalorder %s55, 0
      %p202 = por %p200, %p201
      %s204 = sadd.s32 %s203, 1
      %p207 = scmp.eq.s32.totalorder %s49, 1
      %p208 = scmp.ne.s32.totalorder %s203, %s205
      %p209 = scmp.eq.s32.totalorder %s49, 0
      %p210 = por %p208, %p209
      %p211 = scmp.ne.s32.totalorder %s203, %s205
      %p212 = scmp.eq.s32.totalorder %s54, 1
      %p213 = por %p211, %p212
      %p214 = scmp.ne.s32.totalorder %s205, %s206
      %p215 = scmp.eq.s32.totalorder %s54, 0
      %p216 = por %p214, %p215
      %p217 = scmp.ne.s32.totalorder %s205, %s206
      %p218 = scmp.eq.s32.totalorder %s55, 1
      %p219 = por %p217, %p218
      %p221 = scmp.ne.s32.totalorder %s206, %s220
      %p222 = scmp.eq.s32.totalorder %s55, 0
      %p223 = por %p221, %p222
      %s225 = sadd.s32 %s224, 1
      %p228 = scmp.eq.s32.totalorder %s49, 1
      %p229 = scmp.ne.s32.totalorder %s224, %s226
      %p230 = scmp.eq.s32.totalorder %s49, 0
      %p231 = por %p229, %p230
      %p232 = scmp.ne.s32.totalorder %s224, %s226
      %p233 = scmp.eq.s32.totalorder %s54, 1
      %p234 = por %p232, %p233
      %p235 = scmp.ne.s32.totalorder %s226, %s227
      %p236 = scmp.eq.s32.totalorder %s54, 0
      %p237 = por %p235, %p236
      %p238 = scmp.ne.s32.totalorder %s226, %s227
      %p239 = scmp.eq.s32.totalorder %s55, 1
      %p240 = por %p238, %p239
      %p242 = scmp.ne.s32.totalorder %s227, %s241
      %p243 = scmp.eq.s32.totalorder %s55, 0
      %p244 = por %p242, %p243
      %s246 = sadd.s32 %s245, 1
      %p249 = scmp.eq.s32.totalorder %s49, 1
      %p250 = scmp.ne.s32.totalorder %s245, %s247
      %p251 = scmp.eq.s32.totalorder %s49, 0
      %p252 = por %p250, %p251
      %p253 = scmp.ne.s32.totalorder %s245, %s247
      %p254 = scmp.eq.s32.totalorder %s54, 1
      %p255 = por %p253, %p254
      %p256 = scmp.ne.s32.totalorder %s247, %s248
      %p257 = scmp.eq.s32.totalorder %s54, 0
      %p258 = por %p256, %p257
      %p259 = scmp.ne.s32.totalorder %s247, %s248
      %p260 = scmp.eq.s32.totalorder %s55, 1
      %p261 = por %p259, %p260
      %p263 = scmp.ne.s32.totalorder %s248, %s262
      %p264 = scmp.eq.s32.totalorder %s55, 0
      %p265 = por %p263, %p264
      %s267 = sadd.s32 %s266, 1
      %p270 = scmp.eq.s32.totalorder %s49, 1
      %p271 = scmp.ne.s32.totalorder %s266, %s268
      %p272 = scmp.eq.s32.totalorder %s49, 0
      %p273 = por %p271, %p272
      %p274 = scmp.ne.s32.totalorder %s266, %s268
      %p275 = scmp.eq.s32.totalorder %s54, 1
      %p276 = por %p274, %p275
      %p277 = scmp.ne.s32.totalorder %s268, %s269
      %p278 = scmp.eq.s32.totalorder %s54, 0
      %p279 = por %p277, %p278
      %p280 = scmp.ne.s32.totalorder %s268, %s269
      %p281 = scmp.eq.s32.totalorder %s55, 1
      %p282 = por %p280, %p281
      %p284 = scmp.ne.s32.totalorder %s269, %s283
      %p285 = scmp.eq.s32.totalorder %s55, 0
      %p286 = por %p284, %p285
      %s288 = sadd.s32 %s287, 1
      %p291 = scmp.eq.s32.totalorder %s49, 1
      %p292 = scmp.ne.s32.totalorder %s287, %s289
      %p293 = scmp.eq.s32.totalorder %s49, 0
      %p294 = por %p292, %p293
      %p295 = scmp.ne.s32.totalorder %s287, %s289
      %p296 = scmp.eq.s32.totalorder %s54, 1
      %p297 = por %p295, %p296
      %p298 = scmp.ne.s32.totalorder %s289, %s290
      %p299 = scmp.eq.s32.totalorder %s54, 0
      %p300 = por %p298, %p299
      %p301 = scmp.ne.s32.totalorder %s289, %s290
      %p302 = scmp.eq.s32.totalorder %s55, 1
      %p303 = por %p301, %p302
      %p305 = scmp.ne.s32.totalorder %s290, %s304
      %p306 = scmp.eq.s32.totalorder %s55, 0
      %p307 = por %p305, %p306
      %s309 = sadd.s32 %s308, 1
      %p312 = scmp.eq.s32.totalorder %s49, 1
      %p313 = scmp.ne.s32.totalorder %s308, %s310
      %p314 = scmp.eq.s32.totalorder %s49, 0
      %p315 = por %p313, %p314
      %p316 = scmp.ne.s32.totalorder %s308, %s310
      %p317 = scmp.eq.s32.totalorder %s54, 1
      %p318 = por %p316, %p317
      %p319 = scmp.ne.s32.totalorder %s310, %s311
      %p320 = scmp.eq.s32.totalorder %s54, 0
      %p321 = por %p319, %p320
      %p322 = scmp.ne.s32.totalorder %s310, %s311
      %p323 = scmp.eq.s32.totalorder %s55, 1
      %p324 = por %p322, %p323
      %p326 = scmp.ne.s32.totalorder %s311, %s325
      %p327 = scmp.eq.s32.totalorder %s55, 0
      %p328 = por %p326, %p327
      %s330 = sadd.s32 %s329, 1
      %p333 = scmp.eq.s32.totalorder %s49, 1
      %p334 = scmp.ne.s32.totalorder %s329, %s331
      %p335 = scmp.eq.s32.totalorder %s49, 0
      %p336 = por %p334, %p335
      %p337 = scmp.ne.s32.totalorder %s329, %s331
      %p338 = scmp.eq.s32.totalorder %s54, 1
      %p339 = por %p337, %p338
      %p340 = scmp.ne.s32.totalorder %s331, %s332
      %p341 = scmp.eq.s32.totalorder %s54, 0
      %p342 = por %p340, %p341
      %p343 = scmp.ne.s32.totalorder %s331, %s332
      %p344 = scmp.eq.s32.totalorder %s55, 1
      %p345 = por %p343, %p344
      %p347 = scmp.ne.s32.totalorder %s332, %s346
      %p348 = scmp.eq.s32.totalorder %s55, 0
      %p349 = por %p347, %p348
      %s351 = sadd.s32 %s350, 1
      %p354 = scmp.eq.s32.totalorder %s49, 1
      %p355 = scmp.ne.s32.totalorder %s350, %s352
      %p356 = scmp.eq.s32.totalorder %s49, 0
      %p357 = por %p355, %p356
      %p358 = scmp.ne.s32.totalorder %s350, %s352
      %p359 = scmp.eq.s32.totalorder %s54, 1
      %p360 = por %p358, %p359
      %p361 = scmp.ne.s32.totalorder %s352, %s353
      %p362 = scmp.eq.s32.totalorder %s54, 0
      %p363 = por %p361, %p362
      %p364 = scmp.ne.s32.totalorder %s352, %s353
      %p365 = scmp.eq.s32.totalorder %s55, 1
      %p366 = por %p364, %p365
      %p368 = scmp.ne.s32.totalorder %s353, %s367
      %p369 = scmp.eq.s32.totalorder %s55, 0
      %p370 = por %p368, %p369
      %s372 = sadd.s32 %s371, 1
      %p375 = scmp.eq.s32.totalorder %s49, 1
      %p376 = scmp.ne.s32.totalorder %s371, %s373
      %p377 = scmp.eq.s32.totalorder %s49, 0
      %p378 = por %p376, %p377
      %p379 = scmp.ne.s32.totalorder %s371, %s373
      %p380 = scmp.eq.s32.totalorder %s54, 1
      %p381 = por %p379, %p380
      %p382 = scmp.ne.s32.totalorder %s373, %s374
      %p383 = scmp.eq.s32.totalorder %s54, 0
      %p384 = por %p382, %p383
      %p385 = scmp.ne.s32.totalorder %s373, %s374
      %p386 = scmp.eq.s32.totalorder %s55, 1
      %p387 = por %p385, %p386
      %p389 = scmp.ne.s32.totalorder %s374, %s388
      %p390 = scmp.eq.s32.totalorder %s55, 0
      %p391 = por %p389, %p390
      %s393 = sadd.s32 %s392, 1
      %p396 = scmp.eq.s32.totalorder %s49, 1
      %p397 = scmp.ne.s32.totalorder %s392, %s394
      %p398 = scmp.eq.s32.totalorder %s49, 0
      %p399 = por %p397, %p398
      %p400 = scmp.ne.s32.totalorder %s392, %s394
      %p401 = scmp.eq.s32.totalorder %s54, 1
      %p402 = por %p400, %p401
      %p403 = scmp.ne.s32.totalorder %s394, %s395
      %p404 = scmp.eq.s32.totalorder %s54, 0
      %p405 = por %p403, %p404
      %p406 = scmp.ne.s32.totalorder %s394, %s395
      %p407 = scmp.eq.s32.totalorder %s55, 1
      %p408 = por %p406, %p407
      %p410 = scmp.ne.s32.totalorder %s395, %s409
      %p411 = scmp.eq.s32.totalorder %s55, 0
      %p412 = por %p410, %p411
      %s414 = sadd.s32 %s413, 1
      %p417 = scmp.eq.s32.totalorder %s49, 1
      %p418 = scmp.ne.s32.totalorder %s413, %s415
      %p419 = scmp.eq.s32.totalorder %s49, 0
      %p420 = por %p418, %p419
      %p421 = scmp.ne.s32.totalorder %s413, %s415
      %p422 = scmp.eq.s32.totalorder %s54, 1
      %p423 = por %p421, %p422
      %p424 = scmp.ne.s32.totalorder %s415, %s416
      %p425 = scmp.eq.s32.totalorder %s54, 0
      %p426 = por %p424, %p425
      %p427 = scmp.ne.s32.totalorder %s415, %s416
      %p428 = scmp.eq.s32.totalorder %s55, 1
      %p429 = por %p427, %p428
      %p431 = scmp.ne.s32.totalorder %s416, %s430
      %p432 = scmp.eq.s32.totalorder %s55, 0
      %p433 = por %p431, %p432
      %s435 = sadd.s32 %s434, 1
      %p438 = scmp.eq.s32.totalorder %s49, 1
      %p439 = scmp.ne.s32.totalorder %s434, %s436
      %p440 = scmp.eq.s32.totalorder %s49, 0
      %p441 = por %p439, %p440
      %p442 = scmp.ne.s32.totalorder %s434, %s436
      %p443 = scmp.eq.s32.totalorder %s54, 1
      %p444 = por %p442, %p443
      %p445 = scmp.ne.s32.totalorder %s436, %s437
      %p446 = scmp.eq.s32.totalorder %s54, 0
      %p447 = por %p445, %p446
      %p448 = scmp.ne.s32.totalorder %s436, %s437
      %p449 = scmp.eq.s32.totalorder %s55, 1
      %p450 = por %p448, %p449
      %p452 = scmp.ne.s32.totalorder %s437, %s451
      %p453 = scmp.eq.s32.totalorder %s55, 0
      %p454 = por %p452, %p453
      %s456 = sadd.s32 %s455, 1
      %p459 = scmp.eq.s32.totalorder %s49, 1
      %p460 = scmp.ne.s32.totalorder %s455, %s457
      %p461 = scmp.eq.s32.totalorder %s49, 0
      %p462 = por %p460, %p461
      %p463 = scmp.ne.s32.totalorder %s455, %s457
      %p464 = scmp.eq.s32.totalorder %s54, 1
      %p465 = por %p463, %p464
      %p466 = scmp.ne.s32.totalorder %s457, %s458
      %p467 = scmp.eq.s32.totalorder %s54, 0
      %p468 = por %p466, %p467
      %p469 = scmp.ne.s32.totalorder %s457, %s458
      %p470 = scmp.eq.s32.totalorder %s55, 1
      %p471 = por %p469, %p470
      %p473 = scmp.ne.s32.totalorder %s458, %s472
      %p474 = scmp.eq.s32.totalorder %s55, 0
      %p475 = por %p473, %p474
      %s477 = sadd.s32 %s476, 1
      %p480 = scmp.eq.s32.totalorder %s49, 1
      %p481 = scmp.ne.s32.totalorder %s476, %s478
      %p482 = scmp.eq.s32.totalorder %s49, 0
      %p483 = por %p481, %p482
      %p484 = scmp.ne.s32.totalorder %s476, %s478
      %p485 = scmp.eq.s32.totalorder %s54, 1
      %p486 = por %p484, %p485
      %p487 = scmp.ne.s32.totalorder %s478, %s479
      %p488 = scmp.eq.s32.totalorder %s54, 0
      %p489 = por %p487, %p488
      %p490 = scmp.ne.s32.totalorder %s478, %s479
      %p491 = scmp.eq.s32.totalorder %s55, 1
      %p492 = por %p490, %p491
      %p494 = scmp.ne.s32.totalorder %s479, %s493
      %p495 = scmp.eq.s32.totalorder %s55, 0
      %p496 = por %p494, %p495
      %s498 = sadd.s32 %s497, 1
      %p501 = scmp.eq.s32.totalorder %s49, 1
      %p502 = scmp.ne.s32.totalorder %s497, %s499
      %p503 = scmp.eq.s32.totalorder %s49, 0
      %p504 = por %p502, %p503
      %p505 = scmp.ne.s32.totalorder %s497, %s499
      %p506 = scmp.eq.s32.totalorder %s54, 1
      %p507 = por %p505, %p506
      %p508 = scmp.ne.s32.totalorder %s499, %s500
      %p509 = scmp.eq.s32.totalorder %s54, 0
      %p510 = por %p508, %p509
      %p511 = scmp.ne.s32.totalorder %s499, %s500
      %p512 = scmp.eq.s32.totalorder %s55, 1
      %p513 = por %p511, %p512
      %p515 = scmp.ne.s32.totalorder %s500, %s514
      %p516 = scmp.eq.s32.totalorder %s55, 0
      %p517 = por %p515, %p516
      %s519 = sadd.s32 %s518, 1
      %p522 = scmp.eq.s32.totalorder %s49, 1
      %p523 = scmp.ne.s32.totalorder %s518, %s520
      %p524 = scmp.eq.s32.totalorder %s49, 0
      %p525 = por %p523, %p524
      %p526 = scmp.ne.s32.totalorder %s518, %s520
      %p527 = scmp.eq.s32.totalorder %s54, 1
      %p528 = por %p526, %p527
      %p529 = scmp.ne.s32.totalorder %s520, %s521
      %p530 = scmp.eq.s32.totalorder %s54, 0
      %p531 = por %p529, %p530
      %p532 = scmp.ne.s32.totalorder %s520, %s521
      %p533 = scmp.eq.s32.totalorder %s55, 1
      %p534 = por %p532, %p533
      %p536 = scmp.ne.s32.totalorder %s521, %s535
      %p537 = scmp.eq.s32.totalorder %s55, 0
      %p538 = por %p536, %p537
      %s540 = sadd.s32 %s539, 1
      %p543 = scmp.eq.s32.totalorder %s49, 1
      %p544 = scmp.ne.s32.totalorder %s539, %s541
      %p545 = scmp.eq.s32.totalorder %s49, 0
      %p546 = por %p544, %p545
      %p547 = scmp.ne.s32.totalorder %s539, %s541
      %p548 = scmp.eq.s32.totalorder %s54, 1
      %p549 = por %p547, %p548
      %p550 = scmp.ne.s32.totalorder %s541, %s542
      %p551 = scmp.eq.s32.totalorder %s54, 0
      %p552 = por %p550, %p551
      %p553 = scmp.ne.s32.totalorder %s541, %s542
      %p554 = scmp.eq.s32.totalorder %s55, 1
      %p555 = por %p553, %p554
      %p557 = scmp.ne.s32.totalorder %s542, %s556
      %p558 = scmp.eq.s32.totalorder %s55, 0
      %p559 = por %p557, %p558
      %s561 = sadd.s32 %s560, 1
      %p564 = scmp.eq.s32.totalorder %s49, 1
      %p565 = scmp.ne.s32.totalorder %s560, %s562
      %p566 = scmp.eq.s32.totalorder %s49, 0
      %p567 = por %p565, %p566
      %p568 = scmp.ne.s32.totalorder %s560, %s562
      %p569 = scmp.eq.s32.totalorder %s54, 1
      %p570 = por %p568, %p569
      %p571 = scmp.ne.s32.totalorder %s562, %s563
      %p572 = scmp.eq.s32.totalorder %s54, 0
      %p573 = por %p571, %p572
      %p574 = scmp.ne.s32.totalorder %s562, %s563
      %p575 = scmp.eq.s32.totalorder %s55, 1
      %p576 = por %p574, %p575
      %p578 = scmp.ne.s32.totalorder %s563, %s577
      %p579 = scmp.eq.s32.totalorder %s55, 0
      %p580 = por %p578, %p579
      %s581 = ssub.s32 %s49, %s56
      %p582 = scmp.eq.s32.totalorder %s581, 0
      %s584 = sadd.s32 %s583, 1
      %s585 = scalar_select %p582, %s583, %s584
      %p588 = pneg %p582
      %p589 = scmp.eq.s32.totalorder %s49, 1
      %p590 = por %p588, %p589
      %p591 = scmp.ne.s32.totalorder %s583, %s586
      %p592 = scmp.eq.s32.totalorder %s49, 0
      %p593 = por %p591, %p592
      %p594 = scmp.ne.s32.totalorder %s583, %s586
      %p595 = scmp.eq.s32.totalorder %s54, 1
      %p596 = por %p594, %p595
      %p597 = scmp.ne.s32.totalorder %s586, %s587
      %p598 = scmp.eq.s32.totalorder %s54, 0
      %p599 = por %p597, %p598
      %p600 = scmp.ne.s32.totalorder %s586, %s587
      %p601 = scmp.eq.s32.totalorder %s55, 1
      %p602 = por %p600, %p601
      %p604 = scmp.ne.s32.totalorder %s587, %s603
      %p605 = scmp.eq.s32.totalorder %s55, 0
      %p606 = por %p604, %p605
      %s607 = ssub.s32 %s49, %s56
      %p608 = scmp.eq.s32.totalorder %s607, 0
      %s610 = sadd.s32 %s609, 1
      %s611 = scalar_select %p608, %s609, %s610
      %p614 = pneg %p608
      %p615 = scmp.eq.s32.totalorder %s49, 1
      %p616 = por %p614, %p615
      %p617 = scmp.ne.s32.totalorder %s609, %s612
      %p618 = scmp.eq.s32.totalorder %s49, 0
      %p619 = por %p617, %p618
      %p620 = scmp.ne.s32.totalorder %s609, %s612
      %p621 = scmp.eq.s32.totalorder %s54, 1
      %p622 = por %p620, %p621
      %p623 = scmp.ne.s32.totalorder %s612, %s613
      %p624 = scmp.eq.s32.totalorder %s54, 0
      %p625 = por %p623, %p624
      %p626 = scmp.ne.s32.totalorder %s612, %s613
      %p627 = scmp.eq.s32.totalorder %s55, 1
      %p628 = por %p626, %p627
      %p630 = scmp.ne.s32.totalorder %s613, %s629
      %p631 = scmp.eq.s32.totalorder %s55, 0
      %p632 = por %p630, %p631
      %s633 = ssub.s32 %s49, %s56
      %p634 = scmp.eq.s32.totalorder %s633, 0
      %s636 = sadd.s32 %s635, 1
      %s637 = scalar_select %p634, %s635, %s636
      %p640 = pneg %p634
      %p641 = scmp.eq.s32.totalorder %s49, 1
      %p642 = por %p640, %p641
      %p643 = scmp.ne.s32.totalorder %s635, %s638
      %p644 = scmp.eq.s32.totalorder %s49, 0
      %p645 = por %p643, %p644
      %p646 = scmp.ne.s32.totalorder %s635, %s638
      %p647 = scmp.eq.s32.totalorder %s54, 1
      %p648 = por %p646, %p647
      %p649 = scmp.ne.s32.totalorder %s638, %s639
      %p650 = scmp.eq.s32.totalorder %s54, 0
      %p651 = por %p649, %p650
      %p652 = scmp.ne.s32.totalorder %s638, %s639
      %p653 = scmp.eq.s32.totalorder %s55, 1
      %p654 = por %p652, %p653
      %p656 = scmp.ne.s32.totalorder %s639, %s655
      %p657 = scmp.eq.s32.totalorder %s55, 0
      %p658 = por %p656, %p657
      %p659 = scmp.le.s32.totalorder 1, %s49
      %p660 = scmp.lt.s32.totalorder %s49, 3
      %p661 = pnand %p659, %p660
      %p662 = pneg %p661
      // Predicated region
      $region9: #{tpu_custom_call.1} parent=5 // pred_check
        _
      $region10: #{tpu_custom_call.1} parent=5 // pred_check_branch
        %664 = sbr.rel (%p661) target = $region12
      $region11: #{tpu_custom_call.1} parent=5 // pred_region
        %s665 = ssub.s32 %s49, 1
        // Predicated region
        $region13: #{tpu_custom_call.1} parent=11 // pred_check
          %p666 = pneg %p174
        $region14: #{tpu_custom_call.1} parent=11 // pred_check_branch
          %668 = sbr.rel (%p666) target = $region16
        $region15: #{tpu_custom_call.1} parent=11 // pred_region
          %s670 = ssub.s32 16, 16
          %671 = vsyncadd [#allocation6], %s670
          %s673 = sshll.u32 [#allocation5], 4
          %s674 = int_to_ptr.vmem [resolvable:$true] %s673
          %676 = dma.hbm_to_vmem [thread:$0]  %s4, 16, %s674, [#allocation6]
        $region16: #{tpu_custom_call.1} parent=11 // pred_fallthru
          _
        // Predicated region
        $region17: #{tpu_custom_call.1} parent=11 // pred_check
          %p677 = pneg %p195
        $region18: #{tpu_custom_call.1} parent=11 // pred_check_branch
          %679 = sbr.rel (%p677) target = $region20
        $region19: #{tpu_custom_call.1} parent=11 // pred_region
          %s681 = ssub.s32 16, 16
          %682 = vsyncadd [#allocation6], %s681
          %s684 = sshll.u32 [#allocation7], 4
          %s685 = int_to_ptr.vmem [resolvable:$true] %s684
          %687 = dma.hbm_to_vmem [thread:$0]  %s5, 16, %s685, [#allocation6]
        $region20: #{tpu_custom_call.1} parent=11 // pred_fallthru
          _
        // Predicated region
        $region21: #{tpu_custom_call.1} parent=11 // pred_check
          %p688 = pneg %p216
        $region22: #{tpu_custom_call.1} parent=11 // pred_check_branch
          %690 = sbr.rel (%p688) target = $region24
        $region23: #{tpu_custom_call.1} parent=11 // pred_region
          _
        $region24: #{tpu_custom_call.1} parent=11 // pred_fallthru
          _
        // Predicated region
        $region25: #{tpu_custom_call.1} parent=11 // pred_check
          %p691 = pneg %p237
        $region26: #{tpu_custom_call.1} parent=11 // pred_check_branch
          %693 = sbr.rel (%p691) target = $region28
        $region27: #{tpu_custom_call.1} parent=11 // pred_region
          %s695 = ssub.s32 16, 16
          %696 = vsyncadd [#allocation9], %s695
          %s698 = sshll.u32 [#allocation8], 4
          %s699 = int_to_ptr.vmem [resolvable:$true] %s698
          %701 = dma.hbm_to_vmem [thread:$0]  %s7, 16, %s699, [#allocation9]
        $region28: #{tpu_custom_call.1} parent=11 // pred_fallthru
          _
        // Predicated region
        $region29: #{tpu_custom_call.1} parent=11 // pred_check
          %p702 = pneg %p258
        $region30: #{tpu_custom_call.1} parent=11 // pred_check_branch
          %704 = sbr.rel (%p702) target = $region32
        $region31: #{tpu_custom_call.1} parent=11 // pred_region
          %s706 = ssub.s32 256, 256
          %707 = vsyncadd [#allocation9], %s706
          %s708 = sshll.u32 [#allocation10], 4
          %s709 = int_to_ptr.vmem [resolvable:$true] %s708
          %714 = dma.hbm_to_vmem [thread:$0]  %s8, 256, %s709, [#allocation9], 64, 64, 4
        $region32: #{tpu_custom_call.1} parent=11 // pred_fallthru
          _
        // Predicated region
        $region33: #{tpu_custom_call.1} parent=11 // pred_check
          %p715 = pneg %p279
        $region34: #{tpu_custom_call.1} parent=11 // pred_check_branch
          %717 = sbr.rel (%p715) target = $region36
        $region35: #{tpu_custom_call.1} parent=11 // pred_region
          %s719 = ssub.s32 16, 16
          %720 = vsyncadd [#allocation12], %s719
          %s722 = sshll.u32 [#allocation11], 4
          %s723 = int_to_ptr.vmem [resolvable:$true] %s722
          %725 = dma.hbm_to_vmem [thread:$0]  %s9, 16, %s723, [#allocation12]
        $region36: #{tpu_custom_call.1} parent=11 // pred_fallthru
          _
        // Predicated region
        $region37: #{tpu_custom_call.1} parent=11 // pred_check
          %p726 = pneg %p300
        $region38: #{tpu_custom_call.1} parent=11 // pred_check_branch
          %728 = sbr.rel (%p726) target = $region40
        $region39: #{tpu_custom_call.1} parent=11 // pred_region
          %s730 = ssub.s32 16, 16
          %731 = vsyncadd [#allocation12], %s730
          %s733 = sshll.u32 [#allocation13], 4
          %s734 = int_to_ptr.vmem [resolvable:$true] %s733
          %736 = dma.hbm_to_vmem [thread:$0]  %s10, 16, %s734, [#allocation12]
        $region40: #{tpu_custom_call.1} parent=11 // pred_fallthru
          _
        // Predicated region
        $region41: #{tpu_custom_call.1} parent=11 // pred_check
          %p737 = pneg %p321
        $region42: #{tpu_custom_call.1} parent=11 // pred_check_branch
          %739 = sbr.rel (%p737) target = $region44
        $region43: #{tpu_custom_call.1} parent=11 // pred_region
          %s741 = ssub.s32 16, 16
          %742 = vsyncadd [#allocation15], %s741
          %s744 = sshll.u32 [#allocation14], 4
          %s745 = int_to_ptr.vmem [resolvable:$true] %s744
          %747 = dma.hbm_to_vmem [thread:$0]  %s11, 16, %s745, [#allocation15]
        $region44: #{tpu_custom_call.1} parent=11 // pred_fallthru
          _
        // Predicated region
        $region45: #{tpu_custom_call.1} parent=11 // pred_check
          %p748 = pneg %p342
        $region46: #{tpu_custom_call.1} parent=11 // pred_check_branch
          %750 = sbr.rel (%p748) target = $region48
        $region47: #{tpu_custom_call.1} parent=11 // pred_region
          _
        $region48: #{tpu_custom_call.1} parent=11 // pred_fallthru
          _
        // Predicated region
        $region49: #{tpu_custom_call.1} parent=11 // pred_check
          %p751 = pneg %p363
        $region50: #{tpu_custom_call.1} parent=11 // pred_check_branch
          %753 = sbr.rel (%p751) target = $region52
        $region51: #{tpu_custom_call.1} parent=11 // pred_region
          %s755 = ssub.s32 16, 16
          %756 = vsyncadd [#allocation15], %s755
          %s758 = sshll.u32 [#allocation16], 4
          %s759 = int_to_ptr.vmem [resolvable:$true] %s758
          %761 = dma.hbm_to_vmem [thread:$0]  %s13, 16, %s759, [#allocation15]
        $region52: #{tpu_custom_call.1} parent=11 // pred_fallthru
          _
        // Predicated region
        $region53: #{tpu_custom_call.1} parent=11 // pred_check
          %p762 = pneg %p384
        $region54: #{tpu_custom_call.1} parent=11 // pred_check_branch
          %764 = sbr.rel (%p762) target = $region56
        $region55: #{tpu_custom_call.1} parent=11 // pred_region
          %s766 = ssub.s32 256, 256
          %767 = vsyncadd [#allocation18], %s766
          %s768 = sshll.u32 [#allocation17], 4
          %s769 = int_to_ptr.vmem [resolvable:$true] %s768
          %774 = dma.hbm_to_vmem [thread:$0]  %s14, 256, %s769, [#allocation18], 64, 64, 4
        $region56: #{tpu_custom_call.1} parent=11 // pred_fallthru
          _
        // Predicated region
        $region57: #{tpu_custom_call.1} parent=11 // pred_check
          %p775 = pneg %p405
        $region58: #{tpu_custom_call.1} parent=11 // pred_check_branch
          %777 = sbr.rel (%p775) target = $region60
        $region59: #{tpu_custom_call.1} parent=11 // pred_region
          %s779 = ssub.s32 16, 16
          %780 = vsyncadd [#allocation18], %s779
          %s782 = sshll.u32 [#allocation19], 4
          %s783 = int_to_ptr.vmem [resolvable:$true] %s782
          %785 = dma.hbm_to_vmem [thread:$0]  %s15, 16, %s783, [#allocation18]
        $region60: #{tpu_custom_call.1} parent=11 // pred_fallthru
          _
        // Predicated region
        $region61: #{tpu_custom_call.1} parent=11 // pred_check
          %p786 = pneg %p426
        $region62: #{tpu_custom_call.1} parent=11 // pred_check_branch
          %788 = sbr.rel (%p786) target = $region64
        $region63: #{tpu_custom_call.1} parent=11 // pred_region
          %s790 = ssub.s32 256, 256
          %791 = vsyncadd [#allocation21], %s790
          %s792 = sshll.u32 [#allocation20], 4
          %s793 = int_to_ptr.vmem [resolvable:$true] %s792
          %798 = dma.hbm_to_vmem [thread:$0]  %s16, 256, %s793, [#allocation21], 64, 64, 4
        $region64: #{tpu_custom_call.1} parent=11 // pred_fallthru
          _
        // Predicated region
        $region65: #{tpu_custom_call.1} parent=11 // pred_check
          %p799 = pneg %p447
        $region66: #{tpu_custom_call.1} parent=11 // pred_check_branch
          %801 = sbr.rel (%p799) target = $region68
        $region67: #{tpu_custom_call.1} parent=11 // pred_region
          %s803 = ssub.s32 16, 16
          %804 = vsyncadd [#allocation21], %s803
          %s806 = sshll.u32 [#allocation22], 4
          %s807 = int_to_ptr.vmem [resolvable:$true] %s806
          %809 = dma.hbm_to_vmem [thread:$0]  %s17, 16, %s807, [#allocation21]
        $region68: #{tpu_custom_call.1} parent=11 // pred_fallthru
          _
        // Predicated region
        $region69: #{tpu_custom_call.1} parent=11 // pred_check
          %p810 = pneg %p468
        $region70: #{tpu_custom_call.1} parent=11 // pred_check_branch
          %812 = sbr.rel (%p810) target = $region72
        $region71: #{tpu_custom_call.1} parent=11 // pred_region
          %s814 = ssub.s32 16, 16
          %815 = vsyncadd [#allocation24], %s814
          %s817 = sshll.u32 [#allocation23], 4
          %s818 = int_to_ptr.vmem [resolvable:$true] %s817
          %820 = dma.hbm_to_vmem [thread:$0]  %s18, 16, %s818, [#allocation24]
        $region72: #{tpu_custom_call.1} parent=11 // pred_fallthru
          _
        // Predicated region
        $region73: #{tpu_custom_call.1} parent=11 // pred_check
          %p821 = pneg %p489
        $region74: #{tpu_custom_call.1} parent=11 // pred_check_branch
          %823 = sbr.rel (%p821) target = $region76
        $region75: #{tpu_custom_call.1} parent=11 // pred_region
          _
        $region76: #{tpu_custom_call.1} parent=11 // pred_fallthru
          _
        // Predicated region
        $region77: #{tpu_custom_call.1} parent=11 // pred_check
          %p824 = pneg %p510
        $region78: #{tpu_custom_call.1} parent=11 // pred_check_branch
          %826 = sbr.rel (%p824) target = $region80
        $region79: #{tpu_custom_call.1} parent=11 // pred_region
          %s828 = ssub.s32 256, 256
          %829 = vsyncadd [#allocation24], %s828
          %s830 = sshll.u32 [#allocation25], 4
          %s831 = int_to_ptr.vmem [resolvable:$true] %s830
          %836 = dma.hbm_to_vmem [thread:$0]  %s20, 256, %s831, [#allocation24], 64, 64, 4
        $region80: #{tpu_custom_call.1} parent=11 // pred_fallthru
          _
        // Predicated region
        $region81: #{tpu_custom_call.1} parent=11 // pred_check
          %p837 = pneg %p531
        $region82: #{tpu_custom_call.1} parent=11 // pred_check_branch
          %839 = sbr.rel (%p837) target = $region84
        $region83: #{tpu_custom_call.1} parent=11 // pred_region
          _
        $region84: #{tpu_custom_call.1} parent=11 // pred_fallthru
          _
        // Predicated region
        $region85: #{tpu_custom_call.1} parent=11 // pred_check
          %p840 = pneg %p552
        $region86: #{tpu_custom_call.1} parent=11 // pred_check_branch
          %842 = sbr.rel (%p840) target = $region88
        $region87: #{tpu_custom_call.1} parent=11 // pred_region
          _
        $region88: #{tpu_custom_call.1} parent=11 // pred_fallthru
          _
        // Predicated region
        $region89: #{tpu_custom_call.1} parent=11 // pred_check
          %p843 = pneg %p573
        $region90: #{tpu_custom_call.1} parent=11 // pred_check_branch
          %845 = sbr.rel (%p843) target = $region92
        $region91: #{tpu_custom_call.1} parent=11 // pred_region
          _
        $region92: #{tpu_custom_call.1} parent=11 // pred_fallthru
          _
      $region12: #{tpu_custom_call.1} parent=5 // pred_fallthru
        _
      %p846 = scmp.lt.s32.totalorder %s49, 2
      // Predicated region
      $region93: #{tpu_custom_call.1} parent=5 // pred_check
        %p847 = pneg %p846
      $region94: #{tpu_custom_call.1} parent=5 // pred_check_branch
        %849 = sbr.rel (%p847) target = $region96
      $region95: #{tpu_custom_call.1} parent=5 // pred_region
        // Predicated region
        $region97: #{tpu_custom_call.1} parent=95 // pred_check
          %p850 = pneg %p69
        $region98: #{tpu_custom_call.1} parent=95 // pred_check_branch
          %852 = sbr.rel (%p850) target = $region100
        $region99: #{tpu_custom_call.1} parent=95 // pred_region
          %p853 = scmp.lt.s32.totalorder %s49, 1
          %s854 = scalar_select %p853, %s49, 1
          %s855 = smul.addr %s854, 8
          %s856 = scalar_lea.vmem %s0, %s855
        $region100: #{tpu_custom_call.1} parent=95 // pred_fallthru
          _
        // Predicated region
        $region101: #{tpu_custom_call.1} parent=95 // pred_check
          %p857 = pneg %p95
        $region102: #{tpu_custom_call.1} parent=95 // pred_check_branch
          %859 = sbr.rel (%p857) target = $region104
        $region103: #{tpu_custom_call.1} parent=95 // pred_region
          %p860 = scmp.lt.s32.totalorder %s49, 1
          %s861 = scalar_select %p860, %s49, 1
          %s862 = smul.addr %s861, 2
          %s863 = smul.addr %s862, 8
          %s864 = scalar_lea.vmem %s1, %s863
        $region104: #{tpu_custom_call.1} parent=95 // pred_fallthru
          _
        // Predicated region
        $region105: #{tpu_custom_call.1} parent=95 // pred_check
          %p865 = pneg %p121
        $region106: #{tpu_custom_call.1} parent=95 // pred_check_branch
          %867 = sbr.rel (%p865) target = $region108
        $region107: #{tpu_custom_call.1} parent=95 // pred_region
          %p868 = scmp.lt.s32.totalorder %s49, 1
          %s869 = scalar_select %p868, %s49, 1
          %s870 = smul.addr %s869, 8
          %s871 = scalar_lea.vmem %s2, %s870
        $region108: #{tpu_custom_call.1} parent=95 // pred_fallthru
          _
        // Predicated region
        $region109: #{tpu_custom_call.1} parent=95 // pred_check
          %p872 = pneg %p147
        $region110: #{tpu_custom_call.1} parent=95 // pred_check_branch
          %874 = sbr.rel (%p872) target = $region112
        $region111: #{tpu_custom_call.1} parent=95 // pred_region
          %s875 = sand.u32 %s137, 1
          %s876 = scalar_lea.sflag [#allocation3], %s875
          %s877 = sand.u32 %s137, 1
          %s878 = scalar_lea.vmem [#allocation2], %s877
          %s880 = ssub.s32 16, 16
          %881 = vsyncadd %s876, %s880
          %s882 = smul.addr %s49, 16
          %s883 = scalar_lea.hbm %s3, %s882
          %s885 = sshll.u32 %s878, 4
          %s886 = int_to_ptr.vmem [resolvable:$true] %s885
          %888 = dma.hbm_to_vmem [thread:$0]  %s883, 16, %s886, %s876
        $region112: #{tpu_custom_call.1} parent=95 // pred_fallthru
          _
      $region96: #{tpu_custom_call.1} parent=5 // pred_fallthru
        _
      %p889 = scmp.le.s32.totalorder 1, %s49
      %p890 = scmp.lt.s32.totalorder %s49, 3
      %p891 = pnand %p889, %p890
      %p892 = pneg %p891
      // Predicated region
      $region113: #{tpu_custom_call.1} parent=5 // pred_check
        _
      $region114: #{tpu_custom_call.1} parent=5 // pred_check_branch
        %894 = sbr.rel (%p891) target = $region116
      $region115: #{tpu_custom_call.1} parent=5 // pred_region
        %s895 = ssub.s32 %s49, 1
        %s896 = sand.u32 %s140, 1
        %s897 = scalar_lea.sflag [#allocation3], %s896
        %s898 = sand.u32 %s140, 1
        %s899 = scalar_lea.vmem [#allocation2], %s898
        // Predicated region
        $region117: #{tpu_custom_call.1} parent=115 // pred_check
          %p900 = pneg %p153
        $region118: #{tpu_custom_call.1} parent=115 // pred_check_branch
          %902 = sbr.rel (%p900) target = $region120
        $region119: #{tpu_custom_call.1} parent=115 // pred_region
          %903 = dma.done %s897, 16
        $region120: #{tpu_custom_call.1} parent=115 // pred_fallthru
          _
        // Predicated region
        $region121: #{tpu_custom_call.1} parent=115 // pred_check
          %p904 = pneg %p174
        $region122: #{tpu_custom_call.1} parent=115 // pred_check_branch
          %906 = sbr.rel (%p904) target = $region124
        $region123: #{tpu_custom_call.1} parent=115 // pred_region
          %907 = dma.done [#allocation6], 16
        $region124: #{tpu_custom_call.1} parent=115 // pred_fallthru
          _
        // Predicated region
        $region125: #{tpu_custom_call.1} parent=115 // pred_check
          %p908 = pneg %p195
        $region126: #{tpu_custom_call.1} parent=115 // pred_check_branch
          %910 = sbr.rel (%p908) target = $region128
        $region127: #{tpu_custom_call.1} parent=115 // pred_region
          %911 = dma.done [#allocation6], 16
        $region128: #{tpu_custom_call.1} parent=115 // pred_fallthru
          _
        // Predicated region
        $region129: #{tpu_custom_call.1} parent=115 // pred_check
          %p912 = pneg %p237
        $region130: #{tpu_custom_call.1} parent=115 // pred_check_branch
          %914 = sbr.rel (%p912) target = $region132
        $region131: #{tpu_custom_call.1} parent=115 // pred_region
          %915 = dma.done [#allocation9], 16
        $region132: #{tpu_custom_call.1} parent=115 // pred_fallthru
          _
        // Predicated region
        $region133: #{tpu_custom_call.1} parent=115 // pred_check
          %p916 = pneg %p258
        $region134: #{tpu_custom_call.1} parent=115 // pred_check_branch
          %918 = sbr.rel (%p916) target = $region136
        $region135: #{tpu_custom_call.1} parent=115 // pred_region
          %919 = dma.done [#allocation9], 256
        $region136: #{tpu_custom_call.1} parent=115 // pred_fallthru
          _
        // Predicated region
        $region137: #{tpu_custom_call.1} parent=115 // pred_check
          %p920 = pneg %p279
        $region138: #{tpu_custom_call.1} parent=115 // pred_check_branch
          %922 = sbr.rel (%p920) target = $region140
        $region139: #{tpu_custom_call.1} parent=115 // pred_region
          %923 = dma.done [#allocation12], 16
        $region140: #{tpu_custom_call.1} parent=115 // pred_fallthru
          _
        // Predicated region
        $region141: #{tpu_custom_call.1} parent=115 // pred_check
          %p924 = pneg %p300
        $region142: #{tpu_custom_call.1} parent=115 // pred_check_branch
          %926 = sbr.rel (%p924) target = $region144
        $region143: #{tpu_custom_call.1} parent=115 // pred_region
          %927 = dma.done [#allocation12], 16
        $region144: #{tpu_custom_call.1} parent=115 // pred_fallthru
          _
        // Predicated region
        $region145: #{tpu_custom_call.1} parent=115 // pred_check
          %p928 = pneg %p321
        $region146: #{tpu_custom_call.1} parent=115 // pred_check_branch
          %930 = sbr.rel (%p928) target = $region148
        $region147: #{tpu_custom_call.1} parent=115 // pred_region
          %931 = dma.done [#allocation15], 16
        $region148: #{tpu_custom_call.1} parent=115 // pred_fallthru
          _
        // Predicated region
        $region149: #{tpu_custom_call.1} parent=115 // pred_check
          %p932 = pneg %p363
        $region150: #{tpu_custom_call.1} parent=115 // pred_check_branch
          %934 = sbr.rel (%p932) target = $region152
        $region151: #{tpu_custom_call.1} parent=115 // pred_region
          %935 = dma.done [#allocation15], 16
        $region152: #{tpu_custom_call.1} parent=115 // pred_fallthru
          _
        // Predicated region
        $region153: #{tpu_custom_call.1} parent=115 // pred_check
          %p936 = pneg %p384
        $region154: #{tpu_custom_call.1} parent=115 // pred_check_branch
          %938 = sbr.rel (%p936) target = $region156
        $region155: #{tpu_custom_call.1} parent=115 // pred_region
          %939 = dma.done [#allocation18], 256
        $region156: #{tpu_custom_call.1} parent=115 // pred_fallthru
          _
        // Predicated region
        $region157: #{tpu_custom_call.1} parent=115 // pred_check
          %p940 = pneg %p405
        $region158: #{tpu_custom_call.1} parent=115 // pred_check_branch
          %942 = sbr.rel (%p940) target = $region160
        $region159: #{tpu_custom_call.1} parent=115 // pred_region
          %943 = dma.done [#allocation18], 16
        $region160: #{tpu_custom_call.1} parent=115 // pred_fallthru
          _
        // Predicated region
        $region161: #{tpu_custom_call.1} parent=115 // pred_check
          %p944 = pneg %p426
        $region162: #{tpu_custom_call.1} parent=115 // pred_check_branch
          %946 = sbr.rel (%p944) target = $region164
        $region163: #{tpu_custom_call.1} parent=115 // pred_region
          %947 = dma.done [#allocation21], 256
        $region164: #{tpu_custom_call.1} parent=115 // pred_fallthru
          _
        // Predicated region
        $region165: #{tpu_custom_call.1} parent=115 // pred_check
          %p948 = pneg %p447
        $region166: #{tpu_custom_call.1} parent=115 // pred_check_branch
          %950 = sbr.rel (%p948) target = $region168
        $region167: #{tpu_custom_call.1} parent=115 // pred_region
          %951 = dma.done [#allocation21], 16
        $region168: #{tpu_custom_call.1} parent=115 // pred_fallthru
          _
        // Predicated region
        $region169: #{tpu_custom_call.1} parent=115 // pred_check
          %p952 = pneg %p468
        $region170: #{tpu_custom_call.1} parent=115 // pred_check_branch
          %954 = sbr.rel (%p952) target = $region172
        $region171: #{tpu_custom_call.1} parent=115 // pred_region
          %955 = dma.done [#allocation24], 16
        $region172: #{tpu_custom_call.1} parent=115 // pred_fallthru
          _
        // Predicated region
        $region173: #{tpu_custom_call.1} parent=115 // pred_check
          %p956 = pneg %p510
        $region174: #{tpu_custom_call.1} parent=115 // pred_check_branch
          %958 = sbr.rel (%p956) target = $region176
        $region175: #{tpu_custom_call.1} parent=115 // pred_region
          %959 = dma.done [#allocation24], 256
        $region176: #{tpu_custom_call.1} parent=115 // pred_fallthru
          _
        %p960 = scmp.lt.s32.totalorder %s54, 1
        %s961 = scalar_select %p960, %s54, 1
        %s962 = smul.addr %s961, 8
        %s963 = scalar_lea.vmem %s0, %s962
        %p964 = pneg %p75
        %p965 = pneg %p72
        %p966 = scmp.lt.s32.totalorder %s54, 1
        %s967 = scalar_select %p966, %s54, 1
        %s968 = smul.addr %s967, 2
        %s969 = smul.addr %s968, 8
        %s970 = scalar_lea.vmem %s1, %s969
        %p971 = pneg %p101
        %p972 = pneg %p98
        %p973 = scmp.lt.s32.totalorder %s54, 1
        %s974 = scalar_select %p973, %s54, 1
        %s975 = smul.addr %s974, 8
        %s976 = scalar_lea.vmem %s2, %s975
        %p977 = pneg %p127
        %p978 = pneg %p124
        %s979 = sand.u32 %s140, 1
        %s980 = scalar_lea.sflag [#allocation3], %s979
        %s981 = sand.u32 %s140, 1
        %s982 = scalar_lea.vmem [#allocation2], %s981
        %p983 = pneg %p153
        %p984 = pneg %p150
        %p985 = pneg %p174
        %p986 = pneg %p171
        %p987 = pneg %p195
        %p988 = pneg %p192
        %p989 = pneg %p216
        %p990 = pneg %p213
        %p991 = pneg %p237
        %p992 = pneg %p234
        %p993 = pneg %p258
        %p994 = pneg %p255
        %p995 = pneg %p279
        %p996 = pneg %p276
        %p997 = pneg %p300
        %p998 = pneg %p297
        %p999 = pneg %p321
        %p1000 = pneg %p318
        %p1001 = pneg %p342
        %p1002 = pneg %p339
        %p1003 = pneg %p363
        %p1004 = pneg %p360
        %p1005 = pneg %p384
        %p1006 = pneg %p381
        %p1007 = pneg %p405
        %p1008 = pneg %p402
        %p1009 = pneg %p426
        %p1010 = pneg %p423
        %p1011 = pneg %p447
        %p1012 = pneg %p444
        %p1013 = pneg %p468
        %p1014 = pneg %p465
        %p1015 = pneg %p489
        %p1016 = pneg %p486
        %p1017 = pneg %p510
        %p1018 = pneg %p507
        %p1019 = pneg %p531
        %p1020 = pneg %p528
        %p1021 = pneg %p552
        %p1022 = pneg %p549
        %p1023 = pneg %p573
        %p1024 = pneg %p570
        %p1025 = pneg %p599
        %p1026 = pneg %p596
        %s1027 = sand.u32 %s586, 1
        %s1028 = scalar_lea.sflag [#allocation4], %s1027
        %s1029 = sand.u32 %s586, 1
        %s1030 = smul.addr %s1029, 8
        %s1031 = scalar_lea.vmem [#allocation26], %s1030
        %p1032 = pneg %p625
        %p1033 = pneg %p622
        %s1034 = sand.u32 %s54, 1
        %s1035 = scalar_lea.sflag [#allocation28], %s1034
        %s1036 = sand.u32 %s612, 1
        %s1037 = smul.addr %s1036, 32
        %s1038 = scalar_lea.vmem [#allocation27], %s1037
        %p1039 = pneg %p651
        %p1040 = pneg %p648
        %s1041 = sand.u32 %s54, 1
        %s1042 = scalar_lea.sflag [#allocation28], %s1041
        %s1043 = sand.u32 %s638, 1
        %s1044 = smul.addr %s1043, 32
        %s1045 = scalar_lea.vmem [#allocation29], %s1044
        %p1046 = scmp.lt.s32.totalorder %s54, 1
        %s1047 = scalar_select %p1046, %s54, 1
        %s1048 = smul.addr %s1047, 8
        %s1049 = scalar_lea.vmem %s0, %s1048
        %p1050 = scmp.lt.s32.totalorder %s54, 1
        %s1051 = scalar_select %p1050, %s54, 1
        %s1052 = smul.addr %s1051, 2
        %s1053 = smul.addr %s1052, 8
        %s1054 = scalar_lea.vmem %s1, %s1053
        %p1055 = scmp.lt.s32.totalorder %s54, 1
        %s1056 = scalar_select %p1055, %s54, 1
        %s1057 = smul.addr %s1056, 8
        %s1058 = scalar_lea.vmem %s2, %s1057
        %v1060 = vld [vmem:[%s1049] sm:$0xff]
        %v1061 = vld [vmem:[#allocation5] sm:$0x1]
        %v1062 = vld [vmem:[#allocation7] sm:$0x1]
        %vm1063 = vcmask 261120
        %v1064 = vsel %vm1063, %v1060, 0.0
        %1065 = vadd.xlane.f32.xlu0 %v1064
        %v1066 = vpop.xlane.xlu0 %1065
        %v1067 = vrcp.pop 32.0
        %v1068 = vmul.f32 %v1066, %v1067
        %v1069 = vsub.f32 %v1060, %v1068
        %v1070 = vmul.f32 %v1069, %v1069
        %v1071 = vsel %vm1063, %v1070, 0.0
        %1072 = vadd.xlane.f32.xlu0 %v1071
        %v1073 = vpop.xlane.xlu0 %1072
        %v1074 = vmul.f32 %v1073, %v1067
        %v1075 = vadd.f32 %v1074, 1e-06
        %v1076 = vrsqrt.pop %v1075
        %v1077 = vmul.f32 %v1069, %v1076
        %v1079 = vlaneseq
        %v1080 = vshrl.u32 %v1079, 7
        %v1081 = vsub.s32 0, %v1080
        %v1082 = vrot.slane %v1061, %v1081
        %v1084 = vmul.f32 %v1077, %v1082
        %v1086 = vlaneseq
        %v1087 = vshrl.u32 %v1086, 7
        %v1088 = vsub.s32 0, %v1087
        %v1089 = vrot.slane %v1062, %v1088
        %v1091 = vadd.f32 %v1084, %v1089
        %v1092 = vpack.c.bf16 %v1091, %v1091
        %v1093 = vld [vmem:[%s6] sm:$0xf]
        %v1094 = vld [vmem:[%s6 + $0x4] sm:$0xf]
        %v1095 = vld [vmem:[%s6 + $0x8] sm:$0xf]
        %v1096 = vld [vmem:[%s6 + $0xc] sm:$0xf]
        %v1097 = vld [vmem:[#allocation8] sm:$0x1]
        %v1099 = vlaneseq
        %v1100 = vshrl.u32 %v1099, 7
        %v1101 = vsub.s32 0, %v1100
        %v1102 = vrot.slane %v1097, %v1101
        %v1108 = vunpack.c.l.b16 %v1093
        %v1109 = vunpack.c.l.b16 %v1094
        %v1110 = vunpack.c.l.b16 %v1095
        %v1111 = vunpack.c.l.b16 %v1096
        %v1112 = vpack.c.b16 %v1109, %v1108
        %v1113 = vpack.c.b16 %v1111, %v1110
        %v1117 = vsel %vm1063, %v1092, 0
        %1119 = vmatprep.subr.bf16.mxu0 0
        %1120 = vmatpush1.bf16.msra.mxu0 0
        %1121 = vmatprep.subr.bf16.mxu0 0
        %1122 = vmatpush1.bf16.msra.mxu0 0
        %1123 = vmatprep.subr.bf16.mxu0 0
        %1124 = vmatpush1.bf16.msra.mxu0 0
        %1125 = vmatprep.subr.bf16.mxu0 0
        %1126 = vmatpush1.bf16.msra.mxu0 0
        %1127 = vmatprep.subr.bf16.mxu0 0
        %1128 = vmatpush1.bf16.msra.mxu0 0
        %1129 = vmatprep.subr.bf16.mxu0 0
        %1130 = vmatpush1.bf16.msra.mxu0 0
        %1131 = vmatprep.subr.bf16.mxu0 0
        %1132 = vmatpush1.bf16.msra.mxu0 %v1113
        %1133 = vmatprep.subr.bf16.mxu0 0
        %1134 = vmatpush1.bf16.msra.mxu0 %v1112
        %1135 = vmatprep.subr.bf16.mxu0 0
        %1136 = vmatpush2.bf16.msra.mxu0 0
        %1137 = vmatprep.subr.bf16.mxu0 0
        %1138 = vmatpush2.bf16.msra.mxu0 0
        %1139 = vmatprep.subr.bf16.mxu0 0
        %1140 = vmatpush2.bf16.msra.mxu0 0
        %1141 = vmatprep.subr.bf16.mxu0 0
        %1142 = vmatpush2.bf16.msra.mxu0 0
        %1143 = vmatprep.subr.bf16.mxu0 0
        %1144 = vmatpush2.bf16.msra.mxu0 0
        %1145 = vmatprep.subr.bf16.mxu0 0
        %1146 = vmatpush2.bf16.msra.mxu0 0
        %1147 = vmatprep.subr.bf16.mxu0 0
        %1148 = vmatpush2.bf16.msra.mxu0 0
        %1149 = vmatprep.subr.bf16.mxu0 0
        %1150 = vmatpush2.bf16.msra.mxu0 0
        %1151 = vmatprep.mubr.bf16.mxu0 0
        %1152 = vmatmul.mubr.bf16.gmra.mxu0 %v1117
        %v1153 = vpop.f32.mrf.mxu0
        %v1154 = vadd.f32 %v1102, %v1153
        %v1155 = vpop.f32.mrf.mxu0
        %v1156 = vpop.f32.mrf.mxu0
        %v1157 = vpop.f32.mrf.mxu0
        %1158 = vdwg.mxu0
        %v1159 = vld [vmem:[%s1058] sm:$0xff]
        %1161 = vrot.lane.b32.xlu0 %v1154, 120
        %v1162 = vpop.permute.xlu0 %1161
        %1164 = vrot.lane.b32.xlu0 %v1154, 112
        %v1165 = vpop.permute.xlu0 %1164
        %1167 = vrot.lane.b32.xlu0 %v1154, 104
        %v1168 = vpop.permute.xlu0 %1167
        %v1170 = vcombine.low %v1154, %v1165
        %v1171 = vcombine.high %v1154, %v1165
        %v1173 = vunpack.c.l.s4 1983009808
        %v1174 = vunpack.c.0.s8 %v1173
        %v1175 = vlaneseq
        %v1176 = vshrl.u32 %v1175, 7
        %v1177 = vsub.s32 %v1174, %v1176
        %v1178 = vrot.slane %v1170, %v1177
        %v1180 = vunpack.c.l.s4 1983009808
        %v1181 = vunpack.c.0.s8 %v1180
        %v1182 = vlaneseq
        %v1183 = vshrl.u32 %v1182, 7
        %v1184 = vsub.s32 %v1181, %v1183
        %v1185 = vrot.slane %v1171, %v1184
        %v1186 = vcombine.low %v1162, %v1168
        %v1187 = vcombine.high %v1162, %v1168
        %v1189 = vunpack.c.l.s4 1983009808
        %v1190 = vunpack.c.0.s8 %v1189
        %v1191 = vlaneseq
        %v1192 = vshrl.u32 %v1191, 7
        %v1193 = vsub.s32 %v1190, %v1192
        %v1194 = vrot.slane %v1186, %v1193
        %v1196 = vunpack.c.l.s4 1983009808
        %v1197 = vunpack.c.0.s8 %v1196
        %v1198 = vlaneseq
        %v1199 = vshrl.u32 %v1198, 7
        %v1200 = vsub.s32 %v1197, %v1199
        %v1201 = vrot.slane %v1187, %v1200
        %v1202 = vcombine.low %v1178, %v1194
        %v1203 = vcombine.high %v1178, %v1194
        %v1205 = vunpack.c.l.s4 1934713408
        %v1206 = vunpack.c.0.s8 %v1205
        %v1207 = vlaneseq
        %v1208 = vshrl.u32 %v1207, 7
        %v1209 = vsub.s32 %v1206, %v1208
        %v1210 = vrot.slane %v1202, %v1209
        %v1212 = vunpack.c.l.s4 1934713408
        %v1213 = vunpack.c.0.s8 %v1212
        %v1214 = vlaneseq
        %v1215 = vshrl.u32 %v1214, 7
        %v1216 = vsub.s32 %v1213, %v1215
        %v1217 = vrot.slane %v1203, %v1216
        %v1218 = vcombine.low %v1185, %v1201
        %v1219 = vcombine.high %v1185, %v1201
        %v1221 = vunpack.c.l.s4 1934713408
        %v1222 = vunpack.c.0.s8 %v1221
        %v1223 = vlaneseq
        %v1224 = vshrl.u32 %v1223, 7
        %v1225 = vsub.s32 %v1222, %v1224
        %v1226 = vrot.slane %v1218, %v1225
        %v1228 = vunpack.c.l.s4 1934713408
        %v1229 = vunpack.c.0.s8 %v1228
        %v1230 = vlaneseq
        %v1231 = vshrl.u32 %v1230, 7
        %v1232 = vsub.s32 %v1229, %v1231
        %v1233 = vrot.slane %v1219, %v1232
        %v1234 = vcombine.high %v1210, 0.0
        %v1235 = vcombine.high %v1217, 0.0
        %v1236 = vcombine.high %v1226, 0.0
        %v1237 = vcombine.high %v1233, 0.0
        %v1238 = vpack.c.bf16 %v1210, %v1210
        %v1239 = vpack.c.bf16 %v1234, %v1234
        %v1240 = vpack.c.bf16 %v1217, %v1217
        %v1241 = vpack.c.bf16 %v1235, %v1235
        %v1242 = vpack.c.bf16 %v1226, %v1226
        %v1243 = vpack.c.bf16 %v1236, %v1236
        %v1244 = vpack.c.bf16 %v1233, %v1233
        %v1245 = vpack.c.bf16 %v1237, %v1237
        %1246 = vrot.lane.b32.xlu0 %v1154, 96
        %v1247 = vpop.permute.xlu0 %1246
        %1248 = vrot.lane.b32.xlu0 %v1162, 96
        %v1249 = vpop.permute.xlu0 %1248
        %1250 = vrot.lane.b32.xlu0 %v1165, 96
        %v1251 = vpop.permute.xlu0 %1250
        %1252 = vrot.lane.b32.xlu0 %v1168, 96
        %v1253 = vpop.permute.xlu0 %1252
        %v1258 = vcombine.low %v1247, %v1251
        %v1259 = vcombine.high %v1247, %v1251
        %v1261 = vunpack.c.l.s4 1983009808
        %v1262 = vunpack.c.0.s8 %v1261
        %v1263 = vlaneseq
        %v1264 = vshrl.u32 %v1263, 7
        %v1265 = vsub.s32 %v1262, %v1264
        %v1266 = vrot.slane %v1258, %v1265
        %v1268 = vunpack.c.l.s4 1983009808
        %v1269 = vunpack.c.0.s8 %v1268
        %v1270 = vlaneseq
        %v1271 = vshrl.u32 %v1270, 7
        %v1272 = vsub.s32 %v1269, %v1271
        %v1273 = vrot.slane %v1259, %v1272
        %v1274 = vcombine.low %v1249, %v1253
        %v1275 = vcombine.high %v1249, %v1253
        %v1277 = vunpack.c.l.s4 1983009808
        %v1278 = vunpack.c.0.s8 %v1277
        %v1279 = vlaneseq
        %v1280 = vshrl.u32 %v1279, 7
        %v1281 = vsub.s32 %v1278, %v1280
        %v1282 = vrot.slane %v1274, %v1281
        %v1284 = vunpack.c.l.s4 1983009808
        %v1285 = vunpack.c.0.s8 %v1284
        %v1286 = vlaneseq
        %v1287 = vshrl.u32 %v1286, 7
        %v1288 = vsub.s32 %v1285, %v1287
        %v1289 = vrot.slane %v1275, %v1288
        %v1290 = vcombine.low %v1266, %v1282
        %v1291 = vcombine.high %v1266, %v1282
        %v1293 = vunpack.c.l.s4 1934713408
        %v1294 = vunpack.c.0.s8 %v1293
        %v1295 = vlaneseq
        %v1296 = vshrl.u32 %v1295, 7
        %v1297 = vsub.s32 %v1294, %v1296
        %v1298 = vrot.slane %v1290, %v1297
        %v1300 = vunpack.c.l.s4 1934713408
        %v1301 = vunpack.c.0.s8 %v1300
        %v1302 = vlaneseq
        %v1303 = vshrl.u32 %v1302, 7
        %v1304 = vsub.s32 %v1301, %v1303
        %v1305 = vrot.slane %v1291, %v1304
        %v1306 = vcombine.low %v1273, %v1289
        %v1307 = vcombine.high %v1273, %v1289
        %v1309 = vunpack.c.l.s4 1934713408
        %v1310 = vunpack.c.0.s8 %v1309
        %v1311 = vlaneseq
        %v1312 = vshrl.u32 %v1311, 7
        %v1313 = vsub.s32 %v1310, %v1312
        %v1314 = vrot.slane %v1306, %v1313
        %v1316 = vunpack.c.l.s4 1934713408
        %v1317 = vunpack.c.0.s8 %v1316
        %v1318 = vlaneseq
        %v1319 = vshrl.u32 %v1318, 7
        %v1320 = vsub.s32 %v1317, %v1319
        %v1321 = vrot.slane %v1307, %v1320
        %v1322 = vcombine.high %v1298, 0.0
        %v1323 = vcombine.high %v1305, 0.0
        %v1324 = vcombine.high %v1314, 0.0
        %v1325 = vcombine.high %v1321, 0.0
        %v1326 = vpack.c.bf16 %v1298, %v1298
        %v1327 = vpack.c.bf16 %v1322, %v1322
        %v1328 = vpack.c.bf16 %v1305, %v1305
        %v1329 = vpack.c.bf16 %v1323, %v1323
        %v1330 = vpack.c.bf16 %v1314, %v1314
        %v1331 = vpack.c.bf16 %v1324, %v1324
        %v1332 = vpack.c.bf16 %v1321, %v1321
        %v1333 = vpack.c.bf16 %v1325, %v1325
        %1334 = vrot.lane.b32.xlu0 %v1154, 64
        %v1335 = vpop.permute.xlu0 %1334
        %1336 = vrot.lane.b32.xlu0 %v1162, 64
        %v1337 = vpop.permute.xlu0 %1336
        %1338 = vrot.lane.b32.xlu0 %v1165, 64
        %v1339 = vpop.permute.xlu0 %1338
        %1340 = vrot.lane.b32.xlu0 %v1168, 64
        %v1341 = vpop.permute.xlu0 %1340
        %v1346 = vcombine.low %v1335, %v1339
        %v1347 = vcombine.high %v1335, %v1339
        %v1349 = vunpack.c.l.s4 1983009808
        %v1350 = vunpack.c.0.s8 %v1349
        %v1351 = vlaneseq
        %v1352 = vshrl.u32 %v1351, 7
        %v1353 = vsub.s32 %v1350, %v1352
        %v1354 = vrot.slane %v1346, %v1353
        %v1356 = vunpack.c.l.s4 1983009808
        %v1357 = vunpack.c.0.s8 %v1356
        %v1358 = vlaneseq
        %v1359 = vshrl.u32 %v1358, 7
        %v1360 = vsub.s32 %v1357, %v1359
        %v1361 = vrot.slane %v1347, %v1360
        %v1362 = vcombine.low %v1337, %v1341
        %v1363 = vcombine.high %v1337, %v1341
        %v1365 = vunpack.c.l.s4 1983009808
        %v1366 = vunpack.c.0.s8 %v1365
        %v1367 = vlaneseq
        %v1368 = vshrl.u32 %v1367, 7
        %v1369 = vsub.s32 %v1366, %v1368
        %v1370 = vrot.slane %v1362, %v1369
        %v1372 = vunpack.c.l.s4 1983009808
        %v1373 = vunpack.c.0.s8 %v1372
        %v1374 = vlaneseq
        %v1375 = vshrl.u32 %v1374, 7
        %v1376 = vsub.s32 %v1373, %v1375
        %v1377 = vrot.slane %v1363, %v1376
        %v1378 = vcombine.low %v1354, %v1370
        %v1379 = vcombine.high %v1354, %v1370
        %v1381 = vunpack.c.l.s4 1934713408
        %v1382 = vunpack.c.0.s8 %v1381
        %v1383 = vlaneseq
        %v1384 = vshrl.u32 %v1383, 7
        %v1385 = vsub.s32 %v1382, %v1384
        %v1386 = vrot.slane %v1378, %v1385
        %v1388 = vunpack.c.l.s4 1934713408
        %v1389 = vunpack.c.0.s8 %v1388
        %v1390 = vlaneseq
        %v1391 = vshrl.u32 %v1390, 7
        %v1392 = vsub.s32 %v1389, %v1391
        %v1393 = vrot.slane %v1379, %v1392
        %v1394 = vcombine.low %v1361, %v1377
        %v1395 = vcombine.high %v1361, %v1377
        %v1397 = vunpack.c.l.s4 1934713408
        %v1398 = vunpack.c.0.s8 %v1397
        %v1399 = vlaneseq
        %v1400 = vshrl.u32 %v1399, 7
        %v1401 = vsub.s32 %v1398, %v1400
        %v1402 = vrot.slane %v1394, %v1401
        %v1404 = vunpack.c.l.s4 1934713408
        %v1405 = vunpack.c.0.s8 %v1404
        %v1406 = vlaneseq
        %v1407 = vshrl.u32 %v1406, 7
        %v1408 = vsub.s32 %v1405, %v1407
        %v1409 = vrot.slane %v1395, %v1408
        %v1410 = vcombine.high %v1386, 0.0
        %v1411 = vcombine.high %v1393, 0.0
        %v1412 = vcombine.high %v1402, 0.0
        %v1413 = vcombine.high %v1409, 0.0
        %v1414 = vpack.c.bf16 %v1386, %v1386
        %v1415 = vpack.c.bf16 %v1410, %v1410
        %v1416 = vpack.c.bf16 %v1393, %v1393
        %v1417 = vpack.c.bf16 %v1411, %v1411
        %v1418 = vpack.c.bf16 %v1402, %v1402
        %v1419 = vpack.c.bf16 %v1412, %v1412
        %v1420 = vpack.c.bf16 %v1409, %v1409
        %v1421 = vpack.c.bf16 %v1413, %v1413
        %v1422 = vcombine.low %v1238, %v1242
        %v1424 = vunpack.c.l.s4 1983009808
        %v1425 = vunpack.c.0.s8 %v1424
        %v1426 = vlaneseq
        %v1427 = vshrl.u32 %v1426, 7
        %v1428 = vsub.s32 %v1425, %v1427
        %v1429 = vrot.slane %v1422, %v1428
        %v1430 = vcombine.low %v1240, %v1244
        %v1432 = vunpack.c.l.s4 1983009808
        %v1433 = vunpack.c.0.s8 %v1432
        %v1434 = vlaneseq
        %v1435 = vshrl.u32 %v1434, 7
        %v1436 = vsub.s32 %v1433, %v1435
        %v1437 = vrot.slane %v1430, %v1436
        %v1438 = vcombine.low %v1429, %v1437
        %v1440 = vunpack.c.l.s4 1934713408
        %v1441 = vunpack.c.0.s8 %v1440
        %v1442 = vlaneseq
        %v1443 = vshrl.u32 %v1442, 7
        %v1444 = vsub.s32 %v1441, %v1443
        %v1445 = vrot.slane %v1438, %v1444
        %v1446 = vcombine.high %v1445, 0
        %v1447 = vcombine.low %v1239, %v1243
        %v1449 = vunpack.c.l.s4 1983009808
        %v1450 = vunpack.c.0.s8 %v1449
        %v1451 = vlaneseq
        %v1452 = vshrl.u32 %v1451, 7
        %v1453 = vsub.s32 %v1450, %v1452
        %v1454 = vrot.slane %v1447, %v1453
        %v1455 = vcombine.low %v1241, %v1245
        %v1457 = vunpack.c.l.s4 1983009808
        %v1458 = vunpack.c.0.s8 %v1457
        %v1459 = vlaneseq
        %v1460 = vshrl.u32 %v1459, 7
        %v1461 = vsub.s32 %v1458, %v1460
        %v1462 = vrot.slane %v1455, %v1461
        %v1463 = vcombine.low %v1454, %v1462
        %v1465 = vunpack.c.l.s4 1934713408
        %v1466 = vunpack.c.0.s8 %v1465
        %v1467 = vlaneseq
        %v1468 = vshrl.u32 %v1467, 7
        %v1469 = vsub.s32 %v1466, %v1468
        %v1470 = vrot.slane %v1463, %v1469
        %v1471 = vcombine.high %v1470, 0
        %v1474 = vpack.i.b16 %v1470, %v1445
        %v1475 = vshrl.u32 %v1445, 16
        %v1476 = vshrl.u32 %v1470, 16
        %v1477 = vpack.i.b16 %v1476, %v1475
        %v1480 = vpack.i.b16 %v1471, %v1446
        %v1481 = vshrl.u32 %v1446, 16
        %v1482 = vshrl.u32 %v1471, 16
        %v1483 = vpack.i.b16 %v1482, %v1481
        %1484 = vxpose.xlu0.c.b16.start [1/8] %v1326, 128
        %1485 = vxpose.xlu0.c.b16.cont [2/8] 0, 128
        %1486 = vxpose.xlu0.c.b16.cont [3/8] 0, 128
        %1487 = vxpose.xlu0.c.b16.cont [4/8] 0, 128
        %1488 = vxpose.xlu0.c.b16.cont [5/8] 0, 128
        %1489 = vxpose.xlu0.c.b16.cont [6/8] 0, 128
        %1490 = vxpose.xlu0.c.b16.cont [7/8] 0, 128
        %1491 = vxpose.xlu0.c.b16.end [8/8] 0, 128
        %v1492 = vpop.trf.xlu0
        %v1493 = vpop.trf.xlu0
        %v1494 = vpop.trf.xlu0
        %v1495 = vpop.trf.xlu0
        %v1496 = vpop.trf.xlu0
        %v1497 = vpop.trf.xlu0
        %v1498 = vpop.trf.xlu0
        %v1499 = vpop.trf.xlu0
        %1500 = vxpose.xlu0.c.b16.start [1/8] %v1327, 128
        %1501 = vxpose.xlu0.c.b16.cont [2/8] 0, 128
        %1502 = vxpose.xlu0.c.b16.cont [3/8] 0, 128
        %1503 = vxpose.xlu0.c.b16.cont [4/8] 0, 128
        %1504 = vxpose.xlu0.c.b16.cont [5/8] 0, 128
        %1505 = vxpose.xlu0.c.b16.cont [6/8] 0, 128
        %1506 = vxpose.xlu0.c.b16.cont [7/8] 0, 128
        %1507 = vxpose.xlu0.c.b16.end [8/8] 0, 128
        %v1508 = vpop.trf.xlu0
        %v1509 = vpop.trf.xlu0
        %v1510 = vpop.trf.xlu0
        %v1511 = vpop.trf.xlu0
        %v1512 = vpop.trf.xlu0
        %v1513 = vpop.trf.xlu0
        %v1514 = vpop.trf.xlu0
        %v1515 = vpop.trf.xlu0
        %1516 = vxpose.xlu0.c.b16.start [1/8] %v1328, 128
        %1517 = vxpose.xlu0.c.b16.cont [2/8] 0, 128
        %1518 = vxpose.xlu0.c.b16.cont [3/8] 0, 128
        %1519 = vxpose.xlu0.c.b16.cont [4/8] 0, 128
        %1520 = vxpose.xlu0.c.b16.cont [5/8] 0, 128
        %1521 = vxpose.xlu0.c.b16.cont [6/8] 0, 128
        %1522 = vxpose.xlu0.c.b16.cont [7/8] 0, 128
        %1523 = vxpose.xlu0.c.b16.end [8/8] 0, 128
        %v1524 = vpop.trf.xlu0
        %v1525 = vpop.trf.xlu0
        %v1526 = vpop.trf.xlu0
        %v1527 = vpop.trf.xlu0
        %v1528 = vpop.trf.xlu0
        %v1529 = vpop.trf.xlu0
        %v1530 = vpop.trf.xlu0
        %v1531 = vpop.trf.xlu0
        %1532 = vxpose.xlu0.c.b16.start [1/8] %v1329, 128
        %1533 = vxpose.xlu0.c.b16.cont [2/8] 0, 128
        %1534 = vxpose.xlu0.c.b16.cont [3/8] 0, 128
        %1535 = vxpose.xlu0.c.b16.cont [4/8] 0, 128
        %1536 = vxpose.xlu0.c.b16.cont [5/8] 0, 128
        %1537 = vxpose.xlu0.c.b16.cont [6/8] 0, 128
        %1538 = vxpose.xlu0.c.b16.cont [7/8] 0, 128
        %1539 = vxpose.xlu0.c.b16.end [8/8] 0, 128
        %v1540 = vpop.trf.xlu0
        %v1541 = vpop.trf.xlu0
        %v1542 = vpop.trf.xlu0
        %v1543 = vpop.trf.xlu0
        %v1544 = vpop.trf.xlu0
        %v1545 = vpop.trf.xlu0
        %v1546 = vpop.trf.xlu0
        %v1547 = vpop.trf.xlu0
        %1548 = vxpose.xlu0.c.b16.start [1/8] %v1330, 128
        %1549 = vxpose.xlu0.c.b16.cont [2/8] 0, 128
        %1550 = vxpose.xlu0.c.b16.cont [3/8] 0, 128
        %1551 = vxpose.xlu0.c.b16.cont [4/8] 0, 128
        %1552 = vxpose.xlu0.c.b16.cont [5/8] 0, 128
        %1553 = vxpose.xlu0.c.b16.cont [6/8] 0, 128
        %1554 = vxpose.xlu0.c.b16.cont [7/8] 0, 128
        %1555 = vxpose.xlu0.c.b16.end [8/8] 0, 128
        %v1556 = vpop.trf.xlu0
        %v1557 = vpop.trf.xlu0
        %v1558 = vpop.trf.xlu0
        %v1559 = vpop.trf.xlu0
        %v1560 = vpop.trf.xlu0
        %v1561 = vpop.trf.xlu0
        %v1562 = vpop.trf.xlu0
        %v1563 = vpop.trf.xlu0
        %1564 = vxpose.xlu0.c.b16.start [1/8] %v1331, 128
        %1565 = vxpose.xlu0.c.b16.cont [2/8] 0, 128
        %1566 = vxpose.xlu0.c.b16.cont [3/8] 0, 128
        %1567 = vxpose.xlu0.c.b16.cont [4/8] 0, 128
        %1568 = vxpose.xlu0.c.b16.cont [5/8] 0, 128
        %1569 = vxpose.xlu0.c.b16.cont [6/8] 0, 128
        %1570 = vxpose.xlu0.c.b16.cont [7/8] 0, 128
        %1571 = vxpose.xlu0.c.b16.end [8/8] 0, 128
        %v1572 = vpop.trf.xlu0
        %v1573 = vpop.trf.xlu0
        %v1574 = vpop.trf.xlu0
        %v1575 = vpop.trf.xlu0
        %v1576 = vpop.trf.xlu0
        %v1577 = vpop.trf.xlu0
        %v1578 = vpop.trf.xlu0
        %v1579 = vpop.trf.xlu0
        %1580 = vxpose.xlu0.c.b16.start [1/8] %v1332, 128
        %1581 = vxpose.xlu0.c.b16.cont [2/8] 0, 128
        %1582 = vxpose.xlu0.c.b16.cont [3/8] 0, 128
        %1583 = vxpose.xlu0.c.b16.cont [4/8] 0, 128
        %1584 = vxpose.xlu0.c.b16.cont [5/8] 0, 128
        %1585 = vxpose.xlu0.c.b16.cont [6/8] 0, 128
        %1586 = vxpose.xlu0.c.b16.cont [7/8] 0, 128
        %1587 = vxpose.xlu0.c.b16.end [8/8] 0, 128
        %v1588 = vpop.trf.xlu0
        %v1589 = vpop.trf.xlu0
        %v1590 = vpop.trf.xlu0
        %v1591 = vpop.trf.xlu0
        %v1592 = vpop.trf.xlu0
        %v1593 = vpop.trf.xlu0
        %v1594 = vpop.trf.xlu0
        %v1595 = vpop.trf.xlu0
        %1596 = vxpose.xlu0.c.b16.start [1/8] %v1333, 128
        %1597 = vxpose.xlu0.c.b16.cont [2/8] 0, 128
        %1598 = vxpose.xlu0.c.b16.cont [3/8] 0, 128
        %1599 = vxpose.xlu0.c.b16.cont [4/8] 0, 128
        %1600 = vxpose.xlu0.c.b16.cont [5/8] 0, 128
        %1601 = vxpose.xlu0.c.b16.cont [6/8] 0, 128
        %1602 = vxpose.xlu0.c.b16.cont [7/8] 0, 128
        %1603 = vxpose.xlu0.c.b16.end [8/8] 0, 128
        %v1604 = vpop.trf.xlu0
        %v1605 = vpop.trf.xlu0
        %v1606 = vpop.trf.xlu0
        %v1607 = vpop.trf.xlu0
        %v1608 = vpop.trf.xlu0
        %v1609 = vpop.trf.xlu0
        %v1610 = vpop.trf.xlu0
        %v1611 = vpop.trf.xlu0
        %v1612 = vcombine.low %v1492, %v1556
        %v1614 = vunpack.c.l.s4 1983009808
        %v1615 = vunpack.c.0.s8 %v1614
        %v1616 = vlaneseq
        %v1617 = vshrl.u32 %v1616, 7
        %v1618 = vsub.s32 %v1615, %v1617
        %v1619 = vrot.slane %v1612, %v1618
        %v1620 = vcombine.low %v1524, %v1588
        %v1622 = vunpack.c.l.s4 1983009808
        %v1623 = vunpack.c.0.s8 %v1622
        %v1624 = vlaneseq
        %v1625 = vshrl.u32 %v1624, 7
        %v1626 = vsub.s32 %v1623, %v1625
        %v1627 = vrot.slane %v1620, %v1626
        %v1628 = vcombine.low %v1619, %v1627
        %v1629 = vcombine.high %v1619, %v1627
        %v1631 = vunpack.c.l.s4 1934713408
        %v1632 = vunpack.c.0.s8 %v1631
        %v1633 = vlaneseq
        %v1634 = vshrl.u32 %v1633, 7
        %v1635 = vsub.s32 %v1632, %v1634
        %v1636 = vrot.slane %v1628, %v1635
        %v1638 = vunpack.c.l.s4 1934713408
        %v1639 = vunpack.c.0.s8 %v1638
        %v1640 = vlaneseq
        %v1641 = vshrl.u32 %v1640, 7
        %v1642 = vsub.s32 %v1639, %v1641
        %v1643 = vrot.slane %v1629, %v1642
        %v1644 = vcombine.high %v1636, 0
        %v1645 = vcombine.high %v1643, 0
        %v1646 = vcombine.low %v1508, %v1572
        %v1648 = vunpack.c.l.s4 1983009808
        %v1649 = vunpack.c.0.s8 %v1648
        %v1650 = vlaneseq
        %v1651 = vshrl.u32 %v1650, 7
        %v1652 = vsub.s32 %v1649, %v1651
        %v1653 = vrot.slane %v1646, %v1652
        %v1654 = vcombine.low %v1540, %v1604
        %v1656 = vunpack.c.l.s4 1983009808
        %v1657 = vunpack.c.0.s8 %v1656
        %v1658 = vlaneseq
        %v1659 = vshrl.u32 %v1658, 7
        %v1660 = vsub.s32 %v1657, %v1659
        %v1661 = vrot.slane %v1654, %v1660
        %v1662 = vcombine.low %v1653, %v1661
        %v1663 = vcombine.high %v1653, %v1661
        %v1665 = vunpack.c.l.s4 1934713408
        %v1666 = vunpack.c.0.s8 %v1665
        %v1667 = vlaneseq
        %v1668 = vshrl.u32 %v1667, 7
        %v1669 = vsub.s32 %v1666, %v1668
        %v1670 = vrot.slane %v1662, %v1669
        %v1672 = vunpack.c.l.s4 1934713408
        %v1673 = vunpack.c.0.s8 %v1672
        %v1674 = vlaneseq
        %v1675 = vshrl.u32 %v1674, 7
        %v1676 = vsub.s32 %v1673, %v1675
        %v1677 = vrot.slane %v1663, %v1676
        %v1678 = vcombine.high %v1670, 0
        %v1679 = vcombine.high %v1677, 0
        %v1682 = vpack.i.b16 %v1670, %v1636
        %v1684 = vshrl.u32 %v1636, 16
        %v1685 = vshrl.u32 %v1670, 16
        %v1686 = vpack.i.b16 %v1685, %v1684
        %v1690 = vpack.i.b16 %v1678, %v1644
        %v1692 = vshrl.u32 %v1644, 16
        %v1693 = vshrl.u32 %v1678, 16
        %v1694 = vpack.i.b16 %v1693, %v1692
        %v1698 = vpack.i.b16 %v1677, %v1643
        %v1700 = vshrl.u32 %v1643, 16
        %v1701 = vshrl.u32 %v1677, 16
        %v1702 = vpack.i.b16 %v1701, %v1700
        %v1706 = vpack.i.b16 %v1679, %v1645
        %v1708 = vshrl.u32 %v1645, 16
        %v1709 = vshrl.u32 %v1679, 16
        %v1710 = vpack.i.b16 %v1709, %v1708
        %1712 = vxpose.xlu0.c.b16.start [1/8] %v1682, 128
        %1713 = vxpose.xlu0.c.b16.cont [2/8] 0, 128
        %1714 = vxpose.xlu0.c.b16.cont [3/8] 0, 128
        %1715 = vxpose.xlu0.c.b16.cont [4/8] 0, 128
        %1716 = vxpose.xlu0.c.b16.cont [5/8] 0, 128
        %1717 = vxpose.xlu0.c.b16.cont [6/8] 0, 128
        %1718 = vxpose.xlu0.c.b16.cont [7/8] 0, 128
        %1719 = vxpose.xlu0.c.b16.end [8/8] 0, 128
        %v1720 = vpop.trf.xlu0
        %v1721 = vpop.trf.xlu0
        %v1722 = vpop.trf.xlu0
        %v1723 = vpop.trf.xlu0
        %v1724 = vpop.trf.xlu0
        %v1725 = vpop.trf.xlu0
        %v1726 = vpop.trf.xlu0
        %v1727 = vpop.trf.xlu0
        %1728 = vxpose.xlu0.c.b16.start [1/8] %v1686, 128
        %1729 = vxpose.xlu0.c.b16.cont [2/8] 0, 128
        %1730 = vxpose.xlu0.c.b16.cont [3/8] 0, 128
        %1731 = vxpose.xlu0.c.b16.cont [4/8] 0, 128
        %1732 = vxpose.xlu0.c.b16.cont [5/8] 0, 128
        %1733 = vxpose.xlu0.c.b16.cont [6/8] 0, 128
        %1734 = vxpose.xlu0.c.b16.cont [7/8] 0, 128
        %1735 = vxpose.xlu0.c.b16.end [8/8] 0, 128
        %v1736 = vpop.trf.xlu0
        %v1737 = vpop.trf.xlu0
        %v1738 = vpop.trf.xlu0
        %v1739 = vpop.trf.xlu0
        %v1740 = vpop.trf.xlu0
        %v1741 = vpop.trf.xlu0
        %v1742 = vpop.trf.xlu0
        %v1743 = vpop.trf.xlu0
        %1744 = vxpose.xlu0.c.b16.start [1/8] %v1690, 128
        %1745 = vxpose.xlu0.c.b16.cont [2/8] 0, 128
        %1746 = vxpose.xlu0.c.b16.cont [3/8] 0, 128
        %1747 = vxpose.xlu0.c.b16.cont [4/8] 0, 128
        %1748 = vxpose.xlu0.c.b16.cont [5/8] 0, 128
        %1749 = vxpose.xlu0.c.b16.cont [6/8] 0, 128
        %1750 = vxpose.xlu0.c.b16.cont [7/8] 0, 128
        %1751 = vxpose.xlu0.c.b16.end [8/8] 0, 128
        %v1752 = vpop.trf.xlu0
        %v1753 = vpop.trf.xlu0
        %v1754 = vpop.trf.xlu0
        %v1755 = vpop.trf.xlu0
        %v1756 = vpop.trf.xlu0
        %v1757 = vpop.trf.xlu0
        %v1758 = vpop.trf.xlu0
        %v1759 = vpop.trf.xlu0
        %1760 = vxpose.xlu0.c.b16.start [1/8] %v1694, 128
        %1761 = vxpose.xlu0.c.b16.cont [2/8] 0, 128
        %1762 = vxpose.xlu0.c.b16.cont [3/8] 0, 128
        %1763 = vxpose.xlu0.c.b16.cont [4/8] 0, 128
        %1764 = vxpose.xlu0.c.b16.cont [5/8] 0, 128
        %1765 = vxpose.xlu0.c.b16.cont [6/8] 0, 128
        %1766 = vxpose.xlu0.c.b16.cont [7/8] 0, 128
        %1767 = vxpose.xlu0.c.b16.end [8/8] 0, 128
        %v1768 = vpop.trf.xlu0
        %v1769 = vpop.trf.xlu0
        %v1770 = vpop.trf.xlu0
        %v1771 = vpop.trf.xlu0
        %v1772 = vpop.trf.xlu0
        %v1773 = vpop.trf.xlu0
        %v1774 = vpop.trf.xlu0
        %v1775 = vpop.trf.xlu0
        %1776 = vxpose.xlu0.c.b16.start [1/8] %v1698, 128
        %1777 = vxpose.xlu0.c.b16.cont [2/8] 0, 128
        %1778 = vxpose.xlu0.c.b16.cont [3/8] 0, 128
        %1779 = vxpose.xlu0.c.b16.cont [4/8] 0, 128
        %1780 = vxpose.xlu0.c.b16.cont [5/8] 0, 128
        %1781 = vxpose.xlu0.c.b16.cont [6/8] 0, 128
        %1782 = vxpose.xlu0.c.b16.cont [7/8] 0, 128
        %1783 = vxpose.xlu0.c.b16.end [8/8] 0, 128
        %v1784 = vpop.trf.xlu0
        %v1785 = vpop.trf.xlu0
        %v1786 = vpop.trf.xlu0
        %v1787 = vpop.trf.xlu0
        %v1788 = vpop.trf.xlu0
        %v1789 = vpop.trf.xlu0
        %v1790 = vpop.trf.xlu0
        %v1791 = vpop.trf.xlu0
        %1792 = vxpose.xlu0.c.b16.start [1/8] %v1702, 128
        %1793 = vxpose.xlu0.c.b16.cont [2/8] 0, 128
        %1794 = vxpose.xlu0.c.b16.cont [3/8] 0, 128
        %1795 = vxpose.xlu0.c.b16.cont [4/8] 0, 128
        %1796 = vxpose.xlu0.c.b16.cont [5/8] 0, 128
        %1797 = vxpose.xlu0.c.b16.cont [6/8] 0, 128
        %1798 = vxpose.xlu0.c.b16.cont [7/8] 0, 128
        %1799 = vxpose.xlu0.c.b16.end [8/8] 0, 128
        %v1800 = vpop.trf.xlu0
        %v1801 = vpop.trf.xlu0
        %v1802 = vpop.trf.xlu0
        %v1803 = vpop.trf.xlu0
        %v1804 = vpop.trf.xlu0
        %v1805 = vpop.trf.xlu0
        %v1806 = vpop.trf.xlu0
        %v1807 = vpop.trf.xlu0
        %1808 = vxpose.xlu0.c.b16.start [1/8] %v1706, 128
        %1809 = vxpose.xlu0.c.b16.cont [2/8] 0, 128
        %1810 = vxpose.xlu0.c.b16.cont [3/8] 0, 128
        %1811 = vxpose.xlu0.c.b16.cont [4/8] 0, 128
        %1812 = vxpose.xlu0.c.b16.cont [5/8] 0, 128
        %1813 = vxpose.xlu0.c.b16.cont [6/8] 0, 128
        %1814 = vxpose.xlu0.c.b16.cont [7/8] 0, 128
        %1815 = vxpose.xlu0.c.b16.end [8/8] 0, 128
        %v1816 = vpop.trf.xlu0
        %v1817 = vpop.trf.xlu0
        %v1818 = vpop.trf.xlu0
        %v1819 = vpop.trf.xlu0
        %v1820 = vpop.trf.xlu0
        %v1821 = vpop.trf.xlu0
        %v1822 = vpop.trf.xlu0
        %v1823 = vpop.trf.xlu0
        %1824 = vxpose.xlu0.c.b16.start [1/8] %v1710, 128
        %1825 = vxpose.xlu0.c.b16.cont [2/8] 0, 128
        %1826 = vxpose.xlu0.c.b16.cont [3/8] 0, 128
        %1827 = vxpose.xlu0.c.b16.cont [4/8] 0, 128
        %1828 = vxpose.xlu0.c.b16.cont [5/8] 0, 128
        %1829 = vxpose.xlu0.c.b16.cont [6/8] 0, 128
        %1830 = vxpose.xlu0.c.b16.cont [7/8] 0, 128
        %1831 = vxpose.xlu0.c.b16.end [8/8] 0, 128
        %v1832 = vpop.trf.xlu0
        %v1833 = vpop.trf.xlu0
        %v1834 = vpop.trf.xlu0
        %v1835 = vpop.trf.xlu0
        %v1836 = vpop.trf.xlu0
        %v1837 = vpop.trf.xlu0
        %v1838 = vpop.trf.xlu0
        %v1839 = vpop.trf.xlu0
        %v1840 = vcombine.low %v1720, %v1784
        %v1842 = vunpack.c.l.s4 1983009808
        %v1843 = vunpack.c.0.s8 %v1842
        %v1844 = vlaneseq
        %v1845 = vshrl.u32 %v1844, 7
        %v1846 = vsub.s32 %v1843, %v1845
        %v1847 = vrot.slane %v1840, %v1846
        %v1848 = vcombine.low %v1752, %v1816
        %v1850 = vunpack.c.l.s4 1983009808
        %v1851 = vunpack.c.0.s8 %v1850
        %v1852 = vlaneseq
        %v1853 = vshrl.u32 %v1852, 7
        %v1854 = vsub.s32 %v1851, %v1853
        %v1855 = vrot.slane %v1848, %v1854
        %v1856 = vcombine.low %v1847, %v1855
        %v1858 = vunpack.c.l.s4 1934713408
        %v1859 = vunpack.c.0.s8 %v1858
        %v1860 = vlaneseq
        %v1861 = vshrl.u32 %v1860, 7
        %v1862 = vsub.s32 %v1859, %v1861
        %v1863 = vrot.slane %v1856, %v1862
        %v1864 = vcombine.high %v1863, 0
        %v1865 = vcombine.low %v1736, %v1800
        %v1867 = vunpack.c.l.s4 1983009808
        %v1868 = vunpack.c.0.s8 %v1867
        %v1869 = vlaneseq
        %v1870 = vshrl.u32 %v1869, 7
        %v1871 = vsub.s32 %v1868, %v1870
        %v1872 = vrot.slane %v1865, %v1871
        %v1873 = vcombine.low %v1768, %v1832
        %v1875 = vunpack.c.l.s4 1983009808
        %v1876 = vunpack.c.0.s8 %v1875
        %v1877 = vlaneseq
        %v1878 = vshrl.u32 %v1877, 7
        %v1879 = vsub.s32 %v1876, %v1878
        %v1880 = vrot.slane %v1873, %v1879
        %v1881 = vcombine.low %v1872, %v1880
        %v1883 = vunpack.c.l.s4 1934713408
        %v1884 = vunpack.c.0.s8 %v1883
        %v1885 = vlaneseq
        %v1886 = vshrl.u32 %v1885, 7
        %v1887 = vsub.s32 %v1884, %v1886
        %v1888 = vrot.slane %v1881, %v1887
        %v1889 = vcombine.high %v1888, 0
        %v1892 = vpack.i.b16 %v1888, %v1863
        %v1893 = vshrl.u32 %v1863, 16
        %v1894 = vshrl.u32 %v1888, 16
        %v1895 = vpack.i.b16 %v1894, %v1893
        %v1898 = vpack.i.b16 %v1889, %v1864
        %v1899 = vshrl.u32 %v1864, 16
        %v1900 = vshrl.u32 %v1889, 16
        %v1901 = vpack.i.b16 %v1900, %v1899
        %vm1902 = vcmask 64512
        %v1904 = vsel %vm1902, %v1474, 0
        %vm1906 = vcmask 1043456
        %v1908 = vsel %vm1906, %v1892, 0
        %1910 = vmatprep.subr.bf16.mxu0 0
        %1911 = vmatpush1.bf16.msra.mxu0 0
        %1912 = vmatprep.subr.bf16.mxu0 0
        %1913 = vmatpush1.bf16.msra.mxu0 0
        %1914 = vmatprep.subr.bf16.mxu0 0
        %1915 = vmatpush1.bf16.msra.mxu0 0
        %1916 = vmatprep.subr.bf16.mxu0 0
        %1917 = vmatpush1.bf16.msra.mxu0 0
        %1918 = vmatprep.subr.bf16.mxu0 0
        %1919 = vmatpush1.bf16.msra.mxu0 0
        %1920 = vmatprep.subr.bf16.mxu0 0
        %1921 = vmatpush1.bf16.msra.mxu0 0
        %1922 = vmatprep.subr.bf16.mxu0 0
        %1923 = vmatpush1.bf16.msra.mxu0 0
        %1924 = vmatprep.subr.bf16.mxu0 0
        %1925 = vmatpush1.bf16.msra.mxu0 %v1908
        %1926 = vmatprep.subr.bf16.mxu0 0
        %1927 = vmatpush2.bf16.msra.mxu0 0
        %1928 = vmatprep.subr.bf16.mxu0 0
        %1929 = vmatpush2.bf16.msra.mxu0 0
        %1930 = vmatprep.subr.bf16.mxu0 0
        %1931 = vmatpush2.bf16.msra.mxu0 0
        %1932 = vmatprep.subr.bf16.mxu0 0
        %1933 = vmatpush2.bf16.msra.mxu0 0
        %1934 = vmatprep.subr.bf16.mxu0 0
        %1935 = vmatpush2.bf16.msra.mxu0 0
        %1936 = vmatprep.subr.bf16.mxu0 0
        %1937 = vmatpush2.bf16.msra.mxu0 0
        %1938 = vmatprep.subr.bf16.mxu0 0
        %1939 = vmatpush2.bf16.msra.mxu0 0
        %1940 = vmatprep.subr.bf16.mxu0 0
        %1941 = vmatpush2.bf16.msra.mxu0 0
        %1942 = vmatprep.mubr.bf16.mxu0 0
        %1943 = vmatmul.mubr.bf16.gmra.mxu0 %v1904
        %v1944 = vpop.f32.mrf.mxu0
        %v1945 = vadd.f32 0.0, %v1944
        %v1946 = vpop.f32.mrf.mxu0
        %v1947 = vpop.f32.mrf.mxu0
        %v1948 = vpop.f32.mrf.mxu0
        %1949 = vdwg.mxu0
        %v1951 = vsel %vm1902, %v1477, 0
        %v1954 = vsel %vm1906, %v1895, 0
        %1956 = vmatprep.subr.bf16.mxu0 0
        %1957 = vmatpush1.bf16.msra.mxu0 0
        %1958 = vmatprep.subr.bf16.mxu0 0
        %1959 = vmatpush1.bf16.msra.mxu0 0
        %1960 = vmatprep.subr.bf16.mxu0 0
        %1961 = vmatpush1.bf16.msra.mxu0 0
        %1962 = vmatprep.subr.bf16.mxu0 0
        %1963 = vmatpush1.bf16.msra.mxu0 0
        %1964 = vmatprep.subr.bf16.mxu0 0
        %1965 = vmatpush1.bf16.msra.mxu0 0
        %1966 = vmatprep.subr.bf16.mxu0 0
        %1967 = vmatpush1.bf16.msra.mxu0 0
        %1968 = vmatprep.subr.bf16.mxu0 0
        %1969 = vmatpush1.bf16.msra.mxu0 0
        %1970 = vmatprep.subr.bf16.mxu0 0
        %1971 = vmatpush1.bf16.msra.mxu0 %v1954
        %1972 = vmatprep.subr.bf16.mxu0 0
        %1973 = vmatpush2.bf16.msra.mxu0 0
        %1974 = vmatprep.subr.bf16.mxu0 0
        %1975 = vmatpush2.bf16.msra.mxu0 0
        %1976 = vmatprep.subr.bf16.mxu0 0
        %1977 = vmatpush2.bf16.msra.mxu0 0
        %1978 = vmatprep.subr.bf16.mxu0 0
        %1979 = vmatpush2.bf16.msra.mxu0 0
        %1980 = vmatprep.subr.bf16.mxu0 0
        %1981 = vmatpush2.bf16.msra.mxu0 0
        %1982 = vmatprep.subr.bf16.mxu0 0
        %1983 = vmatpush2.bf16.msra.mxu0 0
        %1984 = vmatprep.subr.bf16.mxu0 0
        %1985 = vmatpush2.bf16.msra.mxu0 0
        %1986 = vmatprep.subr.bf16.mxu0 0
        %1987 = vmatpush2.bf16.msra.mxu0 0
        %1988 = vmatprep.mubr.bf16.mxu0 0
        %1989 = vmatmul.mubr.bf16.gmra.mxu0 %v1951
        %v1990 = vpop.f32.mrf.mxu0
        %v1991 = vadd.f32 0.0, %v1990
        %v1992 = vpop.f32.mrf.mxu0
        %v1993 = vpop.f32.mrf.mxu0
        %v1994 = vpop.f32.mrf.mxu0
        %1995 = vdwg.mxu0
        %v1997 = vsel %vm1902, %v1480, 0
        %v2000 = vsel %vm1906, %v1898, 0
        %2002 = vmatprep.subr.bf16.mxu0 0
        %2003 = vmatpush1.bf16.msra.mxu0 0
        %2004 = vmatprep.subr.bf16.mxu0 0
        %2005 = vmatpush1.bf16.msra.mxu0 0
        %2006 = vmatprep.subr.bf16.mxu0 0
        %2007 = vmatpush1.bf16.msra.mxu0 0
        %2008 = vmatprep.subr.bf16.mxu0 0
        %2009 = vmatpush1.bf16.msra.mxu0 0
        %2010 = vmatprep.subr.bf16.mxu0 0
        %2011 = vmatpush1.bf16.msra.mxu0 0
        %2012 = vmatprep.subr.bf16.mxu0 0
        %2013 = vmatpush1.bf16.msra.mxu0 0
        %2014 = vmatprep.subr.bf16.mxu0 0
        %2015 = vmatpush1.bf16.msra.mxu0 0
        %2016 = vmatprep.subr.bf16.mxu0 0
        %2017 = vmatpush1.bf16.msra.mxu0 %v2000
        %2018 = vmatprep.subr.bf16.mxu0 0
        %2019 = vmatpush2.bf16.msra.mxu0 0
        %2020 = vmatprep.subr.bf16.mxu0 0
        %2021 = vmatpush2.bf16.msra.mxu0 0
        %2022 = vmatprep.subr.bf16.mxu0 0
        %2023 = vmatpush2.bf16.msra.mxu0 0
        %2024 = vmatprep.subr.bf16.mxu0 0
        %2025 = vmatpush2.bf16.msra.mxu0 0
        %2026 = vmatprep.subr.bf16.mxu0 0
        %2027 = vmatpush2.bf16.msra.mxu0 0
        %2028 = vmatprep.subr.bf16.mxu0 0
        %2029 = vmatpush2.bf16.msra.mxu0 0
        %2030 = vmatprep.subr.bf16.mxu0 0
        %2031 = vmatpush2.bf16.msra.mxu0 0
        %2032 = vmatprep.subr.bf16.mxu0 0
        %2033 = vmatpush2.bf16.msra.mxu0 0
        %2034 = vmatprep.mubr.bf16.mxu0 0
        %2035 = vmatmul.mubr.bf16.gmra.mxu0 %v1997
        %v2036 = vpop.f32.mrf.mxu0
        %v2037 = vadd.f32 0.0, %v2036
        %v2038 = vpop.f32.mrf.mxu0
        %v2039 = vpop.f32.mrf.mxu0
        %v2040 = vpop.f32.mrf.mxu0
        %2041 = vdwg.mxu0
        %v2043 = vsel %vm1902, %v1483, 0
        %v2046 = vsel %vm1906, %v1901, 0
        %2048 = vmatprep.subr.bf16.mxu0 0
        %2049 = vmatpush1.bf16.msra.mxu0 0
        %2050 = vmatprep.subr.bf16.mxu0 0
        %2051 = vmatpush1.bf16.msra.mxu0 0
        %2052 = vmatprep.subr.bf16.mxu0 0
        %2053 = vmatpush1.bf16.msra.mxu0 0
        %2054 = vmatprep.subr.bf16.mxu0 0
        %2055 = vmatpush1.bf16.msra.mxu0 0
        %2056 = vmatprep.subr.bf16.mxu0 0
        %2057 = vmatpush1.bf16.msra.mxu0 0
        %2058 = vmatprep.subr.bf16.mxu0 0
        %2059 = vmatpush1.bf16.msra.mxu0 0
        %2060 = vmatprep.subr.bf16.mxu0 0
        %2061 = vmatpush1.bf16.msra.mxu0 0
        %2062 = vmatprep.subr.bf16.mxu0 0
        %2063 = vmatpush1.bf16.msra.mxu0 %v2046
        %2064 = vmatprep.subr.bf16.mxu0 0
        %2065 = vmatpush2.bf16.msra.mxu0 0
        %2066 = vmatprep.subr.bf16.mxu0 0
        %2067 = vmatpush2.bf16.msra.mxu0 0
        %2068 = vmatprep.subr.bf16.mxu0 0
        %2069 = vmatpush2.bf16.msra.mxu0 0
        %2070 = vmatprep.subr.bf16.mxu0 0
        %2071 = vmatpush2.bf16.msra.mxu0 0
        %2072 = vmatprep.subr.bf16.mxu0 0
        %2073 = vmatpush2.bf16.msra.mxu0 0
        %2074 = vmatprep.subr.bf16.mxu0 0
        %2075 = vmatpush2.bf16.msra.mxu0 0
        %2076 = vmatprep.subr.bf16.mxu0 0
        %2077 = vmatpush2.bf16.msra.mxu0 0
        %2078 = vmatprep.subr.bf16.mxu0 0
        %2079 = vmatpush2.bf16.msra.mxu0 0
        %2080 = vmatprep.mubr.bf16.mxu0 0
        %2081 = vmatmul.mubr.bf16.gmra.mxu0 %v2043
        %v2082 = vpop.f32.mrf.mxu0
        %v2083 = vadd.f32 0.0, %v2082
        %v2084 = vpop.f32.mrf.mxu0
        %v2085 = vpop.f32.mrf.mxu0
        %v2086 = vpop.f32.mrf.mxu0
        %2087 = vdwg.mxu0
        %vm2088 = vcmp.eq.f32.partialorder %v1159, 0.0
        %v2089 = vsel %vm2088, 1, 0
        %vm2090 = vcmp.eq.s32.totalorder %v2089, 1
        %v2091 = vsel %vm2090, -1e+09, %v1945
        %v2092 = vsel %vm2090, -1e+09, %v1991
        %v2093 = vsel %vm2090, -1e+09, %v2037
        %v2094 = vsel %vm2090, -1e+09, %v2083
        %v2095 = vsel %vm1902, %v2091, -inf
        %2096 = vmax.xlane.f32.xlu0 %v2095
        %v2097 = vpop.xlane.xlu0 %2096
        %v2098 = vsel %vm1902, %v2092, -inf
        %2099 = vmax.xlane.f32.xlu0 %v2098
        %v2100 = vpop.xlane.xlu0 %2099
        %v2101 = vsel %vm1902, %v2093, -inf
        %2102 = vmax.xlane.f32.xlu0 %v2101
        %v2103 = vpop.xlane.xlu0 %2102
        %v2104 = vsel %vm1902, %v2094, -inf
        %2105 = vmax.xlane.f32.xlu0 %v2104
        %v2106 = vpop.xlane.xlu0 %2105
        %v2107 = vsub.f32 %v2091, %v2097
        %v2108 = vsub.f32 %v2092, %v2100
        %v2109 = vsub.f32 %v2093, %v2103
        %v2110 = vsub.f32 %v2094, %v2106
        %v2111 = vmul.f32 %v2107, 1.442695
        %v2112 = vpow.pop %v2111
        %v2113 = vmul.f32 %v2108, 1.442695
        %v2114 = vpow.pop %v2113
        %v2115 = vmul.f32 %v2109, 1.442695
        %v2116 = vpow.pop %v2115
        %v2117 = vmul.f32 %v2110, 1.442695
        %v2118 = vpow.pop %v2117
        %v2119 = vsel %vm1902, %v2112, 0.0
        %2120 = vadd.xlane.f32.xlu0 %v2119
        %v2121 = vpop.xlane.xlu0 %2120
        %v2122 = vsel %vm1902, %v2114, 0.0
        %2123 = vadd.xlane.f32.xlu0 %v2122
        %v2124 = vpop.xlane.xlu0 %2123
        %v2125 = vsel %vm1902, %v2116, 0.0
        %2126 = vadd.xlane.f32.xlu0 %v2125
        %v2127 = vpop.xlane.xlu0 %2126
        %v2128 = vsel %vm1902, %v2118, 0.0
        %2129 = vadd.xlane.f32.xlu0 %v2128
        %v2130 = vpop.xlane.xlu0 %2129
        %v2131 = vrcp.pop %v2121
        %v2132 = vmul.f32 %v2112, %v2131
        %v2133 = vrcp.pop %v2124
        %v2134 = vmul.f32 %v2114, %v2133
        %v2135 = vrcp.pop %v2127
        %v2136 = vmul.f32 %v2116, %v2135
        %v2137 = vrcp.pop %v2130
        %v2138 = vmul.f32 %v2118, %v2137
        %v2139 = vpack.c.bf16 %v2132, %v2132
        %v2140 = vpack.c.bf16 %v2134, %v2134
        %v2141 = vpack.c.bf16 %v2136, %v2136
        %v2142 = vpack.c.bf16 %v2138, %v2138
        %2143 = vxpose.xlu0.c.b16.start [1/8] %v1414, 128
        %2144 = vxpose.xlu0.c.b16.cont [2/8] 0, 128
        %2145 = vxpose.xlu0.c.b16.cont [3/8] 0, 128
        %2146 = vxpose.xlu0.c.b16.cont [4/8] 0, 128
        %2147 = vxpose.xlu0.c.b16.cont [5/8] 0, 128
        %2148 = vxpose.xlu0.c.b16.cont [6/8] 0, 128
        %2149 = vxpose.xlu0.c.b16.cont [7/8] 0, 128
        %2150 = vxpose.xlu0.c.b16.end [8/8] 0, 128
        %v2151 = vpop.trf.xlu0
        %v2152 = vpop.trf.xlu0
        %v2153 = vpop.trf.xlu0
        %v2154 = vpop.trf.xlu0
        %v2155 = vpop.trf.xlu0
        %v2156 = vpop.trf.xlu0
        %v2157 = vpop.trf.xlu0
        %v2158 = vpop.trf.xlu0
        %2159 = vxpose.xlu0.c.b16.start [1/8] %v1415, 128
        %2160 = vxpose.xlu0.c.b16.cont [2/8] 0, 128
        %2161 = vxpose.xlu0.c.b16.cont [3/8] 0, 128
        %2162 = vxpose.xlu0.c.b16.cont [4/8] 0, 128
        %2163 = vxpose.xlu0.c.b16.cont [5/8] 0, 128
        %2164 = vxpose.xlu0.c.b16.cont [6/8] 0, 128
        %2165 = vxpose.xlu0.c.b16.cont [7/8] 0, 128
        %2166 = vxpose.xlu0.c.b16.end [8/8] 0, 128
        %v2167 = vpop.trf.xlu0
        %v2168 = vpop.trf.xlu0
        %v2169 = vpop.trf.xlu0
        %v2170 = vpop.trf.xlu0
        %v2171 = vpop.trf.xlu0
        %v2172 = vpop.trf.xlu0
        %v2173 = vpop.trf.xlu0
        %v2174 = vpop.trf.xlu0
        %2175 = vxpose.xlu0.c.b16.start [1/8] %v1416, 128
        %2176 = vxpose.xlu0.c.b16.cont [2/8] 0, 128
        %2177 = vxpose.xlu0.c.b16.cont [3/8] 0, 128
        %2178 = vxpose.xlu0.c.b16.cont [4/8] 0, 128
        %2179 = vxpose.xlu0.c.b16.cont [5/8] 0, 128
        %2180 = vxpose.xlu0.c.b16.cont [6/8] 0, 128
        %2181 = vxpose.xlu0.c.b16.cont [7/8] 0, 128
        %2182 = vxpose.xlu0.c.b16.end [8/8] 0, 128
        %v2183 = vpop.trf.xlu0
        %v2184 = vpop.trf.xlu0
        %v2185 = vpop.trf.xlu0
        %v2186 = vpop.trf.xlu0
        %v2187 = vpop.trf.xlu0
        %v2188 = vpop.trf.xlu0
        %v2189 = vpop.trf.xlu0
        %v2190 = vpop.trf.xlu0
        %2191 = vxpose.xlu0.c.b16.start [1/8] %v1417, 128
        %2192 = vxpose.xlu0.c.b16.cont [2/8] 0, 128
        %2193 = vxpose.xlu0.c.b16.cont [3/8] 0, 128
        %2194 = vxpose.xlu0.c.b16.cont [4/8] 0, 128
        %2195 = vxpose.xlu0.c.b16.cont [5/8] 0, 128
        %2196 = vxpose.xlu0.c.b16.cont [6/8] 0, 128
        %2197 = vxpose.xlu0.c.b16.cont [7/8] 0, 128
        %2198 = vxpose.xlu0.c.b16.end [8/8] 0, 128
        %v2199 = vpop.trf.xlu0
        %v2200 = vpop.trf.xlu0
        %v2201 = vpop.trf.xlu0
        %v2202 = vpop.trf.xlu0
        %v2203 = vpop.trf.xlu0
        %v2204 = vpop.trf.xlu0
        %v2205 = vpop.trf.xlu0
        %v2206 = vpop.trf.xlu0
        %2207 = vxpose.xlu0.c.b16.start [1/8] %v1418, 128
        %2208 = vxpose.xlu0.c.b16.cont [2/8] 0, 128
        %2209 = vxpose.xlu0.c.b16.cont [3/8] 0, 128
        %2210 = vxpose.xlu0.c.b16.cont [4/8] 0, 128
        %2211 = vxpose.xlu0.c.b16.cont [5/8] 0, 128
        %2212 = vxpose.xlu0.c.b16.cont [6/8] 0, 128
        %2213 = vxpose.xlu0.c.b16.cont [7/8] 0, 128
        %2214 = vxpose.xlu0.c.b16.end [8/8] 0, 128
        %v2215 = vpop.trf.xlu0
        %v2216 = vpop.trf.xlu0
        %v2217 = vpop.trf.xlu0
        %v2218 = vpop.trf.xlu0
        %v2219 = vpop.trf.xlu0
        %v2220 = vpop.trf.xlu0
        %v2221 = vpop.trf.xlu0
        %v2222 = vpop.trf.xlu0
        %2223 = vxpose.xlu0.c.b16.start [1/8] %v1419, 128
        %2224 = vxpose.xlu0.c.b16.cont [2/8] 0, 128
        %2225 = vxpose.xlu0.c.b16.cont [3/8] 0, 128
        %2226 = vxpose.xlu0.c.b16.cont [4/8] 0, 128
        %2227 = vxpose.xlu0.c.b16.cont [5/8] 0, 128
        %2228 = vxpose.xlu0.c.b16.cont [6/8] 0, 128
        %2229 = vxpose.xlu0.c.b16.cont [7/8] 0, 128
        %2230 = vxpose.xlu0.c.b16.end [8/8] 0, 128
        %v2231 = vpop.trf.xlu0
        %v2232 = vpop.trf.xlu0
        %v2233 = vpop.trf.xlu0
        %v2234 = vpop.trf.xlu0
        %v2235 = vpop.trf.xlu0
        %v2236 = vpop.trf.xlu0
        %v2237 = vpop.trf.xlu0
        %v2238 = vpop.trf.xlu0
        %2239 = vxpose.xlu0.c.b16.start [1/8] %v1420, 128
        %2240 = vxpose.xlu0.c.b16.cont [2/8] 0, 128
        %2241 = vxpose.xlu0.c.b16.cont [3/8] 0, 128
        %2242 = vxpose.xlu0.c.b16.cont [4/8] 0, 128
        %2243 = vxpose.xlu0.c.b16.cont [5/8] 0, 128
        %2244 = vxpose.xlu0.c.b16.cont [6/8] 0, 128
        %2245 = vxpose.xlu0.c.b16.cont [7/8] 0, 128
        %2246 = vxpose.xlu0.c.b16.end [8/8] 0, 128
        %v2247 = vpop.trf.xlu0
        %v2248 = vpop.trf.xlu0
        %v2249 = vpop.trf.xlu0
        %v2250 = vpop.trf.xlu0
        %v2251 = vpop.trf.xlu0
        %v2252 = vpop.trf.xlu0
        %v2253 = vpop.trf.xlu0
        %v2254 = vpop.trf.xlu0
        %2255 = vxpose.xlu0.c.b16.start [1/8] %v1421, 128
        %2256 = vxpose.xlu0.c.b16.cont [2/8] 0, 128
        %2257 = vxpose.xlu0.c.b16.cont [3/8] 0, 128
        %2258 = vxpose.xlu0.c.b16.cont [4/8] 0, 128
        %2259 = vxpose.xlu0.c.b16.cont [5/8] 0, 128
        %2260 = vxpose.xlu0.c.b16.cont [6/8] 0, 128
        %2261 = vxpose.xlu0.c.b16.cont [7/8] 0, 128
        %2262 = vxpose.xlu0.c.b16.end [8/8] 0, 128
        %v2263 = vpop.trf.xlu0
        %v2264 = vpop.trf.xlu0
        %v2265 = vpop.trf.xlu0
        %v2266 = vpop.trf.xlu0
        %v2267 = vpop.trf.xlu0
        %v2268 = vpop.trf.xlu0
        %v2269 = vpop.trf.xlu0
        %v2270 = vpop.trf.xlu0
        %v2271 = vcombine.low %v2151, %v2215
        %v2273 = vunpack.c.l.s4 1983009808
        %v2274 = vunpack.c.0.s8 %v2273
        %v2275 = vlaneseq
        %v2276 = vshrl.u32 %v2275, 7
        %v2277 = vsub.s32 %v2274, %v2276
        %v2278 = vrot.slane %v2271, %v2277
        %v2279 = vcombine.low %v2183, %v2247
        %v2281 = vunpack.c.l.s4 1983009808
        %v2282 = vunpack.c.0.s8 %v2281
        %v2283 = vlaneseq
        %v2284 = vshrl.u32 %v2283, 7
        %v2285 = vsub.s32 %v2282, %v2284
        %v2286 = vrot.slane %v2279, %v2285
        %v2287 = vcombine.low %v2278, %v2286
        %v2288 = vcombine.high %v2278, %v2286
        %v2290 = vunpack.c.l.s4 1934713408
        %v2291 = vunpack.c.0.s8 %v2290
        %v2292 = vlaneseq
        %v2293 = vshrl.u32 %v2292, 7
        %v2294 = vsub.s32 %v2291, %v2293
        %v2295 = vrot.slane %v2287, %v2294
        %v2297 = vunpack.c.l.s4 1934713408
        %v2298 = vunpack.c.0.s8 %v2297
        %v2299 = vlaneseq
        %v2300 = vshrl.u32 %v2299, 7
        %v2301 = vsub.s32 %v2298, %v2300
        %v2302 = vrot.slane %v2288, %v2301
        %v2303 = vcombine.high %v2295, 0
        %v2304 = vcombine.high %v2302, 0
        %v2305 = vcombine.low %v2167, %v2231
        %v2307 = vunpack.c.l.s4 1983009808
        %v2308 = vunpack.c.0.s8 %v2307
        %v2309 = vlaneseq
        %v2310 = vshrl.u32 %v2309, 7
        %v2311 = vsub.s32 %v2308, %v2310
        %v2312 = vrot.slane %v2305, %v2311
        %v2313 = vcombine.low %v2199, %v2263
        %v2315 = vunpack.c.l.s4 1983009808
        %v2316 = vunpack.c.0.s8 %v2315
        %v2317 = vlaneseq
        %v2318 = vshrl.u32 %v2317, 7
        %v2319 = vsub.s32 %v2316, %v2318
        %v2320 = vrot.slane %v2313, %v2319
        %v2321 = vcombine.low %v2312, %v2320
        %v2322 = vcombine.high %v2312, %v2320
        %v2324 = vunpack.c.l.s4 1934713408
        %v2325 = vunpack.c.0.s8 %v2324
        %v2326 = vlaneseq
        %v2327 = vshrl.u32 %v2326, 7
        %v2328 = vsub.s32 %v2325, %v2327
        %v2329 = vrot.slane %v2321, %v2328
        %v2331 = vunpack.c.l.s4 1934713408
        %v2332 = vunpack.c.0.s8 %v2331
        %v2333 = vlaneseq
        %v2334 = vshrl.u32 %v2333, 7
        %v2335 = vsub.s32 %v2332, %v2334
        %v2336 = vrot.slane %v2322, %v2335
        %v2337 = vcombine.high %v2329, 0
        %v2338 = vcombine.high %v2336, 0
        %v2341 = vpack.i.b16 %v2329, %v2295
        %v2343 = vshrl.u32 %v2295, 16
        %v2344 = vshrl.u32 %v2329, 16
        %v2345 = vpack.i.b16 %v2344, %v2343
        %v2349 = vpack.i.b16 %v2337, %v2303
        %v2351 = vshrl.u32 %v2303, 16
        %v2352 = vshrl.u32 %v2337, 16
        %v2353 = vpack.i.b16 %v2352, %v2351
        %v2357 = vpack.i.b16 %v2336, %v2302
        %v2359 = vshrl.u32 %v2302, 16
        %v2360 = vshrl.u32 %v2336, 16
        %v2361 = vpack.i.b16 %v2360, %v2359
        %v2365 = vpack.i.b16 %v2338, %v2304
        %v2367 = vshrl.u32 %v2304, 16
        %v2368 = vshrl.u32 %v2338, 16
        %v2369 = vpack.i.b16 %v2368, %v2367
        %2371 = vxpose.xlu0.c.b16.start [1/8] %v2341, 128
        %2372 = vxpose.xlu0.c.b16.cont [2/8] 0, 128
        %2373 = vxpose.xlu0.c.b16.cont [3/8] 0, 128
        %2374 = vxpose.xlu0.c.b16.cont [4/8] 0, 128
        %2375 = vxpose.xlu0.c.b16.cont [5/8] 0, 128
        %2376 = vxpose.xlu0.c.b16.cont [6/8] 0, 128
        %2377 = vxpose.xlu0.c.b16.cont [7/8] 0, 128
        %2378 = vxpose.xlu0.c.b16.end [8/8] 0, 128
        %v2379 = vpop.trf.xlu0
        %v2380 = vpop.trf.xlu0
        %v2381 = vpop.trf.xlu0
        %v2382 = vpop.trf.xlu0
        %v2383 = vpop.trf.xlu0
        %v2384 = vpop.trf.xlu0
        %v2385 = vpop.trf.xlu0
        %v2386 = vpop.trf.xlu0
        %2387 = vxpose.xlu0.c.b16.start [1/8] %v2345, 128
        %2388 = vxpose.xlu0.c.b16.cont [2/8] 0, 128
        %2389 = vxpose.xlu0.c.b16.cont [3/8] 0, 128
        %2390 = vxpose.xlu0.c.b16.cont [4/8] 0, 128
        %2391 = vxpose.xlu0.c.b16.cont [5/8] 0, 128
        %2392 = vxpose.xlu0.c.b16.cont [6/8] 0, 128
        %2393 = vxpose.xlu0.c.b16.cont [7/8] 0, 128
        %2394 = vxpose.xlu0.c.b16.end [8/8] 0, 128
        %v2395 = vpop.trf.xlu0
        %v2396 = vpop.trf.xlu0
        %v2397 = vpop.trf.xlu0
        %v2398 = vpop.trf.xlu0
        %v2399 = vpop.trf.xlu0
        %v2400 = vpop.trf.xlu0
        %v2401 = vpop.trf.xlu0
        %v2402 = vpop.trf.xlu0
        %2403 = vxpose.xlu0.c.b16.start [1/8] %v2349, 128
        %2404 = vxpose.xlu0.c.b16.cont [2/8] 0, 128
        %2405 = vxpose.xlu0.c.b16.cont [3/8] 0, 128
        %2406 = vxpose.xlu0.c.b16.cont [4/8] 0, 128
        %2407 = vxpose.xlu0.c.b16.cont [5/8] 0, 128
        %2408 = vxpose.xlu0.c.b16.cont [6/8] 0, 128
        %2409 = vxpose.xlu0.c.b16.cont [7/8] 0, 128
        %2410 = vxpose.xlu0.c.b16.end [8/8] 0, 128
        %v2411 = vpop.trf.xlu0
        %v2412 = vpop.trf.xlu0
        %v2413 = vpop.trf.xlu0
        %v2414 = vpop.trf.xlu0
        %v2415 = vpop.trf.xlu0
        %v2416 = vpop.trf.xlu0
        %v2417 = vpop.trf.xlu0
        %v2418 = vpop.trf.xlu0
        %2419 = vxpose.xlu0.c.b16.start [1/8] %v2353, 128
        %2420 = vxpose.xlu0.c.b16.cont [2/8] 0, 128
        %2421 = vxpose.xlu0.c.b16.cont [3/8] 0, 128
        %2422 = vxpose.xlu0.c.b16.cont [4/8] 0, 128
        %2423 = vxpose.xlu0.c.b16.cont [5/8] 0, 128
        %2424 = vxpose.xlu0.c.b16.cont [6/8] 0, 128
        %2425 = vxpose.xlu0.c.b16.cont [7/8] 0, 128
        %2426 = vxpose.xlu0.c.b16.end [8/8] 0, 128
        %v2427 = vpop.trf.xlu0
        %v2428 = vpop.trf.xlu0
        %v2429 = vpop.trf.xlu0
        %v2430 = vpop.trf.xlu0
        %v2431 = vpop.trf.xlu0
        %v2432 = vpop.trf.xlu0
        %v2433 = vpop.trf.xlu0
        %v2434 = vpop.trf.xlu0
        %2435 = vxpose.xlu0.c.b16.start [1/8] %v2357, 128
        %2436 = vxpose.xlu0.c.b16.cont [2/8] 0, 128
        %2437 = vxpose.xlu0.c.b16.cont [3/8] 0, 128
        %2438 = vxpose.xlu0.c.b16.cont [4/8] 0, 128
        %2439 = vxpose.xlu0.c.b16.cont [5/8] 0, 128
        %2440 = vxpose.xlu0.c.b16.cont [6/8] 0, 128
        %2441 = vxpose.xlu0.c.b16.cont [7/8] 0, 128
        %2442 = vxpose.xlu0.c.b16.end [8/8] 0, 128
        %v2443 = vpop.trf.xlu0
        %v2444 = vpop.trf.xlu0
        %v2445 = vpop.trf.xlu0
        %v2446 = vpop.trf.xlu0
        %v2447 = vpop.trf.xlu0
        %v2448 = vpop.trf.xlu0
        %v2449 = vpop.trf.xlu0
        %v2450 = vpop.trf.xlu0
        %2451 = vxpose.xlu0.c.b16.start [1/8] %v2361, 128
        %2452 = vxpose.xlu0.c.b16.cont [2/8] 0, 128
        %2453 = vxpose.xlu0.c.b16.cont [3/8] 0, 128
        %2454 = vxpose.xlu0.c.b16.cont [4/8] 0, 128
        %2455 = vxpose.xlu0.c.b16.cont [5/8] 0, 128
        %2456 = vxpose.xlu0.c.b16.cont [6/8] 0, 128
        %2457 = vxpose.xlu0.c.b16.cont [7/8] 0, 128
        %2458 = vxpose.xlu0.c.b16.end [8/8] 0, 128
        %v2459 = vpop.trf.xlu0
        %v2460 = vpop.trf.xlu0
        %v2461 = vpop.trf.xlu0
        %v2462 = vpop.trf.xlu0
        %v2463 = vpop.trf.xlu0
        %v2464 = vpop.trf.xlu0
        %v2465 = vpop.trf.xlu0
        %v2466 = vpop.trf.xlu0
        %2467 = vxpose.xlu0.c.b16.start [1/8] %v2365, 128
        %2468 = vxpose.xlu0.c.b16.cont [2/8] 0, 128
        %2469 = vxpose.xlu0.c.b16.cont [3/8] 0, 128
        %2470 = vxpose.xlu0.c.b16.cont [4/8] 0, 128
        %2471 = vxpose.xlu0.c.b16.cont [5/8] 0, 128
        %2472 = vxpose.xlu0.c.b16.cont [6/8] 0, 128
        %2473 = vxpose.xlu0.c.b16.cont [7/8] 0, 128
        %2474 = vxpose.xlu0.c.b16.end [8/8] 0, 128
        %v2475 = vpop.trf.xlu0
        %v2476 = vpop.trf.xlu0
        %v2477 = vpop.trf.xlu0
        %v2478 = vpop.trf.xlu0
        %v2479 = vpop.trf.xlu0
        %v2480 = vpop.trf.xlu0
        %v2481 = vpop.trf.xlu0
        %v2482 = vpop.trf.xlu0
        %2483 = vxpose.xlu0.c.b16.start [1/8] %v2369, 128
        %2484 = vxpose.xlu0.c.b16.cont [2/8] 0, 128
        %2485 = vxpose.xlu0.c.b16.cont [3/8] 0, 128
        %2486 = vxpose.xlu0.c.b16.cont [4/8] 0, 128
        %2487 = vxpose.xlu0.c.b16.cont [5/8] 0, 128
        %2488 = vxpose.xlu0.c.b16.cont [6/8] 0, 128
        %2489 = vxpose.xlu0.c.b16.cont [7/8] 0, 128
        %2490 = vxpose.xlu0.c.b16.end [8/8] 0, 128
        %v2491 = vpop.trf.xlu0
        %v2492 = vpop.trf.xlu0
        %v2493 = vpop.trf.xlu0
        %v2494 = vpop.trf.xlu0
        %v2495 = vpop.trf.xlu0
        %v2496 = vpop.trf.xlu0
        %v2497 = vpop.trf.xlu0
        %v2498 = vpop.trf.xlu0
        %v2499 = vcombine.low %v2379, %v2443
        %v2501 = vunpack.c.l.s4 1983009808
        %v2502 = vunpack.c.0.s8 %v2501
        %v2503 = vlaneseq
        %v2504 = vshrl.u32 %v2503, 7
        %v2505 = vsub.s32 %v2502, %v2504
        %v2506 = vrot.slane %v2499, %v2505
        %v2507 = vcombine.low %v2411, %v2475
        %v2509 = vunpack.c.l.s4 1983009808
        %v2510 = vunpack.c.0.s8 %v2509
        %v2511 = vlaneseq
        %v2512 = vshrl.u32 %v2511, 7
        %v2513 = vsub.s32 %v2510, %v2512
        %v2514 = vrot.slane %v2507, %v2513
        %v2515 = vcombine.low %v2506, %v2514
        %v2517 = vunpack.c.l.s4 1934713408
        %v2518 = vunpack.c.0.s8 %v2517
        %v2519 = vlaneseq
        %v2520 = vshrl.u32 %v2519, 7
        %v2521 = vsub.s32 %v2518, %v2520
        %v2522 = vrot.slane %v2515, %v2521
        %v2523 = vcombine.high %v2522, 0
        %v2524 = vcombine.low %v2395, %v2459
        %v2526 = vunpack.c.l.s4 1983009808
        %v2527 = vunpack.c.0.s8 %v2526
        %v2528 = vlaneseq
        %v2529 = vshrl.u32 %v2528, 7
        %v2530 = vsub.s32 %v2527, %v2529
        %v2531 = vrot.slane %v2524, %v2530
        %v2532 = vcombine.low %v2427, %v2491
        %v2534 = vunpack.c.l.s4 1983009808
        %v2535 = vunpack.c.0.s8 %v2534
        %v2536 = vlaneseq
        %v2537 = vshrl.u32 %v2536, 7
        %v2538 = vsub.s32 %v2535, %v2537
        %v2539 = vrot.slane %v2532, %v2538
        %v2540 = vcombine.low %v2531, %v2539
        %v2542 = vunpack.c.l.s4 1934713408
        %v2543 = vunpack.c.0.s8 %v2542
        %v2544 = vlaneseq
        %v2545 = vshrl.u32 %v2544, 7
        %v2546 = vsub.s32 %v2543, %v2545
        %v2547 = vrot.slane %v2540, %v2546
        %v2548 = vcombine.high %v2547, 0
        %v2551 = vpack.i.b16 %v2547, %v2522
        %v2552 = vshrl.u32 %v2522, 16
        %v2553 = vshrl.u32 %v2547, 16
        %v2554 = vpack.i.b16 %v2553, %v2552
        %v2557 = vpack.i.b16 %v2548, %v2523
        %v2558 = vshrl.u32 %v2523, 16
        %v2559 = vshrl.u32 %v2548, 16
        %v2560 = vpack.i.b16 %v2559, %v2558
        %v2562 = vsel %vm1902, %v2551, 0
        %v2565 = vsel %vm1902, %v2139, 0
        %2567 = vmatprep.subr.bf16.mxu0 0
        %2568 = vmatpush1.bf16.xpose.msra.mxu0 0
        %2569 = vmatprep.subr.bf16.mxu0 0
        %2570 = vmatpush1.bf16.xpose.msra.mxu0 0
        %2571 = vmatprep.subr.bf16.mxu0 0
        %2572 = vmatpush1.bf16.xpose.msra.mxu0 0
        %2573 = vmatprep.subr.bf16.mxu0 0
        %2574 = vmatpush1.bf16.xpose.msra.mxu0 0
        %2575 = vmatprep.subr.bf16.mxu0 0
        %2576 = vmatpush1.bf16.xpose.msra.mxu0 0
        %2577 = vmatprep.subr.bf16.mxu0 0
        %2578 = vmatpush1.bf16.xpose.msra.mxu0 0
        %2579 = vmatprep.subr.bf16.mxu0 0
        %2580 = vmatpush1.bf16.xpose.msra.mxu0 0
        %2581 = vmatprep.subr.bf16.mxu0 0
        %2582 = vmatpush1.bf16.xpose.msra.mxu0 %v2565
        %2583 = vmatprep.subr.bf16.mxu0 0
        %2584 = vmatpush2.bf16.xpose.msra.mxu0 0
        %2585 = vmatprep.subr.bf16.mxu0 0
        %2586 = vmatpush2.bf16.xpose.msra.mxu0 0
        %2587 = vmatprep.subr.bf16.mxu0 0
        %2588 = vmatpush2.bf16.xpose.msra.mxu0 0
        %2589 = vmatprep.subr.bf16.mxu0 0
        %2590 = vmatpush2.bf16.xpose.msra.mxu0 0
        %2591 = vmatprep.subr.bf16.mxu0 0
        %2592 = vmatpush2.bf16.xpose.msra.mxu0 0
        %2593 = vmatprep.subr.bf16.mxu0 0
        %2594 = vmatpush2.bf16.xpose.msra.mxu0 0
        %2595 = vmatprep.subr.bf16.mxu0 0
        %2596 = vmatpush2.bf16.xpose.msra.mxu0 0
        %2597 = vmatprep.subr.bf16.mxu0 0
        %2598 = vmatpush2.bf16.xpose.msra.mxu0 0
        %2599 = vmatprep.mubr.bf16.mxu0 0
        %2600 = vmatmul.mubr.bf16.gmra.mxu0 %v2562
        %v2601 = vpop.f32.mrf.mxu0
        %v2602 = vadd.f32 0.0, %v2601
        %v2603 = vpop.f32.mrf.mxu0
        %v2604 = vpop.f32.mrf.mxu0
        %v2605 = vpop.f32.mrf.mxu0
        %2606 = vdwg.mxu0
        %v2608 = vsel %vm1902, %v2554, 0
        %v2611 = vsel %vm1902, %v2140, 0
        %2613 = vmatprep.subr.bf16.mxu0 0
        %2614 = vmatpush1.bf16.xpose.msra.mxu0 0
        %2615 = vmatprep.subr.bf16.mxu0 0
        %2616 = vmatpush1.bf16.xpose.msra.mxu0 0
        %2617 = vmatprep.subr.bf16.mxu0 0
        %2618 = vmatpush1.bf16.xpose.msra.mxu0 0
        %2619 = vmatprep.subr.bf16.mxu0 0
        %2620 = vmatpush1.bf16.xpose.msra.mxu0 0
        %2621 = vmatprep.subr.bf16.mxu0 0
        %2622 = vmatpush1.bf16.xpose.msra.mxu0 0
        %2623 = vmatprep.subr.bf16.mxu0 0
        %2624 = vmatpush1.bf16.xpose.msra.mxu0 0
        %2625 = vmatprep.subr.bf16.mxu0 0
        %2626 = vmatpush1.bf16.xpose.msra.mxu0 0
        %2627 = vmatprep.subr.bf16.mxu0 0
        %2628 = vmatpush1.bf16.xpose.msra.mxu0 %v2611
        %2629 = vmatprep.subr.bf16.mxu0 0
        %2630 = vmatpush2.bf16.xpose.msra.mxu0 0
        %2631 = vmatprep.subr.bf16.mxu0 0
        %2632 = vmatpush2.bf16.xpose.msra.mxu0 0
        %2633 = vmatprep.subr.bf16.mxu0 0
        %2634 = vmatpush2.bf16.xpose.msra.mxu0 0
        %2635 = vmatprep.subr.bf16.mxu0 0
        %2636 = vmatpush2.bf16.xpose.msra.mxu0 0
        %2637 = vmatprep.subr.bf16.mxu0 0
        %2638 = vmatpush2.bf16.xpose.msra.mxu0 0
        %2639 = vmatprep.subr.bf16.mxu0 0
        %2640 = vmatpush2.bf16.xpose.msra.mxu0 0
        %2641 = vmatprep.subr.bf16.mxu0 0
        %2642 = vmatpush2.bf16.xpose.msra.mxu0 0
        %2643 = vmatprep.subr.bf16.mxu0 0
        %2644 = vmatpush2.bf16.xpose.msra.mxu0 0
        %2645 = vmatprep.mubr.bf16.mxu0 0
        %2646 = vmatmul.mubr.bf16.gmra.mxu0 %v2608
        %v2647 = vpop.f32.mrf.mxu0
        %v2648 = vadd.f32 0.0, %v2647
        %v2649 = vpop.f32.mrf.mxu0
        %v2650 = vpop.f32.mrf.mxu0
        %v2651 = vpop.f32.mrf.mxu0
        %2652 = vdwg.mxu0
        %v2654 = vsel %vm1902, %v2557, 0
        %v2657 = vsel %vm1902, %v2141, 0
        %2659 = vmatprep.subr.bf16.mxu0 0
        %2660 = vmatpush1.bf16.xpose.msra.mxu0 0
        %2661 = vmatprep.subr.bf16.mxu0 0
        %2662 = vmatpush1.bf16.xpose.msra.mxu0 0
        %2663 = vmatprep.subr.bf16.mxu0 0
        %2664 = vmatpush1.bf16.xpose.msra.mxu0 0
        %2665 = vmatprep.subr.bf16.mxu0 0
        %2666 = vmatpush1.bf16.xpose.msra.mxu0 0
        %2667 = vmatprep.subr.bf16.mxu0 0
        %2668 = vmatpush1.bf16.xpose.msra.mxu0 0
        %2669 = vmatprep.subr.bf16.mxu0 0
        %2670 = vmatpush1.bf16.xpose.msra.mxu0 0
        %2671 = vmatprep.subr.bf16.mxu0 0
        %2672 = vmatpush1.bf16.xpose.msra.mxu0 0
        %2673 = vmatprep.subr.bf16.mxu0 0
        %2674 = vmatpush1.bf16.xpose.msra.mxu0 %v2657
        %2675 = vmatprep.subr.bf16.mxu0 0
        %2676 = vmatpush2.bf16.xpose.msra.mxu0 0
        %2677 = vmatprep.subr.bf16.mxu0 0
        %2678 = vmatpush2.bf16.xpose.msra.mxu0 0
        %2679 = vmatprep.subr.bf16.mxu0 0
        %2680 = vmatpush2.bf16.xpose.msra.mxu0 0
        %2681 = vmatprep.subr.bf16.mxu0 0
        %2682 = vmatpush2.bf16.xpose.msra.mxu0 0
        %2683 = vmatprep.subr.bf16.mxu0 0
        %2684 = vmatpush2.bf16.xpose.msra.mxu0 0
        %2685 = vmatprep.subr.bf16.mxu0 0
        %2686 = vmatpush2.bf16.xpose.msra.mxu0 0
        %2687 = vmatprep.subr.bf16.mxu0 0
        %2688 = vmatpush2.bf16.xpose.msra.mxu0 0
        %2689 = vmatprep.subr.bf16.mxu0 0
        %2690 = vmatpush2.bf16.xpose.msra.mxu0 0
        %2691 = vmatprep.mubr.bf16.mxu0 0
        %2692 = vmatmul.mubr.bf16.gmra.mxu0 %v2654
        %v2693 = vpop.f32.mrf.mxu0
        %v2694 = vadd.f32 0.0, %v2693
        %v2695 = vpop.f32.mrf.mxu0
        %v2696 = vpop.f32.mrf.mxu0
        %v2697 = vpop.f32.mrf.mxu0
        %2698 = vdwg.mxu0
        %v2700 = vsel %vm1902, %v2560, 0
        %v2703 = vsel %vm1902, %v2142, 0
        %2705 = vmatprep.subr.bf16.mxu0 0
        %2706 = vmatpush1.bf16.xpose.msra.mxu0 0
        %2707 = vmatprep.subr.bf16.mxu0 0
        %2708 = vmatpush1.bf16.xpose.msra.mxu0 0
        %2709 = vmatprep.subr.bf16.mxu0 0
        %2710 = vmatpush1.bf16.xpose.msra.mxu0 0
        %2711 = vmatprep.subr.bf16.mxu0 0
        %2712 = vmatpush1.bf16.xpose.msra.mxu0 0
        %2713 = vmatprep.subr.bf16.mxu0 0
        %2714 = vmatpush1.bf16.xpose.msra.mxu0 0
        %2715 = vmatprep.subr.bf16.mxu0 0
        %2716 = vmatpush1.bf16.xpose.msra.mxu0 0
        %2717 = vmatprep.subr.bf16.mxu0 0
        %2718 = vmatpush1.bf16.xpose.msra.mxu0 0
        %2719 = vmatprep.subr.bf16.mxu0 0
        %2720 = vmatpush1.bf16.xpose.msra.mxu0 %v2703
        %2721 = vmatprep.subr.bf16.mxu0 0
        %2722 = vmatpush2.bf16.xpose.msra.mxu0 0
        %2723 = vmatprep.subr.bf16.mxu0 0
        %2724 = vmatpush2.bf16.xpose.msra.mxu0 0
        %2725 = vmatprep.subr.bf16.mxu0 0
        %2726 = vmatpush2.bf16.xpose.msra.mxu0 0
        %2727 = vmatprep.subr.bf16.mxu0 0
        %2728 = vmatpush2.bf16.xpose.msra.mxu0 0
        %2729 = vmatprep.subr.bf16.mxu0 0
        %2730 = vmatpush2.bf16.xpose.msra.mxu0 0
        %2731 = vmatprep.subr.bf16.mxu0 0
        %2732 = vmatpush2.bf16.xpose.msra.mxu0 0
        %2733 = vmatprep.subr.bf16.mxu0 0
        %2734 = vmatpush2.bf16.xpose.msra.mxu0 0
        %2735 = vmatprep.subr.bf16.mxu0 0
        %2736 = vmatpush2.bf16.xpose.msra.mxu0 0
        %2737 = vmatprep.mubr.bf16.mxu0 0
        %2738 = vmatmul.mubr.bf16.gmra.mxu0 %v2700
        %v2739 = vpop.f32.mrf.mxu0
        %v2740 = vadd.f32 0.0, %v2739
        %v2741 = vpop.f32.mrf.mxu0
        %v2742 = vpop.f32.mrf.mxu0
        %v2743 = vpop.f32.mrf.mxu0
        %2744 = vdwg.mxu0
        %2745 = vxpose.xlu0.b32.start [1/16] %v2602, 128
        %2746 = vxpose.xlu0.b32.cont [2/16] 0.0, 128
        %2747 = vxpose.xlu0.b32.cont [3/16] 0.0, 128
        %2748 = vxpose.xlu0.b32.cont [4/16] 0.0, 128
        %2749 = vxpose.xlu0.b32.cont [5/16] 0.0, 128
        %2750 = vxpose.xlu0.b32.cont [6/16] 0.0, 128
        %2751 = vxpose.xlu0.b32.cont [7/16] 0.0, 128
        %2752 = vxpose.xlu0.b32.cont [8/16] 0.0, 128
        %2753 = vxpose.xlu0.b32.cont [9/16] 0.0, 128
        %2754 = vxpose.xlu0.b32.cont [10/16] 0.0, 128
        %2755 = vxpose.xlu0.b32.cont [11/16] 0.0, 128
        %2756 = vxpose.xlu0.b32.cont [12/16] 0.0, 128
        %2757 = vxpose.xlu0.b32.cont [13/16] 0.0, 128
        %2758 = vxpose.xlu0.b32.cont [14/16] 0.0, 128
        %2759 = vxpose.xlu0.b32.cont [15/16] 0.0, 128
        %2760 = vxpose.xlu0.b32.end [16/16] 0.0, 128
        %v2761 = vpop.trf.xlu0
        %v2762 = vpop.trf.xlu0
        %v2763 = vpop.trf.xlu0
        %v2764 = vpop.trf.xlu0
        %v2765 = vpop.trf.xlu0
        %v2766 = vpop.trf.xlu0
        %v2767 = vpop.trf.xlu0
        %v2768 = vpop.trf.xlu0
        %v2769 = vpop.trf.xlu0
        %v2770 = vpop.trf.xlu0
        %v2771 = vpop.trf.xlu0
        %v2772 = vpop.trf.xlu0
        %v2773 = vpop.trf.xlu0
        %v2774 = vpop.trf.xlu0
        %v2775 = vpop.trf.xlu0
        %v2776 = vpop.trf.xlu0
        %2777 = vxpose.xlu0.b32.start [1/16] %v2648, 128
        %2778 = vxpose.xlu0.b32.cont [2/16] 0.0, 128
        %2779 = vxpose.xlu0.b32.cont [3/16] 0.0, 128
        %2780 = vxpose.xlu0.b32.cont [4/16] 0.0, 128
        %2781 = vxpose.xlu0.b32.cont [5/16] 0.0, 128
        %2782 = vxpose.xlu0.b32.cont [6/16] 0.0, 128
        %2783 = vxpose.xlu0.b32.cont [7/16] 0.0, 128
        %2784 = vxpose.xlu0.b32.cont [8/16] 0.0, 128
        %2785 = vxpose.xlu0.b32.cont [9/16] 0.0, 128
        %2786 = vxpose.xlu0.b32.cont [10/16] 0.0, 128
        %2787 = vxpose.xlu0.b32.cont [11/16] 0.0, 128
        %2788 = vxpose.xlu0.b32.cont [12/16] 0.0, 128
        %2789 = vxpose.xlu0.b32.cont [13/16] 0.0, 128
        %2790 = vxpose.xlu0.b32.cont [14/16] 0.0, 128
        %2791 = vxpose.xlu0.b32.cont [15/16] 0.0, 128
        %2792 = vxpose.xlu0.b32.end [16/16] 0.0, 128
        %v2793 = vpop.trf.xlu0
        %v2794 = vpop.trf.xlu0
        %v2795 = vpop.trf.xlu0
        %v2796 = vpop.trf.xlu0
        %v2797 = vpop.trf.xlu0
        %v2798 = vpop.trf.xlu0
        %v2799 = vpop.trf.xlu0
        %v2800 = vpop.trf.xlu0
        %v2801 = vpop.trf.xlu0
        %v2802 = vpop.trf.xlu0
        %v2803 = vpop.trf.xlu0
        %v2804 = vpop.trf.xlu0
        %v2805 = vpop.trf.xlu0
        %v2806 = vpop.trf.xlu0
        %v2807 = vpop.trf.xlu0
        %v2808 = vpop.trf.xlu0
        %2809 = vxpose.xlu0.b32.start [1/16] %v2694, 128
        %2810 = vxpose.xlu0.b32.cont [2/16] 0.0, 128
        %2811 = vxpose.xlu0.b32.cont [3/16] 0.0, 128
        %2812 = vxpose.xlu0.b32.cont [4/16] 0.0, 128
        %2813 = vxpose.xlu0.b32.cont [5/16] 0.0, 128
        %2814 = vxpose.xlu0.b32.cont [6/16] 0.0, 128
        %2815 = vxpose.xlu0.b32.cont [7/16] 0.0, 128
        %2816 = vxpose.xlu0.b32.cont [8/16] 0.0, 128
        %2817 = vxpose.xlu0.b32.cont [9/16] 0.0, 128
        %2818 = vxpose.xlu0.b32.cont [10/16] 0.0, 128
        %2819 = vxpose.xlu0.b32.cont [11/16] 0.0, 128
        %2820 = vxpose.xlu0.b32.cont [12/16] 0.0, 128
        %2821 = vxpose.xlu0.b32.cont [13/16] 0.0, 128
        %2822 = vxpose.xlu0.b32.cont [14/16] 0.0, 128
        %2823 = vxpose.xlu0.b32.cont [15/16] 0.0, 128
        %2824 = vxpose.xlu0.b32.end [16/16] 0.0, 128
        %v2825 = vpop.trf.xlu0
        %v2826 = vpop.trf.xlu0
        %v2827 = vpop.trf.xlu0
        %v2828 = vpop.trf.xlu0
        %v2829 = vpop.trf.xlu0
        %v2830 = vpop.trf.xlu0
        %v2831 = vpop.trf.xlu0
        %v2832 = vpop.trf.xlu0
        %v2833 = vpop.trf.xlu0
        %v2834 = vpop.trf.xlu0
        %v2835 = vpop.trf.xlu0
        %v2836 = vpop.trf.xlu0
        %v2837 = vpop.trf.xlu0
        %v2838 = vpop.trf.xlu0
        %v2839 = vpop.trf.xlu0
        %v2840 = vpop.trf.xlu0
        %2841 = vxpose.xlu0.b32.start [1/16] %v2740, 128
        %2842 = vxpose.xlu0.b32.cont [2/16] 0.0, 128
        %2843 = vxpose.xlu0.b32.cont [3/16] 0.0, 128
        %2844 = vxpose.xlu0.b32.cont [4/16] 0.0, 128
        %2845 = vxpose.xlu0.b32.cont [5/16] 0.0, 128
        %2846 = vxpose.xlu0.b32.cont [6/16] 0.0, 128
        %2847 = vxpose.xlu0.b32.cont [7/16] 0.0, 128
        %2848 = vxpose.xlu0.b32.cont [8/16] 0.0, 128
        %2849 = vxpose.xlu0.b32.cont [9/16] 0.0, 128
        %2850 = vxpose.xlu0.b32.cont [10/16] 0.0, 128
        %2851 = vxpose.xlu0.b32.cont [11/16] 0.0, 128
        %2852 = vxpose.xlu0.b32.cont [12/16] 0.0, 128
        %2853 = vxpose.xlu0.b32.cont [13/16] 0.0, 128
        %2854 = vxpose.xlu0.b32.cont [14/16] 0.0, 128
        %2855 = vxpose.xlu0.b32.cont [15/16] 0.0, 128
        %2856 = vxpose.xlu0.b32.end [16/16] 0.0, 128
        %v2857 = vpop.trf.xlu0
        %v2858 = vpop.trf.xlu0
        %v2859 = vpop.trf.xlu0
        %v2860 = vpop.trf.xlu0
        %v2861 = vpop.trf.xlu0
        %v2862 = vpop.trf.xlu0
        %v2863 = vpop.trf.xlu0
        %v2864 = vpop.trf.xlu0
        %v2865 = vpop.trf.xlu0
        %v2866 = vpop.trf.xlu0
        %v2867 = vpop.trf.xlu0
        %v2868 = vpop.trf.xlu0
        %v2869 = vpop.trf.xlu0
        %v2870 = vpop.trf.xlu0
        %v2871 = vpop.trf.xlu0
        %v2872 = vpop.trf.xlu0
        %v2873 = vcombine.low %v2761, %v2825
        %v2874 = vcombine.high %v2761, %v2825
        %v2876 = vunpack.c.l.s4 1983009808
        %v2877 = vunpack.c.0.s8 %v2876
        %v2878 = vlaneseq
        %v2879 = vshrl.u32 %v2878, 7
        %v2880 = vsub.s32 %v2877, %v2879
        %v2881 = vrot.slane %v2873, %v2880
        %v2883 = vunpack.c.l.s4 1983009808
        %v2884 = vunpack.c.0.s8 %v2883
        %v2885 = vlaneseq
        %v2886 = vshrl.u32 %v2885, 7
        %v2887 = vsub.s32 %v2884, %v2886
        %v2888 = vrot.slane %v2874, %v2887
        %v2889 = vcombine.low %v2793, %v2857
        %v2890 = vcombine.high %v2793, %v2857
        %v2892 = vunpack.c.l.s4 1983009808
        %v2893 = vunpack.c.0.s8 %v2892
        %v2894 = vlaneseq
        %v2895 = vshrl.u32 %v2894, 7
        %v2896 = vsub.s32 %v2893, %v2895
        %v2897 = vrot.slane %v2889, %v2896
        %v2899 = vunpack.c.l.s4 1983009808
        %v2900 = vunpack.c.0.s8 %v2899
        %v2901 = vlaneseq
        %v2902 = vshrl.u32 %v2901, 7
        %v2903 = vsub.s32 %v2900, %v2902
        %v2904 = vrot.slane %v2890, %v2903
        %v2905 = vcombine.low %v2881, %v2897
        %v2906 = vcombine.high %v2881, %v2897
        %v2908 = vunpack.c.l.s4 1934713408
        %v2909 = vunpack.c.0.s8 %v2908
        %v2910 = vlaneseq
        %v2911 = vshrl.u32 %v2910, 7
        %v2912 = vsub.s32 %v2909, %v2911
        %v2913 = vrot.slane %v2905, %v2912
        %v2915 = vunpack.c.l.s4 1934713408
        %v2916 = vunpack.c.0.s8 %v2915
        %v2917 = vlaneseq
        %v2918 = vshrl.u32 %v2917, 7
        %v2919 = vsub.s32 %v2916, %v2918
        %v2920 = vrot.slane %v2906, %v2919
        %v2921 = vcombine.low %v2888, %v2904
        %v2922 = vcombine.high %v2888, %v2904
        %v2924 = vunpack.c.l.s4 1934713408
        %v2925 = vunpack.c.0.s8 %v2924
        %v2926 = vlaneseq
        %v2927 = vshrl.u32 %v2926, 7
        %v2928 = vsub.s32 %v2925, %v2927
        %v2929 = vrot.slane %v2921, %v2928
        %v2931 = vunpack.c.l.s4 1934713408
        %v2932 = vunpack.c.0.s8 %v2931
        %v2933 = vlaneseq
        %v2934 = vshrl.u32 %v2933, 7
        %v2935 = vsub.s32 %v2932, %v2934
        %v2936 = vrot.slane %v2922, %v2935
        %v2937 = vcombine.high %v2913, 0.0
        %v2938 = vcombine.high %v2920, 0.0
        %v2939 = vcombine.high %v2929, 0.0
        %v2940 = vcombine.high %v2936, 0.0
        %v2941 = vcombine.low %v2913, %v2920
        %v2943 = vunpack.c.l.s4 1983009808
        %v2944 = vunpack.c.0.s8 %v2943
        %v2945 = vlaneseq
        %v2946 = vshrl.u32 %v2945, 7
        %v2947 = vsub.s32 %v2944, %v2946
        %v2948 = vrot.slane %v2941, %v2947
        %v2949 = vcombine.low %v2937, %v2938
        %v2951 = vunpack.c.l.s4 1983009808
        %v2952 = vunpack.c.0.s8 %v2951
        %v2953 = vlaneseq
        %v2954 = vshrl.u32 %v2953, 7
        %v2955 = vsub.s32 %v2952, %v2954
        %v2956 = vrot.slane %v2949, %v2955
        %v2957 = vcombine.low %v2929, %v2936
        %v2959 = vunpack.c.l.s4 1983009808
        %v2960 = vunpack.c.0.s8 %v2959
        %v2961 = vlaneseq
        %v2962 = vshrl.u32 %v2961, 7
        %v2963 = vsub.s32 %v2960, %v2962
        %v2964 = vrot.slane %v2957, %v2963
        %v2965 = vcombine.low %v2939, %v2940
        %v2967 = vunpack.c.l.s4 1983009808
        %v2968 = vunpack.c.0.s8 %v2967
        %v2969 = vlaneseq
        %v2970 = vshrl.u32 %v2969, 7
        %v2971 = vsub.s32 %v2968, %v2970
        %v2972 = vrot.slane %v2965, %v2971
        %v2973 = vcombine.low %v2948, %v2956
        %v2974 = vcombine.high %v2948, %v2956
        %v2976 = vunpack.c.l.s4 1934713408
        %v2977 = vunpack.c.0.s8 %v2976
        %v2978 = vlaneseq
        %v2979 = vshrl.u32 %v2978, 7
        %v2980 = vsub.s32 %v2977, %v2979
        %v2981 = vrot.slane %v2973, %v2980
        %v2983 = vunpack.c.l.s4 1934713408
        %v2984 = vunpack.c.0.s8 %v2983
        %v2985 = vlaneseq
        %v2986 = vshrl.u32 %v2985, 7
        %v2987 = vsub.s32 %v2984, %v2986
        %v2988 = vrot.slane %v2974, %v2987
        %v2989 = vcombine.low %v2964, %v2972
        %v2990 = vcombine.high %v2964, %v2972
        %v2992 = vunpack.c.l.s4 1934713408
        %v2993 = vunpack.c.0.s8 %v2992
        %v2994 = vlaneseq
        %v2995 = vshrl.u32 %v2994, 7
        %v2996 = vsub.s32 %v2993, %v2995
        %v2997 = vrot.slane %v2989, %v2996
        %v2999 = vunpack.c.l.s4 1934713408
        %v3000 = vunpack.c.0.s8 %v2999
        %v3001 = vlaneseq
        %v3002 = vshrl.u32 %v3001, 7
        %v3003 = vsub.s32 %v3000, %v3002
        %v3004 = vrot.slane %v2990, %v3003
        %v3005 = vcombine.low %v2981, %v2997
        %v3006 = vcombine.high %v2981, %v2997
        %v3007 = vcombine.low %v2988, %v3004
        %v3008 = vcombine.high %v2988, %v3004
        %3010 = vrot.lane.b32.xlu0 %v3006, 8
        %v3011 = vpop.permute.xlu0 %3010
        %3014 = vrot.lane.b32.xlu0 %v3007, 16
        %v3015 = vpop.permute.xlu0 %3014
        %3018 = vrot.lane.b32.xlu0 %v3008, 24
        %v3019 = vpop.permute.xlu0 %3018
        %v3021 = vsel %vm1902, %v3005, %v3011
        %vm3022 = vcmask 130048
        %v3023 = vsel %vm3022, %v3021, %v3015
        %vm3024 = vcmask 195584
        %v3025 = vsel %vm3024, %v3023, %v3019
        %3026 = vst.msk [vmem:[%s1038] sm:$0xff] %vm1902, %v2132
        %3027 = vst.msk [vmem:[%s1038 + $0x8] sm:$0xff] %vm1902, %v2134
        %3028 = vst.msk [vmem:[%s1038 + $0x10] sm:$0xff] %vm1902, %v2136
        %3029 = vst.msk [vmem:[%s1038 + $0x18] sm:$0xff] %vm1902, %v2138
        %v3030 = vpack.c.bf16 %v3025, %v3025
        %v3031 = vld [vmem:[#allocation10] sm:$0xf]
        %v3032 = vld [vmem:[#allocation10 + $0x4] sm:$0xf]
        %v3033 = vld [vmem:[#allocation10 + $0x8] sm:$0xf]
        %v3034 = vld [vmem:[#allocation10 + $0xc] sm:$0xf]
        %v3035 = vld [vmem:[#allocation11] sm:$0x1]
        %v3037 = vlaneseq
        %v3038 = vshrl.u32 %v3037, 7
        %v3039 = vsub.s32 0, %v3038
        %v3040 = vrot.slane %v3035, %v3039
        %v3046 = vunpack.c.l.b16 %v3031
        %v3047 = vunpack.c.l.b16 %v3032
        %v3048 = vunpack.c.l.b16 %v3033
        %v3049 = vunpack.c.l.b16 %v3034
        %v3050 = vpack.c.b16 %v3047, %v3046
        %v3051 = vpack.c.b16 %v3049, %v3048
        %v3055 = vsel %vm1063, %v3030, 0
        %3057 = vmatprep.subr.bf16.mxu0 0
        %3058 = vmatpush1.bf16.msra.mxu0 0
        %3059 = vmatprep.subr.bf16.mxu0 0
        %3060 = vmatpush1.bf16.msra.mxu0 0
        %3061 = vmatprep.subr.bf16.mxu0 0
        %3062 = vmatpush1.bf16.msra.mxu0 0
        %3063 = vmatprep.subr.bf16.mxu0 0
        %3064 = vmatpush1.bf16.msra.mxu0 0
        %3065 = vmatprep.subr.bf16.mxu0 0
        %3066 = vmatpush1.bf16.msra.mxu0 0
        %3067 = vmatprep.subr.bf16.mxu0 0
        %3068 = vmatpush1.bf16.msra.mxu0 0
        %3069 = vmatprep.subr.bf16.mxu0 0
        %3070 = vmatpush1.bf16.msra.mxu0 %v3051
        %3071 = vmatprep.subr.bf16.mxu0 0
        %3072 = vmatpush1.bf16.msra.mxu0 %v3050
        %3073 = vmatprep.subr.bf16.mxu0 0
        %3074 = vmatpush2.bf16.msra.mxu0 0
        %3075 = vmatprep.subr.bf16.mxu0 0
        %3076 = vmatpush2.bf16.msra.mxu0 0
        %3077 = vmatprep.subr.bf16.mxu0 0
        %3078 = vmatpush2.bf16.msra.mxu0 0
        %3079 = vmatprep.subr.bf16.mxu0 0
        %3080 = vmatpush2.bf16.msra.mxu0 0
        %3081 = vmatprep.subr.bf16.mxu0 0
        %3082 = vmatpush2.bf16.msra.mxu0 0
        %3083 = vmatprep.subr.bf16.mxu0 0
        %3084 = vmatpush2.bf16.msra.mxu0 0
        %3085 = vmatprep.subr.bf16.mxu0 0
        %3086 = vmatpush2.bf16.msra.mxu0 0
        %3087 = vmatprep.subr.bf16.mxu0 0
        %3088 = vmatpush2.bf16.msra.mxu0 0
        %3089 = vmatprep.mubr.bf16.mxu0 0
        %3090 = vmatmul.mubr.bf16.gmra.mxu0 %v3055
        %v3091 = vpop.f32.mrf.mxu0
        %v3092 = vadd.f32 %v3040, %v3091
        %v3093 = vpop.f32.mrf.mxu0
        %v3094 = vpop.f32.mrf.mxu0
        %v3095 = vpop.f32.mrf.mxu0
        %3096 = vdwg.mxu0
        %v3097 = vadd.f32 %v1060, %v3092
        %v3098 = vld [vmem:[#allocation13] sm:$0x1]
        %v3099 = vld [vmem:[#allocation14] sm:$0x1]
        %v3100 = vsel %vm1063, %v3097, 0.0
        %3101 = vadd.xlane.f32.xlu0 %v3100
        %v3102 = vpop.xlane.xlu0 %3101
        %v3103 = vmul.f32 %v3102, %v1067
        %v3104 = vsub.f32 %v3097, %v3103
        %v3105 = vmul.f32 %v3104, %v3104
        %v3106 = vsel %vm1063, %v3105, 0.0
        %3107 = vadd.xlane.f32.xlu0 %v3106
        %v3108 = vpop.xlane.xlu0 %3107
        %v3109 = vmul.f32 %v3108, %v1067
        %v3110 = vadd.f32 %v3109, 1e-06
        %v3111 = vrsqrt.pop %v3110
        %v3112 = vmul.f32 %v3104, %v3111
        %v3114 = vlaneseq
        %v3115 = vshrl.u32 %v3114, 7
        %v3116 = vsub.s32 0, %v3115
        %v3117 = vrot.slane %v3098, %v3116
        %v3119 = vmul.f32 %v3112, %v3117
        %v3121 = vlaneseq
        %v3122 = vshrl.u32 %v3121, 7
        %v3123 = vsub.s32 0, %v3122
        %v3124 = vrot.slane %v3099, %v3123
        %v3126 = vadd.f32 %v3119, %v3124
        %v3127 = vpack.c.bf16 %v3126, %v3126
        %v3128 = vld [vmem:[%s12] sm:$0xf]
        %v3129 = vld [vmem:[%s12 + $0x4] sm:$0xf]
        %v3130 = vld [vmem:[%s12 + $0x8] sm:$0xf]
        %v3131 = vld [vmem:[%s12 + $0xc] sm:$0xf]
        %v3132 = vld [vmem:[#allocation16] sm:$0x1]
        %v3134 = vlaneseq
        %v3135 = vshrl.u32 %v3134, 7
        %v3136 = vsub.s32 0, %v3135
        %v3137 = vrot.slane %v3132, %v3136
        %v3143 = vunpack.c.l.b16 %v3128
        %v3144 = vunpack.c.l.b16 %v3129
        %v3145 = vunpack.c.l.b16 %v3130
        %v3146 = vunpack.c.l.b16 %v3131
        %v3147 = vpack.c.b16 %v3144, %v3143
        %v3148 = vpack.c.b16 %v3146, %v3145
        %v3152 = vsel %vm1063, %v3127, 0
        %3154 = vmatprep.subr.bf16.mxu0 0
        %3155 = vmatpush1.bf16.msra.mxu0 0
        %3156 = vmatprep.subr.bf16.mxu0 0
        %3157 = vmatpush1.bf16.msra.mxu0 0
        %3158 = vmatprep.subr.bf16.mxu0 0
        %3159 = vmatpush1.bf16.msra.mxu0 0
        %3160 = vmatprep.subr.bf16.mxu0 0
        %3161 = vmatpush1.bf16.msra.mxu0 0
        %3162 = vmatprep.subr.bf16.mxu0 0
        %3163 = vmatpush1.bf16.msra.mxu0 0
        %3164 = vmatprep.subr.bf16.mxu0 0
        %3165 = vmatpush1.bf16.msra.mxu0 0
        %3166 = vmatprep.subr.bf16.mxu0 0
        %3167 = vmatpush1.bf16.msra.mxu0 %v3148
        %3168 = vmatprep.subr.bf16.mxu0 0
        %3169 = vmatpush1.bf16.msra.mxu0 %v3147
        %3170 = vmatprep.subr.bf16.mxu0 0
        %3171 = vmatpush2.bf16.msra.mxu0 0
        %3172 = vmatprep.subr.bf16.mxu0 0
        %3173 = vmatpush2.bf16.msra.mxu0 0
        %3174 = vmatprep.subr.bf16.mxu0 0
        %3175 = vmatpush2.bf16.msra.mxu0 0
        %3176 = vmatprep.subr.bf16.mxu0 0
        %3177 = vmatpush2.bf16.msra.mxu0 0
        %3178 = vmatprep.subr.bf16.mxu0 0
        %3179 = vmatpush2.bf16.msra.mxu0 0
        %3180 = vmatprep.subr.bf16.mxu0 0
        %3181 = vmatpush2.bf16.msra.mxu0 0
        %3182 = vmatprep.subr.bf16.mxu0 0
        %3183 = vmatpush2.bf16.msra.mxu0 0
        %3184 = vmatprep.subr.bf16.mxu0 0
        %3185 = vmatpush2.bf16.msra.mxu0 0
        %3186 = vmatprep.mubr.bf16.mxu0 0
        %3187 = vmatmul.mubr.bf16.gmra.mxu0 %v3152
        %v3188 = vpop.f32.mrf.mxu0
        %v3189 = vadd.f32 %v3137, %v3188
        %v3190 = vpop.f32.mrf.mxu0
        %v3191 = vpop.f32.mrf.mxu0
        %v3192 = vpop.f32.mrf.mxu0
        %3193 = vdwg.mxu0
        %v3194 = vld [vmem:[%s1054] sm:$0xff]
        %v3195 = vld [vmem:[%s1054 + $0x8] sm:$0xff]
        %v3196 = vpack.c.bf16 %v3195, %v3194
        %v3197 = vld [vmem:[#allocation17] sm:$0xf]
        %v3198 = vld [vmem:[#allocation17 + $0x4] sm:$0xf]
        %v3199 = vld [vmem:[#allocation17 + $0x8] sm:$0xf]
        %v3200 = vld [vmem:[#allocation17 + $0xc] sm:$0xf]
        %v3201 = vld [vmem:[#allocation19] sm:$0x1]
        %v3203 = vlaneseq
        %v3204 = vshrl.u32 %v3203, 7
        %v3205 = vsub.s32 0, %v3204
        %v3206 = vrot.slane %v3201, %v3205
        %v3212 = vunpack.c.l.b16 %v3197
        %v3213 = vunpack.c.l.b16 %v3198
        %v3214 = vunpack.c.l.b16 %v3199
        %v3215 = vunpack.c.l.b16 %v3200
        %v3216 = vpack.c.b16 %v3213, %v3212
        %v3217 = vpack.c.b16 %v3215, %v3214
        %v3221 = vsel %vm1063, %v3196, 0
        %3223 = vmatprep.subr.bf16.mxu0 0
        %3224 = vmatpush1.bf16.msra.mxu0 0
        %3225 = vmatprep.subr.bf16.mxu0 0
        %3226 = vmatpush1.bf16.msra.mxu0 0
        %3227 = vmatprep.subr.bf16.mxu0 0
        %3228 = vmatpush1.bf16.msra.mxu0 0
        %3229 = vmatprep.subr.bf16.mxu0 0
        %3230 = vmatpush1.bf16.msra.mxu0 0
        %3231 = vmatprep.subr.bf16.mxu0 0
        %3232 = vmatpush1.bf16.msra.mxu0 0
        %3233 = vmatprep.subr.bf16.mxu0 0
        %3234 = vmatpush1.bf16.msra.mxu0 0
        %3235 = vmatprep.subr.bf16.mxu0 0
        %3236 = vmatpush1.bf16.msra.mxu0 %v3217
        %3237 = vmatprep.subr.bf16.mxu0 0
        %3238 = vmatpush1.bf16.msra.mxu0 %v3216
        %3239 = vmatprep.subr.bf16.mxu0 0
        %3240 = vmatpush2.bf16.msra.mxu0 0
        %3241 = vmatprep.subr.bf16.mxu0 0
        %3242 = vmatpush2.bf16.msra.mxu0 0
        %3243 = vmatprep.subr.bf16.mxu0 0
        %3244 = vmatpush2.bf16.msra.mxu0 0
        %3245 = vmatprep.subr.bf16.mxu0 0
        %3246 = vmatpush2.bf16.msra.mxu0 0
        %3247 = vmatprep.subr.bf16.mxu0 0
        %3248 = vmatpush2.bf16.msra.mxu0 0
        %3249 = vmatprep.subr.bf16.mxu0 0
        %3250 = vmatpush2.bf16.msra.mxu0 0
        %3251 = vmatprep.subr.bf16.mxu0 0
        %3252 = vmatpush2.bf16.msra.mxu0 0
        %3253 = vmatprep.subr.bf16.mxu0 0
        %3254 = vmatpush2.bf16.msra.mxu0 0
        %3255 = vmatprep.mubr.bf16.mxu0 0
        %3256 = vmatmul.mubr.bf16.gmra.mxu0 %v3221
        %v3257 = vpop.f32.mrf.mxu0
        %v3258 = vadd.f32 %v3206, %v3257
        %v3259 = vpop.f32.mrf.mxu0
        %v3260 = vpop.f32.mrf.mxu0
        %v3261 = vadd.f32 %v3206, %v3260
        %v3262 = vpop.f32.mrf.mxu0
        %3263 = vdwg.mxu0
        %v3264 = vld [vmem:[%s899] sm:$0x1]
        %3266 = vrot.lane.b32.xlu0 %v3189, 120
        %v3267 = vpop.permute.xlu0 %3266
        %3269 = vrot.lane.b32.xlu0 %v3189, 112
        %v3270 = vpop.permute.xlu0 %3269
        %3272 = vrot.lane.b32.xlu0 %v3189, 104
        %v3273 = vpop.permute.xlu0 %3272
        %v3275 = vcombine.low %v3189, %v3270
        %v3276 = vcombine.high %v3189, %v3270
        %v3278 = vunpack.c.l.s4 1983009808
        %v3279 = vunpack.c.0.s8 %v3278
        %v3280 = vlaneseq
        %v3281 = vshrl.u32 %v3280, 7
        %v3282 = vsub.s32 %v3279, %v3281
        %v3283 = vrot.slane %v3275, %v3282
        %v3285 = vunpack.c.l.s4 1983009808
        %v3286 = vunpack.c.0.s8 %v3285
        %v3287 = vlaneseq
        %v3288 = vshrl.u32 %v3287, 7
        %v3289 = vsub.s32 %v3286, %v3288
        %v3290 = vrot.slane %v3276, %v3289
        %v3291 = vcombine.low %v3267, %v3273
        %v3292 = vcombine.high %v3267, %v3273
        %v3294 = vunpack.c.l.s4 1983009808
        %v3295 = vunpack.c.0.s8 %v3294
        %v3296 = vlaneseq
        %v3297 = vshrl.u32 %v3296, 7
        %v3298 = vsub.s32 %v3295, %v3297
        %v3299 = vrot.slane %v3291, %v3298
        %v3301 = vunpack.c.l.s4 1983009808
        %v3302 = vunpack.c.0.s8 %v3301
        %v3303 = vlaneseq
        %v3304 = vshrl.u32 %v3303, 7
        %v3305 = vsub.s32 %v3302, %v3304
        %v3306 = vrot.slane %v3292, %v3305
        %v3307 = vcombine.low %v3283, %v3299
        %v3308 = vcombine.high %v3283, %v3299
        %v3310 = vunpack.c.l.s4 1934713408
        %v3311 = vunpack.c.0.s8 %v3310
        %v3312 = vlaneseq
        %v3313 = vshrl.u32 %v3312, 7
        %v3314 = vsub.s32 %v3311, %v3313
        %v3315 = vrot.slane %v3307, %v3314
        %v3317 = vunpack.c.l.s4 1934713408
        %v3318 = vunpack.c.0.s8 %v3317
        %v3319 = vlaneseq
        %v3320 = vshrl.u32 %v3319, 7
        %v3321 = vsub.s32 %v3318, %v3320
        %v3322 = vrot.slane %v3308, %v3321
        %v3323 = vcombine.low %v3290, %v3306
        %v3324 = vcombine.high %v3290, %v3306
        %v3326 = vunpack.c.l.s4 1934713408
        %v3327 = vunpack.c.0.s8 %v3326
        %v3328 = vlaneseq
        %v3329 = vshrl.u32 %v3328, 7
        %v3330 = vsub.s32 %v3327, %v3329
        %v3331 = vrot.slane %v3323, %v3330
        %v3333 = vunpack.c.l.s4 1934713408
        %v3334 = vunpack.c.0.s8 %v3333
        %v3335 = vlaneseq
        %v3336 = vshrl.u32 %v3335, 7
        %v3337 = vsub.s32 %v3334, %v3336
        %v3338 = vrot.slane %v3324, %v3337
        %v3339 = vcombine.high %v3315, 0.0
        %v3340 = vcombine.high %v3322, 0.0
        %v3341 = vcombine.high %v3331, 0.0
        %v3342 = vcombine.high %v3338, 0.0
        %v3343 = vpack.c.bf16 %v3315, %v3315
        %v3344 = vpack.c.bf16 %v3339, %v3339
        %v3345 = vpack.c.bf16 %v3322, %v3322
        %v3346 = vpack.c.bf16 %v3340, %v3340
        %v3347 = vpack.c.bf16 %v3331, %v3331
        %v3348 = vpack.c.bf16 %v3341, %v3341
        %v3349 = vpack.c.bf16 %v3338, %v3338
        %v3350 = vpack.c.bf16 %v3342, %v3342
        %3353 = vrot.lane.b32.xlu0 %v3258, 120
        %v3354 = vpop.permute.xlu0 %3353
        %3355 = vrot.lane.b32.xlu0 %v3261, 120
        %v3356 = vpop.permute.xlu0 %3355
        %3359 = vrot.lane.b32.xlu0 %v3258, 112
        %v3360 = vpop.permute.xlu0 %3359
        %3361 = vrot.lane.b32.xlu0 %v3261, 112
        %v3362 = vpop.permute.xlu0 %3361
        %3365 = vrot.lane.b32.xlu0 %v3258, 104
        %v3366 = vpop.permute.xlu0 %3365
        %3367 = vrot.lane.b32.xlu0 %v3261, 104
        %v3368 = vpop.permute.xlu0 %3367
        %v3371 = vcombine.low %v3258, %v3360
        %v3372 = vcombine.high %v3258, %v3360
        %v3374 = vunpack.c.l.s4 1983009808
        %v3375 = vunpack.c.0.s8 %v3374
        %v3376 = vlaneseq
        %v3377 = vshrl.u32 %v3376, 7
        %v3378 = vsub.s32 %v3375, %v3377
        %v3379 = vrot.slane %v3371, %v3378
        %v3381 = vunpack.c.l.s4 1983009808
        %v3382 = vunpack.c.0.s8 %v3381
        %v3383 = vlaneseq
        %v3384 = vshrl.u32 %v3383, 7
        %v3385 = vsub.s32 %v3382, %v3384
        %v3386 = vrot.slane %v3372, %v3385
        %v3387 = vcombine.low %v3354, %v3366
        %v3388 = vcombine.high %v3354, %v3366
        %v3390 = vunpack.c.l.s4 1983009808
        %v3391 = vunpack.c.0.s8 %v3390
        %v3392 = vlaneseq
        %v3393 = vshrl.u32 %v3392, 7
        %v3394 = vsub.s32 %v3391, %v3393
        %v3395 = vrot.slane %v3387, %v3394
        %v3397 = vunpack.c.l.s4 1983009808
        %v3398 = vunpack.c.0.s8 %v3397
        %v3399 = vlaneseq
        %v3400 = vshrl.u32 %v3399, 7
        %v3401 = vsub.s32 %v3398, %v3400
        %v3402 = vrot.slane %v3388, %v3401
        %v3403 = vcombine.low %v3379, %v3395
        %v3404 = vcombine.high %v3379, %v3395
        %v3406 = vunpack.c.l.s4 1934713408
        %v3407 = vunpack.c.0.s8 %v3406
        %v3408 = vlaneseq
        %v3409 = vshrl.u32 %v3408, 7
        %v3410 = vsub.s32 %v3407, %v3409
        %v3411 = vrot.slane %v3403, %v3410
        %v3413 = vunpack.c.l.s4 1934713408
        %v3414 = vunpack.c.0.s8 %v3413
        %v3415 = vlaneseq
        %v3416 = vshrl.u32 %v3415, 7
        %v3417 = vsub.s32 %v3414, %v3416
        %v3418 = vrot.slane %v3404, %v3417
        %v3419 = vcombine.low %v3386, %v3402
        %v3420 = vcombine.high %v3386, %v3402
        %v3422 = vunpack.c.l.s4 1934713408
        %v3423 = vunpack.c.0.s8 %v3422
        %v3424 = vlaneseq
        %v3425 = vshrl.u32 %v3424, 7
        %v3426 = vsub.s32 %v3423, %v3425
        %v3427 = vrot.slane %v3419, %v3426
        %v3429 = vunpack.c.l.s4 1934713408
        %v3430 = vunpack.c.0.s8 %v3429
        %v3431 = vlaneseq
        %v3432 = vshrl.u32 %v3431, 7
        %v3433 = vsub.s32 %v3430, %v3432
        %v3434 = vrot.slane %v3420, %v3433
        %v3435 = vcombine.high %v3411, 0.0
        %v3436 = vcombine.high %v3418, 0.0
        %v3437 = vcombine.high %v3427, 0.0
        %v3438 = vcombine.high %v3434, 0.0
        %v3439 = vcombine.low %v3261, %v3362
        %v3440 = vcombine.high %v3261, %v3362
        %v3442 = vunpack.c.l.s4 1983009808
        %v3443 = vunpack.c.0.s8 %v3442
        %v3444 = vlaneseq
        %v3445 = vshrl.u32 %v3444, 7
        %v3446 = vsub.s32 %v3443, %v3445
        %v3447 = vrot.slane %v3439, %v3446
        %v3449 = vunpack.c.l.s4 1983009808
        %v3450 = vunpack.c.0.s8 %v3449
        %v3451 = vlaneseq
        %v3452 = vshrl.u32 %v3451, 7
        %v3453 = vsub.s32 %v3450, %v3452
        %v3454 = vrot.slane %v3440, %v3453
        %v3455 = vcombine.low %v3356, %v3368
        %v3456 = vcombine.high %v3356, %v3368
        %v3458 = vunpack.c.l.s4 1983009808
        %v3459 = vunpack.c.0.s8 %v3458
        %v3460 = vlaneseq
        %v3461 = vshrl.u32 %v3460, 7
        %v3462 = vsub.s32 %v3459, %v3461
        %v3463 = vrot.slane %v3455, %v3462
        %v3465 = vunpack.c.l.s4 1983009808
        %v3466 = vunpack.c.0.s8 %v3465
        %v3467 = vlaneseq
        %v3468 = vshrl.u32 %v3467, 7
        %v3469 = vsub.s32 %v3466, %v3468
        %v3470 = vrot.slane %v3456, %v3469
        %v3471 = vcombine.low %v3447, %v3463
        %v3472 = vcombine.high %v3447, %v3463
        %v3474 = vunpack.c.l.s4 1934713408
        %v3475 = vunpack.c.0.s8 %v3474
        %v3476 = vlaneseq
        %v3477 = vshrl.u32 %v3476, 7
        %v3478 = vsub.s32 %v3475, %v3477
        %v3479 = vrot.slane %v3471, %v3478
        %v3481 = vunpack.c.l.s4 1934713408
        %v3482 = vunpack.c.0.s8 %v3481
        %v3483 = vlaneseq
        %v3484 = vshrl.u32 %v3483, 7
        %v3485 = vsub.s32 %v3482, %v3484
        %v3486 = vrot.slane %v3472, %v3485
        %v3487 = vcombine.low %v3454, %v3470
        %v3488 = vcombine.high %v3454, %v3470
        %v3490 = vunpack.c.l.s4 1934713408
        %v3491 = vunpack.c.0.s8 %v3490
        %v3492 = vlaneseq
        %v3493 = vshrl.u32 %v3492, 7
        %v3494 = vsub.s32 %v3491, %v3493
        %v3495 = vrot.slane %v3487, %v3494
        %v3497 = vunpack.c.l.s4 1934713408
        %v3498 = vunpack.c.0.s8 %v3497
        %v3499 = vlaneseq
        %v3500 = vshrl.u32 %v3499, 7
        %v3501 = vsub.s32 %v3498, %v3500
        %v3502 = vrot.slane %v3488, %v3501
        %v3503 = vcombine.high %v3479, 0.0
        %v3504 = vcombine.high %v3486, 0.0
        %v3505 = vcombine.high %v3495, 0.0
        %v3506 = vcombine.high %v3502, 0.0
        %v3507 = vpack.c.bf16 %v3411, %v3411
        %v3508 = vpack.c.bf16 %v3435, %v3435
        %v3509 = vpack.c.bf16 %v3418, %v3418
        %v3510 = vpack.c.bf16 %v3436, %v3436
        %v3511 = vpack.c.bf16 %v3427, %v3427
        %v3512 = vpack.c.bf16 %v3437, %v3437
        %v3513 = vpack.c.bf16 %v3434, %v3434
        %v3514 = vpack.c.bf16 %v3438, %v3438
        %v3515 = vpack.c.bf16 %v3479, %v3479
        %v3516 = vpack.c.bf16 %v3503, %v3503
        %v3517 = vpack.c.bf16 %v3486, %v3486
        %v3518 = vpack.c.bf16 %v3504, %v3504
        %v3519 = vpack.c.bf16 %v3495, %v3495
        %v3520 = vpack.c.bf16 %v3505, %v3505
        %v3521 = vpack.c.bf16 %v3502, %v3502
        %v3522 = vpack.c.bf16 %v3506, %v3506
        %3523 = vrot.lane.b32.xlu0 %v3258, 96
        %v3524 = vpop.permute.xlu0 %3523
        %3525 = vrot.lane.b32.xlu0 %v3261, 96
        %v3526 = vpop.permute.xlu0 %3525
        %3527 = vrot.lane.b32.xlu0 %v3354, 96
        %v3528 = vpop.permute.xlu0 %3527
        %3529 = vrot.lane.b32.xlu0 %v3356, 96
        %v3530 = vpop.permute.xlu0 %3529
        %3531 = vrot.lane.b32.xlu0 %v3360, 96
        %v3532 = vpop.permute.xlu0 %3531
        %3533 = vrot.lane.b32.xlu0 %v3362, 96
        %v3534 = vpop.permute.xlu0 %3533
        %3535 = vrot.lane.b32.xlu0 %v3366, 96
        %v3536 = vpop.permute.xlu0 %3535
        %3537 = vrot.lane.b32.xlu0 %v3368, 96
        %v3538 = vpop.permute.xlu0 %3537
        %v3547 = vcombine.low %v3524, %v3532
        %v3548 = vcombine.high %v3524, %v3532
        %v3550 = vunpack.c.l.s4 1983009808
        %v3551 = vunpack.c.0.s8 %v3550
        %v3552 = vlaneseq
        %v3553 = vshrl.u32 %v3552, 7
        %v3554 = vsub.s32 %v3551, %v3553
        %v3555 = vrot.slane %v3547, %v3554
        %v3557 = vunpack.c.l.s4 1983009808
        %v3558 = vunpack.c.0.s8 %v3557
        %v3559 = vlaneseq
        %v3560 = vshrl.u32 %v3559, 7
        %v3561 = vsub.s32 %v3558, %v3560
        %v3562 = vrot.slane %v3548, %v3561
        %v3563 = vcombine.low %v3528, %v3536
        %v3564 = vcombine.high %v3528, %v3536
        %v3566 = vunpack.c.l.s4 1983009808
        %v3567 = vunpack.c.0.s8 %v3566
        %v3568 = vlaneseq
        %v3569 = vshrl.u32 %v3568, 7
        %v3570 = vsub.s32 %v3567, %v3569
        %v3571 = vrot.slane %v3563, %v3570
        %v3573 = vunpack.c.l.s4 1983009808
        %v3574 = vunpack.c.0.s8 %v3573
        %v3575 = vlaneseq
        %v3576 = vshrl.u32 %v3575, 7
        %v3577 = vsub.s32 %v3574, %v3576
        %v3578 = vrot.slane %v3564, %v3577
        %v3579 = vcombine.low %v3555, %v3571
        %v3580 = vcombine.high %v3555, %v3571
        %v3582 = vunpack.c.l.s4 1934713408
        %v3583 = vunpack.c.0.s8 %v3582
        %v3584 = vlaneseq
        %v3585 = vshrl.u32 %v3584, 7
        %v3586 = vsub.s32 %v3583, %v3585
        %v3587 = vrot.slane %v3579, %v3586
        %v3589 = vunpack.c.l.s4 1934713408
        %v3590 = vunpack.c.0.s8 %v3589
        %v3591 = vlaneseq
        %v3592 = vshrl.u32 %v3591, 7
        %v3593 = vsub.s32 %v3590, %v3592
        %v3594 = vrot.slane %v3580, %v3593
        %v3595 = vcombine.low %v3562, %v3578
        %v3596 = vcombine.high %v3562, %v3578
        %v3598 = vunpack.c.l.s4 1934713408
        %v3599 = vunpack.c.0.s8 %v3598
        %v3600 = vlaneseq
        %v3601 = vshrl.u32 %v3600, 7
        %v3602 = vsub.s32 %v3599, %v3601
        %v3603 = vrot.slane %v3595, %v3602
        %v3605 = vunpack.c.l.s4 1934713408
        %v3606 = vunpack.c.0.s8 %v3605
        %v3607 = vlaneseq
        %v3608 = vshrl.u32 %v3607, 7
        %v3609 = vsub.s32 %v3606, %v3608
        %v3610 = vrot.slane %v3596, %v3609
        %v3611 = vcombine.high %v3587, 0.0
        %v3612 = vcombine.high %v3594, 0.0
        %v3613 = vcombine.high %v3603, 0.0
        %v3614 = vcombine.high %v3610, 0.0
        %v3615 = vcombine.low %v3526, %v3534
        %v3616 = vcombine.high %v3526, %v3534
        %v3618 = vunpack.c.l.s4 1983009808
        %v3619 = vunpack.c.0.s8 %v3618
        %v3620 = vlaneseq
        %v3621 = vshrl.u32 %v3620, 7
        %v3622 = vsub.s32 %v3619, %v3621
        %v3623 = vrot.slane %v3615, %v3622
        %v3625 = vunpack.c.l.s4 1983009808
        %v3626 = vunpack.c.0.s8 %v3625
        %v3627 = vlaneseq
        %v3628 = vshrl.u32 %v3627, 7
        %v3629 = vsub.s32 %v3626, %v3628
        %v3630 = vrot.slane %v3616, %v3629
        %v3631 = vcombine.low %v3530, %v3538
        %v3632 = vcombine.high %v3530, %v3538
        %v3634 = vunpack.c.l.s4 1983009808
        %v3635 = vunpack.c.0.s8 %v3634
        %v3636 = vlaneseq
        %v3637 = vshrl.u32 %v3636, 7
        %v3638 = vsub.s32 %v3635, %v3637
        %v3639 = vrot.slane %v3631, %v3638
        %v3641 = vunpack.c.l.s4 1983009808
        %v3642 = vunpack.c.0.s8 %v3641
        %v3643 = vlaneseq
        %v3644 = vshrl.u32 %v3643, 7
        %v3645 = vsub.s32 %v3642, %v3644
        %v3646 = vrot.slane %v3632, %v3645
        %v3647 = vcombine.low %v3623, %v3639
        %v3648 = vcombine.high %v3623, %v3639
        %v3650 = vunpack.c.l.s4 1934713408
        %v3651 = vunpack.c.0.s8 %v3650
        %v3652 = vlaneseq
        %v3653 = vshrl.u32 %v3652, 7
        %v3654 = vsub.s32 %v3651, %v3653
        %v3655 = vrot.slane %v3647, %v3654
        %v3657 = vunpack.c.l.s4 1934713408
        %v3658 = vunpack.c.0.s8 %v3657
        %v3659 = vlaneseq
        %v3660 = vshrl.u32 %v3659, 7
        %v3661 = vsub.s32 %v3658, %v3660
        %v3662 = vrot.slane %v3648, %v3661
        %v3663 = vcombine.low %v3630, %v3646
        %v3664 = vcombine.high %v3630, %v3646
        %v3666 = vunpack.c.l.s4 1934713408
        %v3667 = vunpack.c.0.s8 %v3666
        %v3668 = vlaneseq
        %v3669 = vshrl.u32 %v3668, 7
        %v3670 = vsub.s32 %v3667, %v3669
        %v3671 = vrot.slane %v3663, %v3670
        %v3673 = vunpack.c.l.s4 1934713408
        %v3674 = vunpack.c.0.s8 %v3673
        %v3675 = vlaneseq
        %v3676 = vshrl.u32 %v3675, 7
        %v3677 = vsub.s32 %v3674, %v3676
        %v3678 = vrot.slane %v3664, %v3677
        %v3679 = vcombine.high %v3655, 0.0
        %v3680 = vcombine.high %v3662, 0.0
        %v3681 = vcombine.high %v3671, 0.0
        %v3682 = vcombine.high %v3678, 0.0
        %v3683 = vpack.c.bf16 %v3587, %v3587
        %v3684 = vpack.c.bf16 %v3611, %v3611
        %v3685 = vpack.c.bf16 %v3594, %v3594
        %v3686 = vpack.c.bf16 %v3612, %v3612
        %v3687 = vpack.c.bf16 %v3603, %v3603
        %v3688 = vpack.c.bf16 %v3613, %v3613
        %v3689 = vpack.c.bf16 %v3610, %v3610
        %v3690 = vpack.c.bf16 %v3614, %v3614
        %v3691 = vpack.c.bf16 %v3655, %v3655
        %v3692 = vpack.c.bf16 %v3679, %v3679
        %v3693 = vpack.c.bf16 %v3662, %v3662
        %v3694 = vpack.c.bf16 %v3680, %v3680
        %v3695 = vpack.c.bf16 %v3671, %v3671
        %v3696 = vpack.c.bf16 %v3681, %v3681
        %v3697 = vpack.c.bf16 %v3678, %v3678
        %v3698 = vpack.c.bf16 %v3682, %v3682
        %v3699 = vcombine.low %v3343, %v3347
        %v3701 = vunpack.c.l.s4 1983009808
        %v3702 = vunpack.c.0.s8 %v3701
        %v3703 = vlaneseq
        %v3704 = vshrl.u32 %v3703, 7
        %v3705 = vsub.s32 %v3702, %v3704
        %v3706 = vrot.slane %v3699, %v3705
        %v3707 = vcombine.low %v3345, %v3349
        %v3709 = vunpack.c.l.s4 1983009808
        %v3710 = vunpack.c.0.s8 %v3709
        %v3711 = vlaneseq
        %v3712 = vshrl.u32 %v3711, 7
        %v3713 = vsub.s32 %v3710, %v3712
        %v3714 = vrot.slane %v3707, %v3713
        %v3715 = vcombine.low %v3706, %v3714
        %v3717 = vunpack.c.l.s4 1934713408
        %v3718 = vunpack.c.0.s8 %v3717
        %v3719 = vlaneseq
        %v3720 = vshrl.u32 %v3719, 7
        %v3721 = vsub.s32 %v3718, %v3720
        %v3722 = vrot.slane %v3715, %v3721
        %v3723 = vcombine.high %v3722, 0
        %v3724 = vcombine.low %v3344, %v3348
        %v3726 = vunpack.c.l.s4 1983009808
        %v3727 = vunpack.c.0.s8 %v3726
        %v3728 = vlaneseq
        %v3729 = vshrl.u32 %v3728, 7
        %v3730 = vsub.s32 %v3727, %v3729
        %v3731 = vrot.slane %v3724, %v3730
        %v3732 = vcombine.low %v3346, %v3350
        %v3734 = vunpack.c.l.s4 1983009808
        %v3735 = vunpack.c.0.s8 %v3734
        %v3736 = vlaneseq
        %v3737 = vshrl.u32 %v3736, 7
        %v3738 = vsub.s32 %v3735, %v3737
        %v3739 = vrot.slane %v3732, %v3738
        %v3740 = vcombine.low %v3731, %v3739
        %v3742 = vunpack.c.l.s4 1934713408
        %v3743 = vunpack.c.0.s8 %v3742
        %v3744 = vlaneseq
        %v3745 = vshrl.u32 %v3744, 7
        %v3746 = vsub.s32 %v3743, %v3745
        %v3747 = vrot.slane %v3740, %v3746
        %v3748 = vcombine.high %v3747, 0
        %v3751 = vpack.i.b16 %v3747, %v3722
        %v3752 = vshrl.u32 %v3722, 16
        %v3753 = vshrl.u32 %v3747, 16
        %v3754 = vpack.i.b16 %v3753, %v3752
        %v3757 = vpack.i.b16 %v3748, %v3723
        %v3758 = vshrl.u32 %v3723, 16
        %v3759 = vshrl.u32 %v3748, 16
        %v3760 = vpack.i.b16 %v3759, %v3758
        %3761 = vxpose.xlu0.c.b16.start [1/8] %v3507, 128
        %3762 = vxpose.xlu0.c.b16.cont [2/8] 0, 128
        %3763 = vxpose.xlu0.c.b16.cont [3/8] 0, 128
        %3764 = vxpose.xlu0.c.b16.cont [4/8] 0, 128
        %3765 = vxpose.xlu0.c.b16.cont [5/8] 0, 128
        %3766 = vxpose.xlu0.c.b16.cont [6/8] 0, 128
        %3767 = vxpose.xlu0.c.b16.cont [7/8] 0, 128
        %3768 = vxpose.xlu0.c.b16.end [8/8] 0, 128
        %v3769 = vpop.trf.xlu0
        %v3770 = vpop.trf.xlu0
        %v3771 = vpop.trf.xlu0
        %v3772 = vpop.trf.xlu0
        %v3773 = vpop.trf.xlu0
        %v3774 = vpop.trf.xlu0
        %v3775 = vpop.trf.xlu0
        %v3776 = vpop.trf.xlu0
        %3777 = vxpose.xlu0.c.b16.start [1/8] %v3508, 128
        %3778 = vxpose.xlu0.c.b16.cont [2/8] 0, 128
        %3779 = vxpose.xlu0.c.b16.cont [3/8] 0, 128
        %3780 = vxpose.xlu0.c.b16.cont [4/8] 0, 128
        %3781 = vxpose.xlu0.c.b16.cont [5/8] 0, 128
        %3782 = vxpose.xlu0.c.b16.cont [6/8] 0, 128
        %3783 = vxpose.xlu0.c.b16.cont [7/8] 0, 128
        %3784 = vxpose.xlu0.c.b16.end [8/8] 0, 128
        %v3785 = vpop.trf.xlu0
        %v3786 = vpop.trf.xlu0
        %v3787 = vpop.trf.xlu0
        %v3788 = vpop.trf.xlu0
        %v3789 = vpop.trf.xlu0
        %v3790 = vpop.trf.xlu0
        %v3791 = vpop.trf.xlu0
        %v3792 = vpop.trf.xlu0
        %3793 = vxpose.xlu0.c.b16.start [1/8] %v3509, 128
        %3794 = vxpose.xlu0.c.b16.cont [2/8] 0, 128
        %3795 = vxpose.xlu0.c.b16.cont [3/8] 0, 128
        %3796 = vxpose.xlu0.c.b16.cont [4/8] 0, 128
        %3797 = vxpose.xlu0.c.b16.cont [5/8] 0, 128
        %3798 = vxpose.xlu0.c.b16.cont [6/8] 0, 128
        %3799 = vxpose.xlu0.c.b16.cont [7/8] 0, 128
        %3800 = vxpose.xlu0.c.b16.end [8/8] 0, 128
        %v3801 = vpop.trf.xlu0
        %v3802 = vpop.trf.xlu0
        %v3803 = vpop.trf.xlu0
        %v3804 = vpop.trf.xlu0
        %v3805 = vpop.trf.xlu0
        %v3806 = vpop.trf.xlu0
        %v3807 = vpop.trf.xlu0
        %v3808 = vpop.trf.xlu0
        %3809 = vxpose.xlu0.c.b16.start [1/8] %v3510, 128
        %3810 = vxpose.xlu0.c.b16.cont [2/8] 0, 128
        %3811 = vxpose.xlu0.c.b16.cont [3/8] 0, 128
        %3812 = vxpose.xlu0.c.b16.cont [4/8] 0, 128
        %3813 = vxpose.xlu0.c.b16.cont [5/8] 0, 128
        %3814 = vxpose.xlu0.c.b16.cont [6/8] 0, 128
        %3815 = vxpose.xlu0.c.b16.cont [7/8] 0, 128
        %3816 = vxpose.xlu0.c.b16.end [8/8] 0, 128
        %v3817 = vpop.trf.xlu0
        %v3818 = vpop.trf.xlu0
        %v3819 = vpop.trf.xlu0
        %v3820 = vpop.trf.xlu0
        %v3821 = vpop.trf.xlu0
        %v3822 = vpop.trf.xlu0
        %v3823 = vpop.trf.xlu0
        %v3824 = vpop.trf.xlu0
        %3825 = vxpose.xlu0.c.b16.start [1/8] %v3511, 128
        %3826 = vxpose.xlu0.c.b16.cont [2/8] 0, 128
        %3827 = vxpose.xlu0.c.b16.cont [3/8] 0, 128
        %3828 = vxpose.xlu0.c.b16.cont [4/8] 0, 128
        %3829 = vxpose.xlu0.c.b16.cont [5/8] 0, 128
        %3830 = vxpose.xlu0.c.b16.cont [6/8] 0, 128
        %3831 = vxpose.xlu0.c.b16.cont [7/8] 0, 128
        %3832 = vxpose.xlu0.c.b16.end [8/8] 0, 128
        %v3833 = vpop.trf.xlu0
        %v3834 = vpop.trf.xlu0
        %v3835 = vpop.trf.xlu0
        %v3836 = vpop.trf.xlu0
        %v3837 = vpop.trf.xlu0
        %v3838 = vpop.trf.xlu0
        %v3839 = vpop.trf.xlu0
        %v3840 = vpop.trf.xlu0
        %3841 = vxpose.xlu0.c.b16.start [1/8] %v3512, 128
        %3842 = vxpose.xlu0.c.b16.cont [2/8] 0, 128
        %3843 = vxpose.xlu0.c.b16.cont [3/8] 0, 128
        %3844 = vxpose.xlu0.c.b16.cont [4/8] 0, 128
        %3845 = vxpose.xlu0.c.b16.cont [5/8] 0, 128
        %3846 = vxpose.xlu0.c.b16.cont [6/8] 0, 128
        %3847 = vxpose.xlu0.c.b16.cont [7/8] 0, 128
        %3848 = vxpose.xlu0.c.b16.end [8/8] 0, 128
        %v3849 = vpop.trf.xlu0
        %v3850 = vpop.trf.xlu0
        %v3851 = vpop.trf.xlu0
        %v3852 = vpop.trf.xlu0
        %v3853 = vpop.trf.xlu0
        %v3854 = vpop.trf.xlu0
        %v3855 = vpop.trf.xlu0
        %v3856 = vpop.trf.xlu0
        %3857 = vxpose.xlu0.c.b16.start [1/8] %v3513, 128
        %3858 = vxpose.xlu0.c.b16.cont [2/8] 0, 128
        %3859 = vxpose.xlu0.c.b16.cont [3/8] 0, 128
        %3860 = vxpose.xlu0.c.b16.cont [4/8] 0, 128
        %3861 = vxpose.xlu0.c.b16.cont [5/8] 0, 128
        %3862 = vxpose.xlu0.c.b16.cont [6/8] 0, 128
        %3863 = vxpose.xlu0.c.b16.cont [7/8] 0, 128
        %3864 = vxpose.xlu0.c.b16.end [8/8] 0, 128
        %v3865 = vpop.trf.xlu0
        %v3866 = vpop.trf.xlu0
        %v3867 = vpop.trf.xlu0
        %v3868 = vpop.trf.xlu0
        %v3869 = vpop.trf.xlu0
        %v3870 = vpop.trf.xlu0
        %v3871 = vpop.trf.xlu0
        %v3872 = vpop.trf.xlu0
        %3873 = vxpose.xlu0.c.b16.start [1/8] %v3514, 128
        %3874 = vxpose.xlu0.c.b16.cont [2/8] 0, 128
        %3875 = vxpose.xlu0.c.b16.cont [3/8] 0, 128
        %3876 = vxpose.xlu0.c.b16.cont [4/8] 0, 128
        %3877 = vxpose.xlu0.c.b16.cont [5/8] 0, 128
        %3878 = vxpose.xlu0.c.b16.cont [6/8] 0, 128
        %3879 = vxpose.xlu0.c.b16.cont [7/8] 0, 128
        %3880 = vxpose.xlu0.c.b16.end [8/8] 0, 128
        %v3881 = vpop.trf.xlu0
        %v3882 = vpop.trf.xlu0
        %v3883 = vpop.trf.xlu0
        %v3884 = vpop.trf.xlu0
        %v3885 = vpop.trf.xlu0
        %v3886 = vpop.trf.xlu0
        %v3887 = vpop.trf.xlu0
        %v3888 = vpop.trf.xlu0
        %3889 = vxpose.xlu0.c.b16.start [1/8] %v3515, 128
        %3890 = vxpose.xlu0.c.b16.cont [2/8] 0, 128
        %3891 = vxpose.xlu0.c.b16.cont [3/8] 0, 128
        %3892 = vxpose.xlu0.c.b16.cont [4/8] 0, 128
        %3893 = vxpose.xlu0.c.b16.cont [5/8] 0, 128
        %3894 = vxpose.xlu0.c.b16.cont [6/8] 0, 128
        %3895 = vxpose.xlu0.c.b16.cont [7/8] 0, 128
        %3896 = vxpose.xlu0.c.b16.end [8/8] 0, 128
        %v3897 = vpop.trf.xlu0
        %v3898 = vpop.trf.xlu0
        %v3899 = vpop.trf.xlu0
        %v3900 = vpop.trf.xlu0
        %v3901 = vpop.trf.xlu0
        %v3902 = vpop.trf.xlu0
        %v3903 = vpop.trf.xlu0
        %v3904 = vpop.trf.xlu0
        %3905 = vxpose.xlu0.c.b16.start [1/8] %v3516, 128
        %3906 = vxpose.xlu0.c.b16.cont [2/8] 0, 128
        %3907 = vxpose.xlu0.c.b16.cont [3/8] 0, 128
        %3908 = vxpose.xlu0.c.b16.cont [4/8] 0, 128
        %3909 = vxpose.xlu0.c.b16.cont [5/8] 0, 128
        %3910 = vxpose.xlu0.c.b16.cont [6/8] 0, 128
        %3911 = vxpose.xlu0.c.b16.cont [7/8] 0, 128
        %3912 = vxpose.xlu0.c.b16.end [8/8] 0, 128
        %v3913 = vpop.trf.xlu0
        %v3914 = vpop.trf.xlu0
        %v3915 = vpop.trf.xlu0
        %v3916 = vpop.trf.xlu0
        %v3917 = vpop.trf.xlu0
        %v3918 = vpop.trf.xlu0
        %v3919 = vpop.trf.xlu0
        %v3920 = vpop.trf.xlu0
        %3921 = vxpose.xlu0.c.b16.start [1/8] %v3517, 128
        %3922 = vxpose.xlu0.c.b16.cont [2/8] 0, 128
        %3923 = vxpose.xlu0.c.b16.cont [3/8] 0, 128
        %3924 = vxpose.xlu0.c.b16.cont [4/8] 0, 128
        %3925 = vxpose.xlu0.c.b16.cont [5/8] 0, 128
        %3926 = vxpose.xlu0.c.b16.cont [6/8] 0, 128
        %3927 = vxpose.xlu0.c.b16.cont [7/8] 0, 128
        %3928 = vxpose.xlu0.c.b16.end [8/8] 0, 128
        %v3929 = vpop.trf.xlu0
        %v3930 = vpop.trf.xlu0
        %v3931 = vpop.trf.xlu0
        %v3932 = vpop.trf.xlu0
        %v3933 = vpop.trf.xlu0
        %v3934 = vpop.trf.xlu0
        %v3935 = vpop.trf.xlu0
        %v3936 = vpop.trf.xlu0
        %3937 = vxpose.xlu0.c.b16.start [1/8] %v3518, 128
        %3938 = vxpose.xlu0.c.b16.cont [2/8] 0, 128
        %3939 = vxpose.xlu0.c.b16.cont [3/8] 0, 128
        %3940 = vxpose.xlu0.c.b16.cont [4/8] 0, 128
        %3941 = vxpose.xlu0.c.b16.cont [5/8] 0, 128
        %3942 = vxpose.xlu0.c.b16.cont [6/8] 0, 128
        %3943 = vxpose.xlu0.c.b16.cont [7/8] 0, 128
        %3944 = vxpose.xlu0.c.b16.end [8/8] 0, 128
        %v3945 = vpop.trf.xlu0
        %v3946 = vpop.trf.xlu0
        %v3947 = vpop.trf.xlu0
        %v3948 = vpop.trf.xlu0
        %v3949 = vpop.trf.xlu0
        %v3950 = vpop.trf.xlu0
        %v3951 = vpop.trf.xlu0
        %v3952 = vpop.trf.xlu0
        %3953 = vxpose.xlu0.c.b16.start [1/8] %v3519, 128
        %3954 = vxpose.xlu0.c.b16.cont [2/8] 0, 128
        %3955 = vxpose.xlu0.c.b16.cont [3/8] 0, 128
        %3956 = vxpose.xlu0.c.b16.cont [4/8] 0, 128
        %3957 = vxpose.xlu0.c.b16.cont [5/8] 0, 128
        %3958 = vxpose.xlu0.c.b16.cont [6/8] 0, 128
        %3959 = vxpose.xlu0.c.b16.cont [7/8] 0, 128
        %3960 = vxpose.xlu0.c.b16.end [8/8] 0, 128
        %v3961 = vpop.trf.xlu0
        %v3962 = vpop.trf.xlu0
        %v3963 = vpop.trf.xlu0
        %v3964 = vpop.trf.xlu0
        %v3965 = vpop.trf.xlu0
        %v3966 = vpop.trf.xlu0
        %v3967 = vpop.trf.xlu0
        %v3968 = vpop.trf.xlu0
        %3969 = vxpose.xlu0.c.b16.start [1/8] %v3520, 128
        %3970 = vxpose.xlu0.c.b16.cont [2/8] 0, 128
        %3971 = vxpose.xlu0.c.b16.cont [3/8] 0, 128
        %3972 = vxpose.xlu0.c.b16.cont [4/8] 0, 128
        %3973 = vxpose.xlu0.c.b16.cont [5/8] 0, 128
        %3974 = vxpose.xlu0.c.b16.cont [6/8] 0, 128
        %3975 = vxpose.xlu0.c.b16.cont [7/8] 0, 128
        %3976 = vxpose.xlu0.c.b16.end [8/8] 0, 128
        %v3977 = vpop.trf.xlu0
        %v3978 = vpop.trf.xlu0
        %v3979 = vpop.trf.xlu0
        %v3980 = vpop.trf.xlu0
        %v3981 = vpop.trf.xlu0
        %v3982 = vpop.trf.xlu0
        %v3983 = vpop.trf.xlu0
        %v3984 = vpop.trf.xlu0
        %3985 = vxpose.xlu0.c.b16.start [1/8] %v3521, 128
        %3986 = vxpose.xlu0.c.b16.cont [2/8] 0, 128
        %3987 = vxpose.xlu0.c.b16.cont [3/8] 0, 128
        %3988 = vxpose.xlu0.c.b16.cont [4/8] 0, 128
        %3989 = vxpose.xlu0.c.b16.cont [5/8] 0, 128
        %3990 = vxpose.xlu0.c.b16.cont [6/8] 0, 128
        %3991 = vxpose.xlu0.c.b16.cont [7/8] 0, 128
        %3992 = vxpose.xlu0.c.b16.end [8/8] 0, 128
        %v3993 = vpop.trf.xlu0
        %v3994 = vpop.trf.xlu0
        %v3995 = vpop.trf.xlu0
        %v3996 = vpop.trf.xlu0
        %v3997 = vpop.trf.xlu0
        %v3998 = vpop.trf.xlu0
        %v3999 = vpop.trf.xlu0
        %v4000 = vpop.trf.xlu0
        %4001 = vxpose.xlu0.c.b16.start [1/8] %v3522, 128
        %4002 = vxpose.xlu0.c.b16.cont [2/8] 0, 128
        %4003 = vxpose.xlu0.c.b16.cont [3/8] 0, 128
        %4004 = vxpose.xlu0.c.b16.cont [4/8] 0, 128
        %4005 = vxpose.xlu0.c.b16.cont [5/8] 0, 128
        %4006 = vxpose.xlu0.c.b16.cont [6/8] 0, 128
        %4007 = vxpose.xlu0.c.b16.cont [7/8] 0, 128
        %4008 = vxpose.xlu0.c.b16.end [8/8] 0, 128
        %v4009 = vpop.trf.xlu0
        %v4010 = vpop.trf.xlu0
        %v4011 = vpop.trf.xlu0
        %v4012 = vpop.trf.xlu0
        %v4013 = vpop.trf.xlu0
        %v4014 = vpop.trf.xlu0
        %v4015 = vpop.trf.xlu0
        %v4016 = vpop.trf.xlu0
        %v4017 = vcombine.low %v3769, %v3833
        %v4019 = vunpack.c.l.s4 1983009808
        %v4020 = vunpack.c.0.s8 %v4019
        %v4021 = vlaneseq
        %v4022 = vshrl.u32 %v4021, 7
        %v4023 = vsub.s32 %v4020, %v4022
        %v4024 = vrot.slane %v4017, %v4023
        %v4025 = vcombine.low %v3801, %v3865
        %v4027 = vunpack.c.l.s4 1983009808
        %v4028 = vunpack.c.0.s8 %v4027
        %v4029 = vlaneseq
        %v4030 = vshrl.u32 %v4029, 7
        %v4031 = vsub.s32 %v4028, %v4030
        %v4032 = vrot.slane %v4025, %v4031
        %v4033 = vcombine.low %v3897, %v3961
        %v4035 = vunpack.c.l.s4 1983009808
        %v4036 = vunpack.c.0.s8 %v4035
        %v4037 = vlaneseq
        %v4038 = vshrl.u32 %v4037, 7
        %v4039 = vsub.s32 %v4036, %v4038
        %v4040 = vrot.slane %v4033, %v4039
        %v4041 = vcombine.low %v3929, %v3993
        %v4043 = vunpack.c.l.s4 1983009808
        %v4044 = vunpack.c.0.s8 %v4043
        %v4045 = vlaneseq
        %v4046 = vshrl.u32 %v4045, 7
        %v4047 = vsub.s32 %v4044, %v4046
        %v4048 = vrot.slane %v4041, %v4047
        %v4049 = vcombine.low %v4024, %v4032
        %v4050 = vcombine.high %v4024, %v4032
        %v4052 = vunpack.c.l.s4 1934713408
        %v4053 = vunpack.c.0.s8 %v4052
        %v4054 = vlaneseq
        %v4055 = vshrl.u32 %v4054, 7
        %v4056 = vsub.s32 %v4053, %v4055
        %v4057 = vrot.slane %v4049, %v4056
        %v4059 = vunpack.c.l.s4 1934713408
        %v4060 = vunpack.c.0.s8 %v4059
        %v4061 = vlaneseq
        %v4062 = vshrl.u32 %v4061, 7
        %v4063 = vsub.s32 %v4060, %v4062
        %v4064 = vrot.slane %v4050, %v4063
        %v4065 = vcombine.low %v4040, %v4048
        %v4066 = vcombine.high %v4040, %v4048
        %v4068 = vunpack.c.l.s4 1934713408
        %v4069 = vunpack.c.0.s8 %v4068
        %v4070 = vlaneseq
        %v4071 = vshrl.u32 %v4070, 7
        %v4072 = vsub.s32 %v4069, %v4071
        %v4073 = vrot.slane %v4065, %v4072
        %v4075 = vunpack.c.l.s4 1934713408
        %v4076 = vunpack.c.0.s8 %v4075
        %v4077 = vlaneseq
        %v4078 = vshrl.u32 %v4077, 7
        %v4079 = vsub.s32 %v4076, %v4078
        %v4080 = vrot.slane %v4066, %v4079
        %v4081 = vcombine.low %v4057, %v4073
        %v4082 = vcombine.high %v4057, %v4073
        %v4083 = vcombine.low %v4064, %v4080
        %v4084 = vcombine.high %v4064, %v4080
        %v4085 = vcombine.low %v3785, %v3849
        %v4087 = vunpack.c.l.s4 1983009808
        %v4088 = vunpack.c.0.s8 %v4087
        %v4089 = vlaneseq
        %v4090 = vshrl.u32 %v4089, 7
        %v4091 = vsub.s32 %v4088, %v4090
        %v4092 = vrot.slane %v4085, %v4091
        %v4093 = vcombine.low %v3817, %v3881
        %v4095 = vunpack.c.l.s4 1983009808
        %v4096 = vunpack.c.0.s8 %v4095
        %v4097 = vlaneseq
        %v4098 = vshrl.u32 %v4097, 7
        %v4099 = vsub.s32 %v4096, %v4098
        %v4100 = vrot.slane %v4093, %v4099
        %v4101 = vcombine.low %v3913, %v3977
        %v4103 = vunpack.c.l.s4 1983009808
        %v4104 = vunpack.c.0.s8 %v4103
        %v4105 = vlaneseq
        %v4106 = vshrl.u32 %v4105, 7
        %v4107 = vsub.s32 %v4104, %v4106
        %v4108 = vrot.slane %v4101, %v4107
        %v4109 = vcombine.low %v3945, %v4009
        %v4111 = vunpack.c.l.s4 1983009808
        %v4112 = vunpack.c.0.s8 %v4111
        %v4113 = vlaneseq
        %v4114 = vshrl.u32 %v4113, 7
        %v4115 = vsub.s32 %v4112, %v4114
        %v4116 = vrot.slane %v4109, %v4115
        %v4117 = vcombine.low %v4092, %v4100
        %v4118 = vcombine.high %v4092, %v4100
        %v4120 = vunpack.c.l.s4 1934713408
        %v4121 = vunpack.c.0.s8 %v4120
        %v4122 = vlaneseq
        %v4123 = vshrl.u32 %v4122, 7
        %v4124 = vsub.s32 %v4121, %v4123
        %v4125 = vrot.slane %v4117, %v4124
        %v4127 = vunpack.c.l.s4 1934713408
        %v4128 = vunpack.c.0.s8 %v4127
        %v4129 = vlaneseq
        %v4130 = vshrl.u32 %v4129, 7
        %v4131 = vsub.s32 %v4128, %v4130
        %v4132 = vrot.slane %v4118, %v4131
        %v4133 = vcombine.low %v4108, %v4116
        %v4134 = vcombine.high %v4108, %v4116
        %v4136 = vunpack.c.l.s4 1934713408
        %v4137 = vunpack.c.0.s8 %v4136
        %v4138 = vlaneseq
        %v4139 = vshrl.u32 %v4138, 7
        %v4140 = vsub.s32 %v4137, %v4139
        %v4141 = vrot.slane %v4133, %v4140
        %v4143 = vunpack.c.l.s4 1934713408
        %v4144 = vunpack.c.0.s8 %v4143
        %v4145 = vlaneseq
        %v4146 = vshrl.u32 %v4145, 7
        %v4147 = vsub.s32 %v4144, %v4146
        %v4148 = vrot.slane %v4134, %v4147
        %v4149 = vcombine.low %v4125, %v4141
        %v4150 = vcombine.high %v4125, %v4141
        %v4151 = vcombine.low %v4132, %v4148
        %v4152 = vcombine.high %v4132, %v4148
        %v4155 = vpack.i.b16 %v4149, %v4081
        %v4157 = vshrl.u32 %v4081, 16
        %v4158 = vshrl.u32 %v4149, 16
        %v4159 = vpack.i.b16 %v4158, %v4157
        %v4163 = vpack.i.b16 %v4150, %v4082
        %v4165 = vshrl.u32 %v4082, 16
        %v4166 = vshrl.u32 %v4150, 16
        %v4167 = vpack.i.b16 %v4166, %v4165
        %v4171 = vpack.i.b16 %v4151, %v4083
        %v4173 = vshrl.u32 %v4083, 16
        %v4174 = vshrl.u32 %v4151, 16
        %v4175 = vpack.i.b16 %v4174, %v4173
        %v4179 = vpack.i.b16 %v4152, %v4084
        %v4181 = vshrl.u32 %v4084, 16
        %v4182 = vshrl.u32 %v4152, 16
        %v4183 = vpack.i.b16 %v4182, %v4181
        %4185 = vxpose.xlu0.c.b16.start [1/8] %v4155, 128
        %4186 = vxpose.xlu0.c.b16.cont [2/8] 0, 128
        %4187 = vxpose.xlu0.c.b16.cont [3/8] 0, 128
        %4188 = vxpose.xlu0.c.b16.cont [4/8] 0, 128
        %4189 = vxpose.xlu0.c.b16.cont [5/8] 0, 128
        %4190 = vxpose.xlu0.c.b16.cont [6/8] 0, 128
        %4191 = vxpose.xlu0.c.b16.cont [7/8] 0, 128
        %4192 = vxpose.xlu0.c.b16.end [8/8] 0, 128
        %v4193 = vpop.trf.xlu0
        %v4194 = vpop.trf.xlu0
        %v4195 = vpop.trf.xlu0
        %v4196 = vpop.trf.xlu0
        %v4197 = vpop.trf.xlu0
        %v4198 = vpop.trf.xlu0
        %v4199 = vpop.trf.xlu0
        %v4200 = vpop.trf.xlu0
        %4201 = vxpose.xlu0.c.b16.start [1/8] %v4159, 128
        %4202 = vxpose.xlu0.c.b16.cont [2/8] 0, 128
        %4203 = vxpose.xlu0.c.b16.cont [3/8] 0, 128
        %4204 = vxpose.xlu0.c.b16.cont [4/8] 0, 128
        %4205 = vxpose.xlu0.c.b16.cont [5/8] 0, 128
        %4206 = vxpose.xlu0.c.b16.cont [6/8] 0, 128
        %4207 = vxpose.xlu0.c.b16.cont [7/8] 0, 128
        %4208 = vxpose.xlu0.c.b16.end [8/8] 0, 128
        %v4209 = vpop.trf.xlu0
        %v4210 = vpop.trf.xlu0
        %v4211 = vpop.trf.xlu0
        %v4212 = vpop.trf.xlu0
        %v4213 = vpop.trf.xlu0
        %v4214 = vpop.trf.xlu0
        %v4215 = vpop.trf.xlu0
        %v4216 = vpop.trf.xlu0
        %4217 = vxpose.xlu0.c.b16.start [1/8] %v4163, 128
        %4218 = vxpose.xlu0.c.b16.cont [2/8] 0, 128
        %4219 = vxpose.xlu0.c.b16.cont [3/8] 0, 128
        %4220 = vxpose.xlu0.c.b16.cont [4/8] 0, 128
        %4221 = vxpose.xlu0.c.b16.cont [5/8] 0, 128
        %4222 = vxpose.xlu0.c.b16.cont [6/8] 0, 128
        %4223 = vxpose.xlu0.c.b16.cont [7/8] 0, 128
        %4224 = vxpose.xlu0.c.b16.end [8/8] 0, 128
        %v4225 = vpop.trf.xlu0
        %v4226 = vpop.trf.xlu0
        %v4227 = vpop.trf.xlu0
        %v4228 = vpop.trf.xlu0
        %v4229 = vpop.trf.xlu0
        %v4230 = vpop.trf.xlu0
        %v4231 = vpop.trf.xlu0
        %v4232 = vpop.trf.xlu0
        %4233 = vxpose.xlu0.c.b16.start [1/8] %v4167, 128
        %4234 = vxpose.xlu0.c.b16.cont [2/8] 0, 128
        %4235 = vxpose.xlu0.c.b16.cont [3/8] 0, 128
        %4236 = vxpose.xlu0.c.b16.cont [4/8] 0, 128
        %4237 = vxpose.xlu0.c.b16.cont [5/8] 0, 128
        %4238 = vxpose.xlu0.c.b16.cont [6/8] 0, 128
        %4239 = vxpose.xlu0.c.b16.cont [7/8] 0, 128
        %4240 = vxpose.xlu0.c.b16.end [8/8] 0, 128
        %v4241 = vpop.trf.xlu0
        %v4242 = vpop.trf.xlu0
        %v4243 = vpop.trf.xlu0
        %v4244 = vpop.trf.xlu0
        %v4245 = vpop.trf.xlu0
        %v4246 = vpop.trf.xlu0
        %v4247 = vpop.trf.xlu0
        %v4248 = vpop.trf.xlu0
        %4249 = vxpose.xlu0.c.b16.start [1/8] %v4171, 128
        %4250 = vxpose.xlu0.c.b16.cont [2/8] 0, 128
        %4251 = vxpose.xlu0.c.b16.cont [3/8] 0, 128
        %4252 = vxpose.xlu0.c.b16.cont [4/8] 0, 128
        %4253 = vxpose.xlu0.c.b16.cont [5/8] 0, 128
        %4254 = vxpose.xlu0.c.b16.cont [6/8] 0, 128
        %4255 = vxpose.xlu0.c.b16.cont [7/8] 0, 128
        %4256 = vxpose.xlu0.c.b16.end [8/8] 0, 128
        %v4257 = vpop.trf.xlu0
        %v4258 = vpop.trf.xlu0
        %v4259 = vpop.trf.xlu0
        %v4260 = vpop.trf.xlu0
        %v4261 = vpop.trf.xlu0
        %v4262 = vpop.trf.xlu0
        %v4263 = vpop.trf.xlu0
        %v4264 = vpop.trf.xlu0
        %4265 = vxpose.xlu0.c.b16.start [1/8] %v4175, 128
        %4266 = vxpose.xlu0.c.b16.cont [2/8] 0, 128
        %4267 = vxpose.xlu0.c.b16.cont [3/8] 0, 128
        %4268 = vxpose.xlu0.c.b16.cont [4/8] 0, 128
        %4269 = vxpose.xlu0.c.b16.cont [5/8] 0, 128
        %4270 = vxpose.xlu0.c.b16.cont [6/8] 0, 128
        %4271 = vxpose.xlu0.c.b16.cont [7/8] 0, 128
        %4272 = vxpose.xlu0.c.b16.end [8/8] 0, 128
        %v4273 = vpop.trf.xlu0
        %v4274 = vpop.trf.xlu0
        %v4275 = vpop.trf.xlu0
        %v4276 = vpop.trf.xlu0
        %v4277 = vpop.trf.xlu0
        %v4278 = vpop.trf.xlu0
        %v4279 = vpop.trf.xlu0
        %v4280 = vpop.trf.xlu0
        %4281 = vxpose.xlu0.c.b16.start [1/8] %v4179, 128
        %4282 = vxpose.xlu0.c.b16.cont [2/8] 0, 128
        %4283 = vxpose.xlu0.c.b16.cont [3/8] 0, 128
        %4284 = vxpose.xlu0.c.b16.cont [4/8] 0, 128
        %4285 = vxpose.xlu0.c.b16.cont [5/8] 0, 128
        %4286 = vxpose.xlu0.c.b16.cont [6/8] 0, 128
        %4287 = vxpose.xlu0.c.b16.cont [7/8] 0, 128
        %4288 = vxpose.xlu0.c.b16.end [8/8] 0, 128
        %v4289 = vpop.trf.xlu0
        %v4290 = vpop.trf.xlu0
        %v4291 = vpop.trf.xlu0
        %v4292 = vpop.trf.xlu0
        %v4293 = vpop.trf.xlu0
        %v4294 = vpop.trf.xlu0
        %v4295 = vpop.trf.xlu0
        %v4296 = vpop.trf.xlu0
        %4297 = vxpose.xlu0.c.b16.start [1/8] %v4183, 128
        %4298 = vxpose.xlu0.c.b16.cont [2/8] 0, 128
        %4299 = vxpose.xlu0.c.b16.cont [3/8] 0, 128
        %4300 = vxpose.xlu0.c.b16.cont [4/8] 0, 128
        %4301 = vxpose.xlu0.c.b16.cont [5/8] 0, 128
        %4302 = vxpose.xlu0.c.b16.cont [6/8] 0, 128
        %4303 = vxpose.xlu0.c.b16.cont [7/8] 0, 128
        %4304 = vxpose.xlu0.c.b16.end [8/8] 0, 128
        %v4305 = vpop.trf.xlu0
        %v4306 = vpop.trf.xlu0
        %v4307 = vpop.trf.xlu0
        %v4308 = vpop.trf.xlu0
        %v4309 = vpop.trf.xlu0
        %v4310 = vpop.trf.xlu0
        %v4311 = vpop.trf.xlu0
        %v4312 = vpop.trf.xlu0
        %v4313 = vcombine.low %v4193, %v4257
        %v4315 = vunpack.c.l.s4 1983009808
        %v4316 = vunpack.c.0.s8 %v4315
        %v4317 = vlaneseq
        %v4318 = vshrl.u32 %v4317, 7
        %v4319 = vsub.s32 %v4316, %v4318
        %v4320 = vrot.slane %v4313, %v4319
        %v4321 = vcombine.low %v4225, %v4289
        %v4323 = vunpack.c.l.s4 1983009808
        %v4324 = vunpack.c.0.s8 %v4323
        %v4325 = vlaneseq
        %v4326 = vshrl.u32 %v4325, 7
        %v4327 = vsub.s32 %v4324, %v4326
        %v4328 = vrot.slane %v4321, %v4327
        %v4329 = vcombine.low %v4320, %v4328
        %v4331 = vunpack.c.l.s4 1934713408
        %v4332 = vunpack.c.0.s8 %v4331
        %v4333 = vlaneseq
        %v4334 = vshrl.u32 %v4333, 7
        %v4335 = vsub.s32 %v4332, %v4334
        %v4336 = vrot.slane %v4329, %v4335
        %v4337 = vcombine.high %v4336, 0
        %v4338 = vcombine.low %v4209, %v4273
        %v4340 = vunpack.c.l.s4 1983009808
        %v4341 = vunpack.c.0.s8 %v4340
        %v4342 = vlaneseq
        %v4343 = vshrl.u32 %v4342, 7
        %v4344 = vsub.s32 %v4341, %v4343
        %v4345 = vrot.slane %v4338, %v4344
        %v4346 = vcombine.low %v4241, %v4305
        %v4348 = vunpack.c.l.s4 1983009808
        %v4349 = vunpack.c.0.s8 %v4348
        %v4350 = vlaneseq
        %v4351 = vshrl.u32 %v4350, 7
        %v4352 = vsub.s32 %v4349, %v4351
        %v4353 = vrot.slane %v4346, %v4352
        %v4354 = vcombine.low %v4345, %v4353
        %v4356 = vunpack.c.l.s4 1934713408
        %v4357 = vunpack.c.0.s8 %v4356
        %v4358 = vlaneseq
        %v4359 = vshrl.u32 %v4358, 7
        %v4360 = vsub.s32 %v4357, %v4359
        %v4361 = vrot.slane %v4354, %v4360
        %v4362 = vcombine.high %v4361, 0
        %v4365 = vpack.i.b16 %v4361, %v4336
        %v4366 = vshrl.u32 %v4336, 16
        %v4367 = vshrl.u32 %v4361, 16
        %v4368 = vpack.i.b16 %v4367, %v4366
        %v4371 = vpack.i.b16 %v4362, %v4337
        %v4372 = vshrl.u32 %v4337, 16
        %v4373 = vshrl.u32 %v4362, 16
        %v4374 = vpack.i.b16 %v4373, %v4372
        %v4376 = vsel %vm1902, %v3751, 0
        %v4379 = vsel %vm1906, %v4365, 0
        %4381 = vmatprep.subr.bf16.mxu0 0
        %4382 = vmatpush1.bf16.msra.mxu0 0
        %4383 = vmatprep.subr.bf16.mxu0 0
        %4384 = vmatpush1.bf16.msra.mxu0 0
        %4385 = vmatprep.subr.bf16.mxu0 0
        %4386 = vmatpush1.bf16.msra.mxu0 0
        %4387 = vmatprep.subr.bf16.mxu0 0
        %4388 = vmatpush1.bf16.msra.mxu0 0
        %4389 = vmatprep.subr.bf16.mxu0 0
        %4390 = vmatpush1.bf16.msra.mxu0 0
        %4391 = vmatprep.subr.bf16.mxu0 0
        %4392 = vmatpush1.bf16.msra.mxu0 0
        %4393 = vmatprep.subr.bf16.mxu0 0
        %4394 = vmatpush1.bf16.msra.mxu0 0
        %4395 = vmatprep.subr.bf16.mxu0 0
        %4396 = vmatpush1.bf16.msra.mxu0 %v4379
        %4397 = vmatprep.subr.bf16.mxu0 0
        %4398 = vmatpush2.bf16.msra.mxu0 0
        %4399 = vmatprep.subr.bf16.mxu0 0
        %4400 = vmatpush2.bf16.msra.mxu0 0
        %4401 = vmatprep.subr.bf16.mxu0 0
        %4402 = vmatpush2.bf16.msra.mxu0 0
        %4403 = vmatprep.subr.bf16.mxu0 0
        %4404 = vmatpush2.bf16.msra.mxu0 0
        %4405 = vmatprep.subr.bf16.mxu0 0
        %4406 = vmatpush2.bf16.msra.mxu0 0
        %4407 = vmatprep.subr.bf16.mxu0 0
        %4408 = vmatpush2.bf16.msra.mxu0 0
        %4409 = vmatprep.subr.bf16.mxu0 0
        %4410 = vmatpush2.bf16.msra.mxu0 0
        %4411 = vmatprep.subr.bf16.mxu0 0
        %4412 = vmatpush2.bf16.msra.mxu0 0
        %4413 = vmatprep.mubr.bf16.mxu0 0
        %4414 = vmatmul.mubr.bf16.gmra.mxu0 %v4376
        %v4415 = vpop.f32.mrf.mxu0
        %v4416 = vadd.f32 0.0, %v4415
        %v4417 = vpop.f32.mrf.mxu0
        %v4418 = vpop.f32.mrf.mxu0
        %v4419 = vpop.f32.mrf.mxu0
        %4420 = vdwg.mxu0
        %v4422 = vsel %vm1902, %v3754, 0
        %v4425 = vsel %vm1906, %v4368, 0
        %4427 = vmatprep.subr.bf16.mxu0 0
        %4428 = vmatpush1.bf16.msra.mxu0 0
        %4429 = vmatprep.subr.bf16.mxu0 0
        %4430 = vmatpush1.bf16.msra.mxu0 0
        %4431 = vmatprep.subr.bf16.mxu0 0
        %4432 = vmatpush1.bf16.msra.mxu0 0
        %4433 = vmatprep.subr.bf16.mxu0 0
        %4434 = vmatpush1.bf16.msra.mxu0 0
        %4435 = vmatprep.subr.bf16.mxu0 0
        %4436 = vmatpush1.bf16.msra.mxu0 0
        %4437 = vmatprep.subr.bf16.mxu0 0
        %4438 = vmatpush1.bf16.msra.mxu0 0
        %4439 = vmatprep.subr.bf16.mxu0 0
        %4440 = vmatpush1.bf16.msra.mxu0 0
        %4441 = vmatprep.subr.bf16.mxu0 0
        %4442 = vmatpush1.bf16.msra.mxu0 %v4425
        %4443 = vmatprep.subr.bf16.mxu0 0
        %4444 = vmatpush2.bf16.msra.mxu0 0
        %4445 = vmatprep.subr.bf16.mxu0 0
        %4446 = vmatpush2.bf16.msra.mxu0 0
        %4447 = vmatprep.subr.bf16.mxu0 0
        %4448 = vmatpush2.bf16.msra.mxu0 0
        %4449 = vmatprep.subr.bf16.mxu0 0
        %4450 = vmatpush2.bf16.msra.mxu0 0
        %4451 = vmatprep.subr.bf16.mxu0 0
        %4452 = vmatpush2.bf16.msra.mxu0 0
        %4453 = vmatprep.subr.bf16.mxu0 0
        %4454 = vmatpush2.bf16.msra.mxu0 0
        %4455 = vmatprep.subr.bf16.mxu0 0
        %4456 = vmatpush2.bf16.msra.mxu0 0
        %4457 = vmatprep.subr.bf16.mxu0 0
        %4458 = vmatpush2.bf16.msra.mxu0 0
        %4459 = vmatprep.mubr.bf16.mxu0 0
        %4460 = vmatmul.mubr.bf16.gmra.mxu0 %v4422
        %v4461 = vpop.f32.mrf.mxu0
        %v4462 = vadd.f32 0.0, %v4461
        %v4463 = vpop.f32.mrf.mxu0
        %v4464 = vpop.f32.mrf.mxu0
        %v4465 = vpop.f32.mrf.mxu0
        %4466 = vdwg.mxu0
        %v4468 = vsel %vm1902, %v3757, 0
        %v4471 = vsel %vm1906, %v4371, 0
        %4473 = vmatprep.subr.bf16.mxu0 0
        %4474 = vmatpush1.bf16.msra.mxu0 0
        %4475 = vmatprep.subr.bf16.mxu0 0
        %4476 = vmatpush1.bf16.msra.mxu0 0
        %4477 = vmatprep.subr.bf16.mxu0 0
        %4478 = vmatpush1.bf16.msra.mxu0 0
        %4479 = vmatprep.subr.bf16.mxu0 0
        %4480 = vmatpush1.bf16.msra.mxu0 0
        %4481 = vmatprep.subr.bf16.mxu0 0
        %4482 = vmatpush1.bf16.msra.mxu0 0
        %4483 = vmatprep.subr.bf16.mxu0 0
        %4484 = vmatpush1.bf16.msra.mxu0 0
        %4485 = vmatprep.subr.bf16.mxu0 0
        %4486 = vmatpush1.bf16.msra.mxu0 0
        %4487 = vmatprep.subr.bf16.mxu0 0
        %4488 = vmatpush1.bf16.msra.mxu0 %v4471
        %4489 = vmatprep.subr.bf16.mxu0 0
        %4490 = vmatpush2.bf16.msra.mxu0 0
        %4491 = vmatprep.subr.bf16.mxu0 0
        %4492 = vmatpush2.bf16.msra.mxu0 0
        %4493 = vmatprep.subr.bf16.mxu0 0
        %4494 = vmatpush2.bf16.msra.mxu0 0
        %4495 = vmatprep.subr.bf16.mxu0 0
        %4496 = vmatpush2.bf16.msra.mxu0 0
        %4497 = vmatprep.subr.bf16.mxu0 0
        %4498 = vmatpush2.bf16.msra.mxu0 0
        %4499 = vmatprep.subr.bf16.mxu0 0
        %4500 = vmatpush2.bf16.msra.mxu0 0
        %4501 = vmatprep.subr.bf16.mxu0 0
        %4502 = vmatpush2.bf16.msra.mxu0 0
        %4503 = vmatprep.subr.bf16.mxu0 0
        %4504 = vmatpush2.bf16.msra.mxu0 0
        %4505 = vmatprep.mubr.bf16.mxu0 0
        %4506 = vmatmul.mubr.bf16.gmra.mxu0 %v4468
        %v4507 = vpop.f32.mrf.mxu0
        %v4508 = vadd.f32 0.0, %v4507
        %v4509 = vpop.f32.mrf.mxu0
        %v4510 = vpop.f32.mrf.mxu0
        %v4511 = vpop.f32.mrf.mxu0
        %4512 = vdwg.mxu0
        %v4514 = vsel %vm1902, %v3760, 0
        %v4517 = vsel %vm1906, %v4374, 0
        %4519 = vmatprep.subr.bf16.mxu0 0
        %4520 = vmatpush1.bf16.msra.mxu0 0
        %4521 = vmatprep.subr.bf16.mxu0 0
        %4522 = vmatpush1.bf16.msra.mxu0 0
        %4523 = vmatprep.subr.bf16.mxu0 0
        %4524 = vmatpush1.bf16.msra.mxu0 0
        %4525 = vmatprep.subr.bf16.mxu0 0
        %4526 = vmatpush1.bf16.msra.mxu0 0
        %4527 = vmatprep.subr.bf16.mxu0 0
        %4528 = vmatpush1.bf16.msra.mxu0 0
        %4529 = vmatprep.subr.bf16.mxu0 0
        %4530 = vmatpush1.bf16.msra.mxu0 0
        %4531 = vmatprep.subr.bf16.mxu0 0
        %4532 = vmatpush1.bf16.msra.mxu0 0
        %4533 = vmatprep.subr.bf16.mxu0 0
        %4534 = vmatpush1.bf16.msra.mxu0 %v4517
        %4535 = vmatprep.subr.bf16.mxu0 0
        %4536 = vmatpush2.bf16.msra.mxu0 0
        %4537 = vmatprep.subr.bf16.mxu0 0
        %4538 = vmatpush2.bf16.msra.mxu0 0
        %4539 = vmatprep.subr.bf16.mxu0 0
        %4540 = vmatpush2.bf16.msra.mxu0 0
        %4541 = vmatprep.subr.bf16.mxu0 0
        %4542 = vmatpush2.bf16.msra.mxu0 0
        %4543 = vmatprep.subr.bf16.mxu0 0
        %4544 = vmatpush2.bf16.msra.mxu0 0
        %4545 = vmatprep.subr.bf16.mxu0 0
        %4546 = vmatpush2.bf16.msra.mxu0 0
        %4547 = vmatprep.subr.bf16.mxu0 0
        %4548 = vmatpush2.bf16.msra.mxu0 0
        %4549 = vmatprep.subr.bf16.mxu0 0
        %4550 = vmatpush2.bf16.msra.mxu0 0
        %4551 = vmatprep.mubr.bf16.mxu0 0
        %4552 = vmatmul.mubr.bf16.gmra.mxu0 %v4514
        %v4553 = vpop.f32.mrf.mxu0
        %v4554 = vadd.f32 0.0, %v4553
        %v4555 = vpop.f32.mrf.mxu0
        %v4556 = vpop.f32.mrf.mxu0
        %v4557 = vpop.f32.mrf.mxu0
        %4558 = vdwg.mxu0
        %vm4559 = vcmp.eq.f32.partialorder %v3264, 0.0
        %v4560 = vsel %vm4559, 1, 0
        %v4561 = vlaneseq
        %v4562 = vshrl.u32 %v4561, 7
        %v4563 = vsub.s32 0, %v4562
        %v4564 = vrot.slane %v4560, %v4563
        %vm4565 = vcmp.eq.s32.totalorder %v4564, 1
        %v4566 = vsel %vm4565, -1e+09, %v4416
        %v4567 = vsel %vm4565, -1e+09, %v4462
        %v4568 = vsel %vm4565, -1e+09, %v4508
        %v4569 = vsel %vm4565, -1e+09, %v4554
        %v4570 = vsel %vm3022, %v4566, -inf
        %4571 = vmax.xlane.f32.xlu0 %v4570
        %v4572 = vpop.xlane.xlu0 %4571
        %v4573 = vsel %vm3022, %v4567, -inf
        %4574 = vmax.xlane.f32.xlu0 %v4573
        %v4575 = vpop.xlane.xlu0 %4574
        %v4576 = vsel %vm3022, %v4568, -inf
        %4577 = vmax.xlane.f32.xlu0 %v4576
        %v4578 = vpop.xlane.xlu0 %4577
        %v4579 = vsel %vm3022, %v4569, -inf
        %4580 = vmax.xlane.f32.xlu0 %v4579
        %v4581 = vpop.xlane.xlu0 %4580
        %v4582 = vsub.f32 %v4566, %v4572
        %v4583 = vsub.f32 %v4567, %v4575
        %v4584 = vsub.f32 %v4568, %v4578
        %v4585 = vsub.f32 %v4569, %v4581
        %v4586 = vmul.f32 %v4582, 1.442695
        %v4587 = vpow.pop %v4586
        %v4588 = vmul.f32 %v4583, 1.442695
        %v4589 = vpow.pop %v4588
        %v4590 = vmul.f32 %v4584, 1.442695
        %v4591 = vpow.pop %v4590
        %v4592 = vmul.f32 %v4585, 1.442695
        %v4593 = vpow.pop %v4592
        %v4594 = vsel %vm3022, %v4587, 0.0
        %4595 = vadd.xlane.f32.xlu0 %v4594
        %v4596 = vpop.xlane.xlu0 %4595
        %v4597 = vsel %vm3022, %v4589, 0.0
        %4598 = vadd.xlane.f32.xlu0 %v4597
        %v4599 = vpop.xlane.xlu0 %4598
        %v4600 = vsel %vm3022, %v4591, 0.0
        %4601 = vadd.xlane.f32.xlu0 %v4600
        %v4602 = vpop.xlane.xlu0 %4601
        %v4603 = vsel %vm3022, %v4593, 0.0
        %4604 = vadd.xlane.f32.xlu0 %v4603
        %v4605 = vpop.xlane.xlu0 %4604
        %v4606 = vrcp.pop %v4596
        %v4607 = vmul.f32 %v4587, %v4606
        %v4608 = vrcp.pop %v4599
        %v4609 = vmul.f32 %v4589, %v4608
        %v4610 = vrcp.pop %v4602
        %v4611 = vmul.f32 %v4591, %v4610
        %v4612 = vrcp.pop %v4605
        %v4613 = vmul.f32 %v4593, %v4612
        %v4614 = vpack.c.bf16 %v4607, %v4607
        %v4615 = vpack.c.bf16 %v4609, %v4609
        %v4616 = vpack.c.bf16 %v4611, %v4611
        %v4617 = vpack.c.bf16 %v4613, %v4613
        %4618 = vxpose.xlu0.c.b16.start [1/8] %v3683, 128
        %4619 = vxpose.xlu0.c.b16.cont [2/8] 0, 128
        %4620 = vxpose.xlu0.c.b16.cont [3/8] 0, 128
        %4621 = vxpose.xlu0.c.b16.cont [4/8] 0, 128
        %4622 = vxpose.xlu0.c.b16.cont [5/8] 0, 128
        %4623 = vxpose.xlu0.c.b16.cont [6/8] 0, 128
        %4624 = vxpose.xlu0.c.b16.cont [7/8] 0, 128
        %4625 = vxpose.xlu0.c.b16.end [8/8] 0, 128
        %v4626 = vpop.trf.xlu0
        %v4627 = vpop.trf.xlu0
        %v4628 = vpop.trf.xlu0
        %v4629 = vpop.trf.xlu0
        %v4630 = vpop.trf.xlu0
        %v4631 = vpop.trf.xlu0
        %v4632 = vpop.trf.xlu0
        %v4633 = vpop.trf.xlu0
        %4634 = vxpose.xlu0.c.b16.start [1/8] %v3684, 128
        %4635 = vxpose.xlu0.c.b16.cont [2/8] 0, 128
        %4636 = vxpose.xlu0.c.b16.cont [3/8] 0, 128
        %4637 = vxpose.xlu0.c.b16.cont [4/8] 0, 128
        %4638 = vxpose.xlu0.c.b16.cont [5/8] 0, 128
        %4639 = vxpose.xlu0.c.b16.cont [6/8] 0, 128
        %4640 = vxpose.xlu0.c.b16.cont [7/8] 0, 128
        %4641 = vxpose.xlu0.c.b16.end [8/8] 0, 128
        %v4642 = vpop.trf.xlu0
        %v4643 = vpop.trf.xlu0
        %v4644 = vpop.trf.xlu0
        %v4645 = vpop.trf.xlu0
        %v4646 = vpop.trf.xlu0
        %v4647 = vpop.trf.xlu0
        %v4648 = vpop.trf.xlu0
        %v4649 = vpop.trf.xlu0
        %4650 = vxpose.xlu0.c.b16.start [1/8] %v3685, 128
        %4651 = vxpose.xlu0.c.b16.cont [2/8] 0, 128
        %4652 = vxpose.xlu0.c.b16.cont [3/8] 0, 128
        %4653 = vxpose.xlu0.c.b16.cont [4/8] 0, 128
        %4654 = vxpose.xlu0.c.b16.cont [5/8] 0, 128
        %4655 = vxpose.xlu0.c.b16.cont [6/8] 0, 128
        %4656 = vxpose.xlu0.c.b16.cont [7/8] 0, 128
        %4657 = vxpose.xlu0.c.b16.end [8/8] 0, 128
        %v4658 = vpop.trf.xlu0
        %v4659 = vpop.trf.xlu0
        %v4660 = vpop.trf.xlu0
        %v4661 = vpop.trf.xlu0
        %v4662 = vpop.trf.xlu0
        %v4663 = vpop.trf.xlu0
        %v4664 = vpop.trf.xlu0
        %v4665 = vpop.trf.xlu0
        %4666 = vxpose.xlu0.c.b16.start [1/8] %v3686, 128
        %4667 = vxpose.xlu0.c.b16.cont [2/8] 0, 128
        %4668 = vxpose.xlu0.c.b16.cont [3/8] 0, 128
        %4669 = vxpose.xlu0.c.b16.cont [4/8] 0, 128
        %4670 = vxpose.xlu0.c.b16.cont [5/8] 0, 128
        %4671 = vxpose.xlu0.c.b16.cont [6/8] 0, 128
        %4672 = vxpose.xlu0.c.b16.cont [7/8] 0, 128
        %4673 = vxpose.xlu0.c.b16.end [8/8] 0, 128
        %v4674 = vpop.trf.xlu0
        %v4675 = vpop.trf.xlu0
        %v4676 = vpop.trf.xlu0
        %v4677 = vpop.trf.xlu0
        %v4678 = vpop.trf.xlu0
        %v4679 = vpop.trf.xlu0
        %v4680 = vpop.trf.xlu0
        %v4681 = vpop.trf.xlu0
        %4682 = vxpose.xlu0.c.b16.start [1/8] %v3687, 128
        %4683 = vxpose.xlu0.c.b16.cont [2/8] 0, 128
        %4684 = vxpose.xlu0.c.b16.cont [3/8] 0, 128
        %4685 = vxpose.xlu0.c.b16.cont [4/8] 0, 128
        %4686 = vxpose.xlu0.c.b16.cont [5/8] 0, 128
        %4687 = vxpose.xlu0.c.b16.cont [6/8] 0, 128
        %4688 = vxpose.xlu0.c.b16.cont [7/8] 0, 128
        %4689 = vxpose.xlu0.c.b16.end [8/8] 0, 128
        %v4690 = vpop.trf.xlu0
        %v4691 = vpop.trf.xlu0
        %v4692 = vpop.trf.xlu0
        %v4693 = vpop.trf.xlu0
        %v4694 = vpop.trf.xlu0
        %v4695 = vpop.trf.xlu0
        %v4696 = vpop.trf.xlu0
        %v4697 = vpop.trf.xlu0
        %4698 = vxpose.xlu0.c.b16.start [1/8] %v3688, 128
        %4699 = vxpose.xlu0.c.b16.cont [2/8] 0, 128
        %4700 = vxpose.xlu0.c.b16.cont [3/8] 0, 128
        %4701 = vxpose.xlu0.c.b16.cont [4/8] 0, 128
        %4702 = vxpose.xlu0.c.b16.cont [5/8] 0, 128
        %4703 = vxpose.xlu0.c.b16.cont [6/8] 0, 128
        %4704 = vxpose.xlu0.c.b16.cont [7/8] 0, 128
        %4705 = vxpose.xlu0.c.b16.end [8/8] 0, 128
        %v4706 = vpop.trf.xlu0
        %v4707 = vpop.trf.xlu0
        %v4708 = vpop.trf.xlu0
        %v4709 = vpop.trf.xlu0
        %v4710 = vpop.trf.xlu0
        %v4711 = vpop.trf.xlu0
        %v4712 = vpop.trf.xlu0
        %v4713 = vpop.trf.xlu0
        %4714 = vxpose.xlu0.c.b16.start [1/8] %v3689, 128
        %4715 = vxpose.xlu0.c.b16.cont [2/8] 0, 128
        %4716 = vxpose.xlu0.c.b16.cont [3/8] 0, 128
        %4717 = vxpose.xlu0.c.b16.cont [4/8] 0, 128
        %4718 = vxpose.xlu0.c.b16.cont [5/8] 0, 128
        %4719 = vxpose.xlu0.c.b16.cont [6/8] 0, 128
        %4720 = vxpose.xlu0.c.b16.cont [7/8] 0, 128
        %4721 = vxpose.xlu0.c.b16.end [8/8] 0, 128
        %v4722 = vpop.trf.xlu0
        %v4723 = vpop.trf.xlu0
        %v4724 = vpop.trf.xlu0
        %v4725 = vpop.trf.xlu0
        %v4726 = vpop.trf.xlu0
        %v4727 = vpop.trf.xlu0
        %v4728 = vpop.trf.xlu0
        %v4729 = vpop.trf.xlu0
        %4730 = vxpose.xlu0.c.b16.start [1/8] %v3690, 128
        %4731 = vxpose.xlu0.c.b16.cont [2/8] 0, 128
        %4732 = vxpose.xlu0.c.b16.cont [3/8] 0, 128
        %4733 = vxpose.xlu0.c.b16.cont [4/8] 0, 128
        %4734 = vxpose.xlu0.c.b16.cont [5/8] 0, 128
        %4735 = vxpose.xlu0.c.b16.cont [6/8] 0, 128
        %4736 = vxpose.xlu0.c.b16.cont [7/8] 0, 128
        %4737 = vxpose.xlu0.c.b16.end [8/8] 0, 128
        %v4738 = vpop.trf.xlu0
        %v4739 = vpop.trf.xlu0
        %v4740 = vpop.trf.xlu0
        %v4741 = vpop.trf.xlu0
        %v4742 = vpop.trf.xlu0
        %v4743 = vpop.trf.xlu0
        %v4744 = vpop.trf.xlu0
        %v4745 = vpop.trf.xlu0
        %4746 = vxpose.xlu0.c.b16.start [1/8] %v3691, 128
        %4747 = vxpose.xlu0.c.b16.cont [2/8] 0, 128
        %4748 = vxpose.xlu0.c.b16.cont [3/8] 0, 128
        %4749 = vxpose.xlu0.c.b16.cont [4/8] 0, 128
        %4750 = vxpose.xlu0.c.b16.cont [5/8] 0, 128
        %4751 = vxpose.xlu0.c.b16.cont [6/8] 0, 128
        %4752 = vxpose.xlu0.c.b16.cont [7/8] 0, 128
        %4753 = vxpose.xlu0.c.b16.end [8/8] 0, 128
        %v4754 = vpop.trf.xlu0
        %v4755 = vpop.trf.xlu0
        %v4756 = vpop.trf.xlu0
        %v4757 = vpop.trf.xlu0
        %v4758 = vpop.trf.xlu0
        %v4759 = vpop.trf.xlu0
        %v4760 = vpop.trf.xlu0
        %v4761 = vpop.trf.xlu0
        %4762 = vxpose.xlu0.c.b16.start [1/8] %v3692, 128
        %4763 = vxpose.xlu0.c.b16.cont [2/8] 0, 128
        %4764 = vxpose.xlu0.c.b16.cont [3/8] 0, 128
        %4765 = vxpose.xlu0.c.b16.cont [4/8] 0, 128
        %4766 = vxpose.xlu0.c.b16.cont [5/8] 0, 128
        %4767 = vxpose.xlu0.c.b16.cont [6/8] 0, 128
        %4768 = vxpose.xlu0.c.b16.cont [7/8] 0, 128
        %4769 = vxpose.xlu0.c.b16.end [8/8] 0, 128
        %v4770 = vpop.trf.xlu0
        %v4771 = vpop.trf.xlu0
        %v4772 = vpop.trf.xlu0
        %v4773 = vpop.trf.xlu0
        %v4774 = vpop.trf.xlu0
        %v4775 = vpop.trf.xlu0
        %v4776 = vpop.trf.xlu0
        %v4777 = vpop.trf.xlu0
        %4778 = vxpose.xlu0.c.b16.start [1/8] %v3693, 128
        %4779 = vxpose.xlu0.c.b16.cont [2/8] 0, 128
        %4780 = vxpose.xlu0.c.b16.cont [3/8] 0, 128
        %4781 = vxpose.xlu0.c.b16.cont [4/8] 0, 128
        %4782 = vxpose.xlu0.c.b16.cont [5/8] 0, 128
        %4783 = vxpose.xlu0.c.b16.cont [6/8] 0, 128
        %4784 = vxpose.xlu0.c.b16.cont [7/8] 0, 128
        %4785 = vxpose.xlu0.c.b16.end [8/8] 0, 128
        %v4786 = vpop.trf.xlu0
        %v4787 = vpop.trf.xlu0
        %v4788 = vpop.trf.xlu0
        %v4789 = vpop.trf.xlu0
        %v4790 = vpop.trf.xlu0
        %v4791 = vpop.trf.xlu0
        %v4792 = vpop.trf.xlu0
        %v4793 = vpop.trf.xlu0
        %4794 = vxpose.xlu0.c.b16.start [1/8] %v3694, 128
        %4795 = vxpose.xlu0.c.b16.cont [2/8] 0, 128
        %4796 = vxpose.xlu0.c.b16.cont [3/8] 0, 128
        %4797 = vxpose.xlu0.c.b16.cont [4/8] 0, 128
        %4798 = vxpose.xlu0.c.b16.cont [5/8] 0, 128
        %4799 = vxpose.xlu0.c.b16.cont [6/8] 0, 128
        %4800 = vxpose.xlu0.c.b16.cont [7/8] 0, 128
        %4801 = vxpose.xlu0.c.b16.end [8/8] 0, 128
        %v4802 = vpop.trf.xlu0
        %v4803 = vpop.trf.xlu0
        %v4804 = vpop.trf.xlu0
        %v4805 = vpop.trf.xlu0
        %v4806 = vpop.trf.xlu0
        %v4807 = vpop.trf.xlu0
        %v4808 = vpop.trf.xlu0
        %v4809 = vpop.trf.xlu0
        %4810 = vxpose.xlu0.c.b16.start [1/8] %v3695, 128
        %4811 = vxpose.xlu0.c.b16.cont [2/8] 0, 128
        %4812 = vxpose.xlu0.c.b16.cont [3/8] 0, 128
        %4813 = vxpose.xlu0.c.b16.cont [4/8] 0, 128
        %4814 = vxpose.xlu0.c.b16.cont [5/8] 0, 128
        %4815 = vxpose.xlu0.c.b16.cont [6/8] 0, 128
        %4816 = vxpose.xlu0.c.b16.cont [7/8] 0, 128
        %4817 = vxpose.xlu0.c.b16.end [8/8] 0, 128
        %v4818 = vpop.trf.xlu0
        %v4819 = vpop.trf.xlu0
        %v4820 = vpop.trf.xlu0
        %v4821 = vpop.trf.xlu0
        %v4822 = vpop.trf.xlu0
        %v4823 = vpop.trf.xlu0
        %v4824 = vpop.trf.xlu0
        %v4825 = vpop.trf.xlu0
        %4826 = vxpose.xlu0.c.b16.start [1/8] %v3696, 128
        %4827 = vxpose.xlu0.c.b16.cont [2/8] 0, 128
        %4828 = vxpose.xlu0.c.b16.cont [3/8] 0, 128
        %4829 = vxpose.xlu0.c.b16.cont [4/8] 0, 128
        %4830 = vxpose.xlu0.c.b16.cont [5/8] 0, 128
        %4831 = vxpose.xlu0.c.b16.cont [6/8] 0, 128
        %4832 = vxpose.xlu0.c.b16.cont [7/8] 0, 128
        %4833 = vxpose.xlu0.c.b16.end [8/8] 0, 128
        %v4834 = vpop.trf.xlu0
        %v4835 = vpop.trf.xlu0
        %v4836 = vpop.trf.xlu0
        %v4837 = vpop.trf.xlu0
        %v4838 = vpop.trf.xlu0
        %v4839 = vpop.trf.xlu0
        %v4840 = vpop.trf.xlu0
        %v4841 = vpop.trf.xlu0
        %4842 = vxpose.xlu0.c.b16.start [1/8] %v3697, 128
        %4843 = vxpose.xlu0.c.b16.cont [2/8] 0, 128
        %4844 = vxpose.xlu0.c.b16.cont [3/8] 0, 128
        %4845 = vxpose.xlu0.c.b16.cont [4/8] 0, 128
        %4846 = vxpose.xlu0.c.b16.cont [5/8] 0, 128
        %4847 = vxpose.xlu0.c.b16.cont [6/8] 0, 128
        %4848 = vxpose.xlu0.c.b16.cont [7/8] 0, 128
        %4849 = vxpose.xlu0.c.b16.end [8/8] 0, 128
        %v4850 = vpop.trf.xlu0
        %v4851 = vpop.trf.xlu0
        %v4852 = vpop.trf.xlu0
        %v4853 = vpop.trf.xlu0
        %v4854 = vpop.trf.xlu0
        %v4855 = vpop.trf.xlu0
        %v4856 = vpop.trf.xlu0
        %v4857 = vpop.trf.xlu0
        %4858 = vxpose.xlu0.c.b16.start [1/8] %v3698, 128
        %4859 = vxpose.xlu0.c.b16.cont [2/8] 0, 128
        %4860 = vxpose.xlu0.c.b16.cont [3/8] 0, 128
        %4861 = vxpose.xlu0.c.b16.cont [4/8] 0, 128
        %4862 = vxpose.xlu0.c.b16.cont [5/8] 0, 128
        %4863 = vxpose.xlu0.c.b16.cont [6/8] 0, 128
        %4864 = vxpose.xlu0.c.b16.cont [7/8] 0, 128
        %4865 = vxpose.xlu0.c.b16.end [8/8] 0, 128
        %v4866 = vpop.trf.xlu0
        %v4867 = vpop.trf.xlu0
        %v4868 = vpop.trf.xlu0
        %v4869 = vpop.trf.xlu0
        %v4870 = vpop.trf.xlu0
        %v4871 = vpop.trf.xlu0
        %v4872 = vpop.trf.xlu0
        %v4873 = vpop.trf.xlu0
        %v4874 = vcombine.low %v4626, %v4690
        %v4876 = vunpack.c.l.s4 1983009808
        %v4877 = vunpack.c.0.s8 %v4876
        %v4878 = vlaneseq
        %v4879 = vshrl.u32 %v4878, 7
        %v4880 = vsub.s32 %v4877, %v4879
        %v4881 = vrot.slane %v4874, %v4880
        %v4882 = vcombine.low %v4658, %v4722
        %v4884 = vunpack.c.l.s4 1983009808
        %v4885 = vunpack.c.0.s8 %v4884
        %v4886 = vlaneseq
        %v4887 = vshrl.u32 %v4886, 7
        %v4888 = vsub.s32 %v4885, %v4887
        %v4889 = vrot.slane %v4882, %v4888
        %v4890 = vcombine.low %v4754, %v4818
        %v4892 = vunpack.c.l.s4 1983009808
        %v4893 = vunpack.c.0.s8 %v4892
        %v4894 = vlaneseq
        %v4895 = vshrl.u32 %v4894, 7
        %v4896 = vsub.s32 %v4893, %v4895
        %v4897 = vrot.slane %v4890, %v4896
        %v4898 = vcombine.low %v4786, %v4850
        %v4900 = vunpack.c.l.s4 1983009808
        %v4901 = vunpack.c.0.s8 %v4900
        %v4902 = vlaneseq
        %v4903 = vshrl.u32 %v4902, 7
        %v4904 = vsub.s32 %v4901, %v4903
        %v4905 = vrot.slane %v4898, %v4904
        %v4906 = vcombine.low %v4881, %v4889
        %v4907 = vcombine.high %v4881, %v4889
        %v4909 = vunpack.c.l.s4 1934713408
        %v4910 = vunpack.c.0.s8 %v4909
        %v4911 = vlaneseq
        %v4912 = vshrl.u32 %v4911, 7
        %v4913 = vsub.s32 %v4910, %v4912
        %v4914 = vrot.slane %v4906, %v4913
        %v4916 = vunpack.c.l.s4 1934713408
        %v4917 = vunpack.c.0.s8 %v4916
        %v4918 = vlaneseq
        %v4919 = vshrl.u32 %v4918, 7
        %v4920 = vsub.s32 %v4917, %v4919
        %v4921 = vrot.slane %v4907, %v4920
        %v4922 = vcombine.low %v4897, %v4905
        %v4923 = vcombine.high %v4897, %v4905
        %v4925 = vunpack.c.l.s4 1934713408
        %v4926 = vunpack.c.0.s8 %v4925
        %v4927 = vlaneseq
        %v4928 = vshrl.u32 %v4927, 7
        %v4929 = vsub.s32 %v4926, %v4928
        %v4930 = vrot.slane %v4922, %v4929
        %v4932 = vunpack.c.l.s4 1934713408
        %v4933 = vunpack.c.0.s8 %v4932
        %v4934 = vlaneseq
        %v4935 = vshrl.u32 %v4934, 7
        %v4936 = vsub.s32 %v4933, %v4935
        %v4937 = vrot.slane %v4923, %v4936
        %v4938 = vcombine.low %v4914, %v4930
        %v4939 = vcombine.high %v4914, %v4930
        %v4940 = vcombine.low %v4921, %v4937
        %v4941 = vcombine.high %v4921, %v4937
        %v4942 = vcombine.low %v4642, %v4706
        %v4944 = vunpack.c.l.s4 1983009808
        %v4945 = vunpack.c.0.s8 %v4944
        %v4946 = vlaneseq
        %v4947 = vshrl.u32 %v4946, 7
        %v4948 = vsub.s32 %v4945, %v4947
        %v4949 = vrot.slane %v4942, %v4948
        %v4950 = vcombine.low %v4674, %v4738
        %v4952 = vunpack.c.l.s4 1983009808
        %v4953 = vunpack.c.0.s8 %v4952
        %v4954 = vlaneseq
        %v4955 = vshrl.u32 %v4954, 7
        %v4956 = vsub.s32 %v4953, %v4955
        %v4957 = vrot.slane %v4950, %v4956
        %v4958 = vcombine.low %v4770, %v4834
        %v4960 = vunpack.c.l.s4 1983009808
        %v4961 = vunpack.c.0.s8 %v4960
        %v4962 = vlaneseq
        %v4963 = vshrl.u32 %v4962, 7
        %v4964 = vsub.s32 %v4961, %v4963
        %v4965 = vrot.slane %v4958, %v4964
        %v4966 = vcombine.low %v4802, %v4866
        %v4968 = vunpack.c.l.s4 1983009808
        %v4969 = vunpack.c.0.s8 %v4968
        %v4970 = vlaneseq
        %v4971 = vshrl.u32 %v4970, 7
        %v4972 = vsub.s32 %v4969, %v4971
        %v4973 = vrot.slane %v4966, %v4972
        %v4974 = vcombine.low %v4949, %v4957
        %v4975 = vcombine.high %v4949, %v4957
        %v4977 = vunpack.c.l.s4 1934713408
        %v4978 = vunpack.c.0.s8 %v4977
        %v4979 = vlaneseq
        %v4980 = vshrl.u32 %v4979, 7
        %v4981 = vsub.s32 %v4978, %v4980
        %v4982 = vrot.slane %v4974, %v4981
        %v4984 = vunpack.c.l.s4 1934713408
        %v4985 = vunpack.c.0.s8 %v4984
        %v4986 = vlaneseq
        %v4987 = vshrl.u32 %v4986, 7
        %v4988 = vsub.s32 %v4985, %v4987
        %v4989 = vrot.slane %v4975, %v4988
        %v4990 = vcombine.low %v4965, %v4973
        %v4991 = vcombine.high %v4965, %v4973
        %v4993 = vunpack.c.l.s4 1934713408
        %v4994 = vunpack.c.0.s8 %v4993
        %v4995 = vlaneseq
        %v4996 = vshrl.u32 %v4995, 7
        %v4997 = vsub.s32 %v4994, %v4996
        %v4998 = vrot.slane %v4990, %v4997
        %v5000 = vunpack.c.l.s4 1934713408
        %v5001 = vunpack.c.0.s8 %v5000
        %v5002 = vlaneseq
        %v5003 = vshrl.u32 %v5002, 7
        %v5004 = vsub.s32 %v5001, %v5003
        %v5005 = vrot.slane %v4991, %v5004
        %v5006 = vcombine.low %v4982, %v4998
        %v5007 = vcombine.high %v4982, %v4998
        %v5008 = vcombine.low %v4989, %v5005
        %v5009 = vcombine.high %v4989, %v5005
        %v5012 = vpack.i.b16 %v5006, %v4938
        %v5014 = vshrl.u32 %v4938, 16
        %v5015 = vshrl.u32 %v5006, 16
        %v5016 = vpack.i.b16 %v5015, %v5014
        %v5020 = vpack.i.b16 %v5007, %v4939
        %v5022 = vshrl.u32 %v4939, 16
        %v5023 = vshrl.u32 %v5007, 16
        %v5024 = vpack.i.b16 %v5023, %v5022
        %v5028 = vpack.i.b16 %v5008, %v4940
        %v5030 = vshrl.u32 %v4940, 16
        %v5031 = vshrl.u32 %v5008, 16
        %v5032 = vpack.i.b16 %v5031, %v5030
        %v5036 = vpack.i.b16 %v5009, %v4941
        %v5038 = vshrl.u32 %v4941, 16
        %v5039 = vshrl.u32 %v5009, 16
        %v5040 = vpack.i.b16 %v5039, %v5038
        %5042 = vxpose.xlu0.c.b16.start [1/8] %v5012, 128
        %5043 = vxpose.xlu0.c.b16.cont [2/8] 0, 128
        %5044 = vxpose.xlu0.c.b16.cont [3/8] 0, 128
        %5045 = vxpose.xlu0.c.b16.cont [4/8] 0, 128
        %5046 = vxpose.xlu0.c.b16.cont [5/8] 0, 128
        %5047 = vxpose.xlu0.c.b16.cont [6/8] 0, 128
        %5048 = vxpose.xlu0.c.b16.cont [7/8] 0, 128
        %5049 = vxpose.xlu0.c.b16.end [8/8] 0, 128
        %v5050 = vpop.trf.xlu0
        %v5051 = vpop.trf.xlu0
        %v5052 = vpop.trf.xlu0
        %v5053 = vpop.trf.xlu0
        %v5054 = vpop.trf.xlu0
        %v5055 = vpop.trf.xlu0
        %v5056 = vpop.trf.xlu0
        %v5057 = vpop.trf.xlu0
        %5058 = vxpose.xlu0.c.b16.start [1/8] %v5016, 128
        %5059 = vxpose.xlu0.c.b16.cont [2/8] 0, 128
        %5060 = vxpose.xlu0.c.b16.cont [3/8] 0, 128
        %5061 = vxpose.xlu0.c.b16.cont [4/8] 0, 128
        %5062 = vxpose.xlu0.c.b16.cont [5/8] 0, 128
        %5063 = vxpose.xlu0.c.b16.cont [6/8] 0, 128
        %5064 = vxpose.xlu0.c.b16.cont [7/8] 0, 128
        %5065 = vxpose.xlu0.c.b16.end [8/8] 0, 128
        %v5066 = vpop.trf.xlu0
        %v5067 = vpop.trf.xlu0
        %v5068 = vpop.trf.xlu0
        %v5069 = vpop.trf.xlu0
        %v5070 = vpop.trf.xlu0
        %v5071 = vpop.trf.xlu0
        %v5072 = vpop.trf.xlu0
        %v5073 = vpop.trf.xlu0
        %5074 = vxpose.xlu0.c.b16.start [1/8] %v5020, 128
        %5075 = vxpose.xlu0.c.b16.cont [2/8] 0, 128
        %5076 = vxpose.xlu0.c.b16.cont [3/8] 0, 128
        %5077 = vxpose.xlu0.c.b16.cont [4/8] 0, 128
        %5078 = vxpose.xlu0.c.b16.cont [5/8] 0, 128
        %5079 = vxpose.xlu0.c.b16.cont [6/8] 0, 128
        %5080 = vxpose.xlu0.c.b16.cont [7/8] 0, 128
        %5081 = vxpose.xlu0.c.b16.end [8/8] 0, 128
        %v5082 = vpop.trf.xlu0
        %v5083 = vpop.trf.xlu0
        %v5084 = vpop.trf.xlu0
        %v5085 = vpop.trf.xlu0
        %v5086 = vpop.trf.xlu0
        %v5087 = vpop.trf.xlu0
        %v5088 = vpop.trf.xlu0
        %v5089 = vpop.trf.xlu0
        %5090 = vxpose.xlu0.c.b16.start [1/8] %v5024, 128
        %5091 = vxpose.xlu0.c.b16.cont [2/8] 0, 128
        %5092 = vxpose.xlu0.c.b16.cont [3/8] 0, 128
        %5093 = vxpose.xlu0.c.b16.cont [4/8] 0, 128
        %5094 = vxpose.xlu0.c.b16.cont [5/8] 0, 128
        %5095 = vxpose.xlu0.c.b16.cont [6/8] 0, 128
        %5096 = vxpose.xlu0.c.b16.cont [7/8] 0, 128
        %5097 = vxpose.xlu0.c.b16.end [8/8] 0, 128
        %v5098 = vpop.trf.xlu0
        %v5099 = vpop.trf.xlu0
        %v5100 = vpop.trf.xlu0
        %v5101 = vpop.trf.xlu0
        %v5102 = vpop.trf.xlu0
        %v5103 = vpop.trf.xlu0
        %v5104 = vpop.trf.xlu0
        %v5105 = vpop.trf.xlu0
        %5106 = vxpose.xlu0.c.b16.start [1/8] %v5028, 128
        %5107 = vxpose.xlu0.c.b16.cont [2/8] 0, 128
        %5108 = vxpose.xlu0.c.b16.cont [3/8] 0, 128
        %5109 = vxpose.xlu0.c.b16.cont [4/8] 0, 128
        %5110 = vxpose.xlu0.c.b16.cont [5/8] 0, 128
        %5111 = vxpose.xlu0.c.b16.cont [6/8] 0, 128
        %5112 = vxpose.xlu0.c.b16.cont [7/8] 0, 128
        %5113 = vxpose.xlu0.c.b16.end [8/8] 0, 128
        %v5114 = vpop.trf.xlu0
        %v5115 = vpop.trf.xlu0
        %v5116 = vpop.trf.xlu0
        %v5117 = vpop.trf.xlu0
        %v5118 = vpop.trf.xlu0
        %v5119 = vpop.trf.xlu0
        %v5120 = vpop.trf.xlu0
        %v5121 = vpop.trf.xlu0
        %5122 = vxpose.xlu0.c.b16.start [1/8] %v5032, 128
        %5123 = vxpose.xlu0.c.b16.cont [2/8] 0, 128
        %5124 = vxpose.xlu0.c.b16.cont [3/8] 0, 128
        %5125 = vxpose.xlu0.c.b16.cont [4/8] 0, 128
        %5126 = vxpose.xlu0.c.b16.cont [5/8] 0, 128
        %5127 = vxpose.xlu0.c.b16.cont [6/8] 0, 128
        %5128 = vxpose.xlu0.c.b16.cont [7/8] 0, 128
        %5129 = vxpose.xlu0.c.b16.end [8/8] 0, 128
        %v5130 = vpop.trf.xlu0
        %v5131 = vpop.trf.xlu0
        %v5132 = vpop.trf.xlu0
        %v5133 = vpop.trf.xlu0
        %v5134 = vpop.trf.xlu0
        %v5135 = vpop.trf.xlu0
        %v5136 = vpop.trf.xlu0
        %v5137 = vpop.trf.xlu0
        %5138 = vxpose.xlu0.c.b16.start [1/8] %v5036, 128
        %5139 = vxpose.xlu0.c.b16.cont [2/8] 0, 128
        %5140 = vxpose.xlu0.c.b16.cont [3/8] 0, 128
        %5141 = vxpose.xlu0.c.b16.cont [4/8] 0, 128
        %5142 = vxpose.xlu0.c.b16.cont [5/8] 0, 128
        %5143 = vxpose.xlu0.c.b16.cont [6/8] 0, 128
        %5144 = vxpose.xlu0.c.b16.cont [7/8] 0, 128
        %5145 = vxpose.xlu0.c.b16.end [8/8] 0, 128
        %v5146 = vpop.trf.xlu0
        %v5147 = vpop.trf.xlu0
        %v5148 = vpop.trf.xlu0
        %v5149 = vpop.trf.xlu0
        %v5150 = vpop.trf.xlu0
        %v5151 = vpop.trf.xlu0
        %v5152 = vpop.trf.xlu0
        %v5153 = vpop.trf.xlu0
        %5154 = vxpose.xlu0.c.b16.start [1/8] %v5040, 128
        %5155 = vxpose.xlu0.c.b16.cont [2/8] 0, 128
        %5156 = vxpose.xlu0.c.b16.cont [3/8] 0, 128
        %5157 = vxpose.xlu0.c.b16.cont [4/8] 0, 128
        %5158 = vxpose.xlu0.c.b16.cont [5/8] 0, 128
        %5159 = vxpose.xlu0.c.b16.cont [6/8] 0, 128
        %5160 = vxpose.xlu0.c.b16.cont [7/8] 0, 128
        %5161 = vxpose.xlu0.c.b16.end [8/8] 0, 128
        %v5162 = vpop.trf.xlu0
        %v5163 = vpop.trf.xlu0
        %v5164 = vpop.trf.xlu0
        %v5165 = vpop.trf.xlu0
        %v5166 = vpop.trf.xlu0
        %v5167 = vpop.trf.xlu0
        %v5168 = vpop.trf.xlu0
        %v5169 = vpop.trf.xlu0
        %v5170 = vcombine.low %v5050, %v5114
        %v5172 = vunpack.c.l.s4 1983009808
        %v5173 = vunpack.c.0.s8 %v5172
        %v5174 = vlaneseq
        %v5175 = vshrl.u32 %v5174, 7
        %v5176 = vsub.s32 %v5173, %v5175
        %v5177 = vrot.slane %v5170, %v5176
        %v5178 = vcombine.low %v5082, %v5146
        %v5180 = vunpack.c.l.s4 1983009808
        %v5181 = vunpack.c.0.s8 %v5180
        %v5182 = vlaneseq
        %v5183 = vshrl.u32 %v5182, 7
        %v5184 = vsub.s32 %v5181, %v5183
        %v5185 = vrot.slane %v5178, %v5184
        %v5186 = vcombine.low %v5177, %v5185
        %v5188 = vunpack.c.l.s4 1934713408
        %v5189 = vunpack.c.0.s8 %v5188
        %v5190 = vlaneseq
        %v5191 = vshrl.u32 %v5190, 7
        %v5192 = vsub.s32 %v5189, %v5191
        %v5193 = vrot.slane %v5186, %v5192
        %v5194 = vcombine.high %v5193, 0
        %v5195 = vcombine.low %v5066, %v5130
        %v5197 = vunpack.c.l.s4 1983009808
        %v5198 = vunpack.c.0.s8 %v5197
        %v5199 = vlaneseq
        %v5200 = vshrl.u32 %v5199, 7
        %v5201 = vsub.s32 %v5198, %v5200
        %v5202 = vrot.slane %v5195, %v5201
        %v5203 = vcombine.low %v5098, %v5162
        %v5205 = vunpack.c.l.s4 1983009808
        %v5206 = vunpack.c.0.s8 %v5205
        %v5207 = vlaneseq
        %v5208 = vshrl.u32 %v5207, 7
        %v5209 = vsub.s32 %v5206, %v5208
        %v5210 = vrot.slane %v5203, %v5209
        %v5211 = vcombine.low %v5202, %v5210
        %v5213 = vunpack.c.l.s4 1934713408
        %v5214 = vunpack.c.0.s8 %v5213
        %v5215 = vlaneseq
        %v5216 = vshrl.u32 %v5215, 7
        %v5217 = vsub.s32 %v5214, %v5216
        %v5218 = vrot.slane %v5211, %v5217
        %v5219 = vcombine.high %v5218, 0
        %v5222 = vpack.i.b16 %v5218, %v5193
        %v5223 = vshrl.u32 %v5193, 16
        %v5224 = vshrl.u32 %v5218, 16
        %v5225 = vpack.i.b16 %v5224, %v5223
        %v5228 = vpack.i.b16 %v5219, %v5194
        %v5229 = vshrl.u32 %v5194, 16
        %v5230 = vshrl.u32 %v5219, 16
        %v5231 = vpack.i.b16 %v5230, %v5229
        %v5233 = vsel %vm3022, %v5222, 0
        %v5236 = vsel %vm3022, %v4614, 0
        %5238 = vmatprep.subr.bf16.mxu0 0
        %5239 = vmatpush1.bf16.xpose.msra.mxu0 0
        %5240 = vmatprep.subr.bf16.mxu0 0
        %5241 = vmatpush1.bf16.xpose.msra.mxu0 0
        %5242 = vmatprep.subr.bf16.mxu0 0
        %5243 = vmatpush1.bf16.xpose.msra.mxu0 0
        %5244 = vmatprep.subr.bf16.mxu0 0
        %5245 = vmatpush1.bf16.xpose.msra.mxu0 0
        %5246 = vmatprep.subr.bf16.mxu0 0
        %5247 = vmatpush1.bf16.xpose.msra.mxu0 0
        %5248 = vmatprep.subr.bf16.mxu0 0
        %5249 = vmatpush1.bf16.xpose.msra.mxu0 0
        %5250 = vmatprep.subr.bf16.mxu0 0
        %5251 = vmatpush1.bf16.xpose.msra.mxu0 0
        %5252 = vmatprep.subr.bf16.mxu0 0
        %5253 = vmatpush1.bf16.xpose.msra.mxu0 %v5236
        %5254 = vmatprep.subr.bf16.mxu0 0
        %5255 = vmatpush2.bf16.xpose.msra.mxu0 0
        %5256 = vmatprep.subr.bf16.mxu0 0
        %5257 = vmatpush2.bf16.xpose.msra.mxu0 0
        %5258 = vmatprep.subr.bf16.mxu0 0
        %5259 = vmatpush2.bf16.xpose.msra.mxu0 0
        %5260 = vmatprep.subr.bf16.mxu0 0
        %5261 = vmatpush2.bf16.xpose.msra.mxu0 0
        %5262 = vmatprep.subr.bf16.mxu0 0
        %5263 = vmatpush2.bf16.xpose.msra.mxu0 0
        %5264 = vmatprep.subr.bf16.mxu0 0
        %5265 = vmatpush2.bf16.xpose.msra.mxu0 0
        %5266 = vmatprep.subr.bf16.mxu0 0
        %5267 = vmatpush2.bf16.xpose.msra.mxu0 0
        %5268 = vmatprep.subr.bf16.mxu0 0
        %5269 = vmatpush2.bf16.xpose.msra.mxu0 0
        %5270 = vmatprep.mubr.bf16.mxu0 0
        %5271 = vmatmul.mubr.bf16.gmra.mxu0 %v5233
        %v5272 = vpop.f32.mrf.mxu0
        %v5273 = vadd.f32 0.0, %v5272
        %v5274 = vpop.f32.mrf.mxu0
        %v5275 = vpop.f32.mrf.mxu0
        %v5276 = vpop.f32.mrf.mxu0
        %5277 = vdwg.mxu0
        %v5279 = vsel %vm3022, %v5225, 0
        %v5282 = vsel %vm3022, %v4615, 0
        %5284 = vmatprep.subr.bf16.mxu0 0
        %5285 = vmatpush1.bf16.xpose.msra.mxu0 0
        %5286 = vmatprep.subr.bf16.mxu0 0
        %5287 = vmatpush1.bf16.xpose.msra.mxu0 0
        %5288 = vmatprep.subr.bf16.mxu0 0
        %5289 = vmatpush1.bf16.xpose.msra.mxu0 0
        %5290 = vmatprep.subr.bf16.mxu0 0
        %5291 = vmatpush1.bf16.xpose.msra.mxu0 0
        %5292 = vmatprep.subr.bf16.mxu0 0
        %5293 = vmatpush1.bf16.xpose.msra.mxu0 0
        %5294 = vmatprep.subr.bf16.mxu0 0
        %5295 = vmatpush1.bf16.xpose.msra.mxu0 0
        %5296 = vmatprep.subr.bf16.mxu0 0
        %5297 = vmatpush1.bf16.xpose.msra.mxu0 0
        %5298 = vmatprep.subr.bf16.mxu0 0
        %5299 = vmatpush1.bf16.xpose.msra.mxu0 %v5282
        %5300 = vmatprep.subr.bf16.mxu0 0
        %5301 = vmatpush2.bf16.xpose.msra.mxu0 0
        %5302 = vmatprep.subr.bf16.mxu0 0
        %5303 = vmatpush2.bf16.xpose.msra.mxu0 0
        %5304 = vmatprep.subr.bf16.mxu0 0
        %5305 = vmatpush2.bf16.xpose.msra.mxu0 0
        %5306 = vmatprep.subr.bf16.mxu0 0
        %5307 = vmatpush2.bf16.xpose.msra.mxu0 0
        %5308 = vmatprep.subr.bf16.mxu0 0
        %5309 = vmatpush2.bf16.xpose.msra.mxu0 0
        %5310 = vmatprep.subr.bf16.mxu0 0
        %5311 = vmatpush2.bf16.xpose.msra.mxu0 0
        %5312 = vmatprep.subr.bf16.mxu0 0
        %5313 = vmatpush2.bf16.xpose.msra.mxu0 0
        %5314 = vmatprep.subr.bf16.mxu0 0
        %5315 = vmatpush2.bf16.xpose.msra.mxu0 0
        %5316 = vmatprep.mubr.bf16.mxu0 0
        %5317 = vmatmul.mubr.bf16.gmra.mxu0 %v5279
        %v5318 = vpop.f32.mrf.mxu0
        %v5319 = vadd.f32 0.0, %v5318
        %v5320 = vpop.f32.mrf.mxu0
        %v5321 = vpop.f32.mrf.mxu0
        %v5322 = vpop.f32.mrf.mxu0
        %5323 = vdwg.mxu0
        %v5325 = vsel %vm3022, %v5228, 0
        %v5328 = vsel %vm3022, %v4616, 0
        %5330 = vmatprep.subr.bf16.mxu0 0
        %5331 = vmatpush1.bf16.xpose.msra.mxu0 0
        %5332 = vmatprep.subr.bf16.mxu0 0
        %5333 = vmatpush1.bf16.xpose.msra.mxu0 0
        %5334 = vmatprep.subr.bf16.mxu0 0
        %5335 = vmatpush1.bf16.xpose.msra.mxu0 0
        %5336 = vmatprep.subr.bf16.mxu0 0
        %5337 = vmatpush1.bf16.xpose.msra.mxu0 0
        %5338 = vmatprep.subr.bf16.mxu0 0
        %5339 = vmatpush1.bf16.xpose.msra.mxu0 0
        %5340 = vmatprep.subr.bf16.mxu0 0
        %5341 = vmatpush1.bf16.xpose.msra.mxu0 0
        %5342 = vmatprep.subr.bf16.mxu0 0
        %5343 = vmatpush1.bf16.xpose.msra.mxu0 0
        %5344 = vmatprep.subr.bf16.mxu0 0
        %5345 = vmatpush1.bf16.xpose.msra.mxu0 %v5328
        %5346 = vmatprep.subr.bf16.mxu0 0
        %5347 = vmatpush2.bf16.xpose.msra.mxu0 0
        %5348 = vmatprep.subr.bf16.mxu0 0
        %5349 = vmatpush2.bf16.xpose.msra.mxu0 0
        %5350 = vmatprep.subr.bf16.mxu0 0
        %5351 = vmatpush2.bf16.xpose.msra.mxu0 0
        %5352 = vmatprep.subr.bf16.mxu0 0
        %5353 = vmatpush2.bf16.xpose.msra.mxu0 0
        %5354 = vmatprep.subr.bf16.mxu0 0
        %5355 = vmatpush2.bf16.xpose.msra.mxu0 0
        %5356 = vmatprep.subr.bf16.mxu0 0
        %5357 = vmatpush2.bf16.xpose.msra.mxu0 0
        %5358 = vmatprep.subr.bf16.mxu0 0
        %5359 = vmatpush2.bf16.xpose.msra.mxu0 0
        %5360 = vmatprep.subr.bf16.mxu0 0
        %5361 = vmatpush2.bf16.xpose.msra.mxu0 0
        %5362 = vmatprep.mubr.bf16.mxu0 0
        %5363 = vmatmul.mubr.bf16.gmra.mxu0 %v5325
        %v5364 = vpop.f32.mrf.mxu0
        %v5365 = vadd.f32 0.0, %v5364
        %v5366 = vpop.f32.mrf.mxu0
        %v5367 = vpop.f32.mrf.mxu0
        %v5368 = vpop.f32.mrf.mxu0
        %5369 = vdwg.mxu0
        %v5371 = vsel %vm3022, %v5231, 0
        %v5374 = vsel %vm3022, %v4617, 0
        %5376 = vmatprep.subr.bf16.mxu0 0
        %5377 = vmatpush1.bf16.xpose.msra.mxu0 0
        %5378 = vmatprep.subr.bf16.mxu0 0
        %5379 = vmatpush1.bf16.xpose.msra.mxu0 0
        %5380 = vmatprep.subr.bf16.mxu0 0
        %5381 = vmatpush1.bf16.xpose.msra.mxu0 0
        %5382 = vmatprep.subr.bf16.mxu0 0
        %5383 = vmatpush1.bf16.xpose.msra.mxu0 0
        %5384 = vmatprep.subr.bf16.mxu0 0
        %5385 = vmatpush1.bf16.xpose.msra.mxu0 0
        %5386 = vmatprep.subr.bf16.mxu0 0
        %5387 = vmatpush1.bf16.xpose.msra.mxu0 0
        %5388 = vmatprep.subr.bf16.mxu0 0
        %5389 = vmatpush1.bf16.xpose.msra.mxu0 0
        %5390 = vmatprep.subr.bf16.mxu0 0
        %5391 = vmatpush1.bf16.xpose.msra.mxu0 %v5374
        %5392 = vmatprep.subr.bf16.mxu0 0
        %5393 = vmatpush2.bf16.xpose.msra.mxu0 0
        %5394 = vmatprep.subr.bf16.mxu0 0
        %5395 = vmatpush2.bf16.xpose.msra.mxu0 0
        %5396 = vmatprep.subr.bf16.mxu0 0
        %5397 = vmatpush2.bf16.xpose.msra.mxu0 0
        %5398 = vmatprep.subr.bf16.mxu0 0
        %5399 = vmatpush2.bf16.xpose.msra.mxu0 0
        %5400 = vmatprep.subr.bf16.mxu0 0
        %5401 = vmatpush2.bf16.xpose.msra.mxu0 0
        %5402 = vmatprep.subr.bf16.mxu0 0
        %5403 = vmatpush2.bf16.xpose.msra.mxu0 0
        %5404 = vmatprep.subr.bf16.mxu0 0
        %5405 = vmatpush2.bf16.xpose.msra.mxu0 0
        %5406 = vmatprep.subr.bf16.mxu0 0
        %5407 = vmatpush2.bf16.xpose.msra.mxu0 0
        %5408 = vmatprep.mubr.bf16.mxu0 0
        %5409 = vmatmul.mubr.bf16.gmra.mxu0 %v5371
        %v5410 = vpop.f32.mrf.mxu0
        %v5411 = vadd.f32 0.0, %v5410
        %v5412 = vpop.f32.mrf.mxu0
        %v5413 = vpop.f32.mrf.mxu0
        %v5414 = vpop.f32.mrf.mxu0
        %5415 = vdwg.mxu0
        %5416 = vxpose.xlu0.b32.start [1/16] %v5273, 128
        %5417 = vxpose.xlu0.b32.cont [2/16] 0.0, 128
        %5418 = vxpose.xlu0.b32.cont [3/16] 0.0, 128
        %5419 = vxpose.xlu0.b32.cont [4/16] 0.0, 128
        %5420 = vxpose.xlu0.b32.cont [5/16] 0.0, 128
        %5421 = vxpose.xlu0.b32.cont [6/16] 0.0, 128
        %5422 = vxpose.xlu0.b32.cont [7/16] 0.0, 128
        %5423 = vxpose.xlu0.b32.cont [8/16] 0.0, 128
        %5424 = vxpose.xlu0.b32.cont [9/16] 0.0, 128
        %5425 = vxpose.xlu0.b32.cont [10/16] 0.0, 128
        %5426 = vxpose.xlu0.b32.cont [11/16] 0.0, 128
        %5427 = vxpose.xlu0.b32.cont [12/16] 0.0, 128
        %5428 = vxpose.xlu0.b32.cont [13/16] 0.0, 128
        %5429 = vxpose.xlu0.b32.cont [14/16] 0.0, 128
        %5430 = vxpose.xlu0.b32.cont [15/16] 0.0, 128
        %5431 = vxpose.xlu0.b32.end [16/16] 0.0, 128
        %v5432 = vpop.trf.xlu0
        %v5433 = vpop.trf.xlu0
        %v5434 = vpop.trf.xlu0
        %v5435 = vpop.trf.xlu0
        %v5436 = vpop.trf.xlu0
        %v5437 = vpop.trf.xlu0
        %v5438 = vpop.trf.xlu0
        %v5439 = vpop.trf.xlu0
        %v5440 = vpop.trf.xlu0
        %v5441 = vpop.trf.xlu0
        %v5442 = vpop.trf.xlu0
        %v5443 = vpop.trf.xlu0
        %v5444 = vpop.trf.xlu0
        %v5445 = vpop.trf.xlu0
        %v5446 = vpop.trf.xlu0
        %v5447 = vpop.trf.xlu0
        %5448 = vxpose.xlu0.b32.start [1/16] %v5319, 128
        %5449 = vxpose.xlu0.b32.cont [2/16] 0.0, 128
        %5450 = vxpose.xlu0.b32.cont [3/16] 0.0, 128
        %5451 = vxpose.xlu0.b32.cont [4/16] 0.0, 128
        %5452 = vxpose.xlu0.b32.cont [5/16] 0.0, 128
        %5453 = vxpose.xlu0.b32.cont [6/16] 0.0, 128
        %5454 = vxpose.xlu0.b32.cont [7/16] 0.0, 128
        %5455 = vxpose.xlu0.b32.cont [8/16] 0.0, 128
        %5456 = vxpose.xlu0.b32.cont [9/16] 0.0, 128
        %5457 = vxpose.xlu0.b32.cont [10/16] 0.0, 128
        %5458 = vxpose.xlu0.b32.cont [11/16] 0.0, 128
        %5459 = vxpose.xlu0.b32.cont [12/16] 0.0, 128
        %5460 = vxpose.xlu0.b32.cont [13/16] 0.0, 128
        %5461 = vxpose.xlu0.b32.cont [14/16] 0.0, 128
        %5462 = vxpose.xlu0.b32.cont [15/16] 0.0, 128
        %5463 = vxpose.xlu0.b32.end [16/16] 0.0, 128
        %v5464 = vpop.trf.xlu0
        %v5465 = vpop.trf.xlu0
        %v5466 = vpop.trf.xlu0
        %v5467 = vpop.trf.xlu0
        %v5468 = vpop.trf.xlu0
        %v5469 = vpop.trf.xlu0
        %v5470 = vpop.trf.xlu0
        %v5471 = vpop.trf.xlu0
        %v5472 = vpop.trf.xlu0
        %v5473 = vpop.trf.xlu0
        %v5474 = vpop.trf.xlu0
        %v5475 = vpop.trf.xlu0
        %v5476 = vpop.trf.xlu0
        %v5477 = vpop.trf.xlu0
        %v5478 = vpop.trf.xlu0
        %v5479 = vpop.trf.xlu0
        %5480 = vxpose.xlu0.b32.start [1/16] %v5365, 128
        %5481 = vxpose.xlu0.b32.cont [2/16] 0.0, 128
        %5482 = vxpose.xlu0.b32.cont [3/16] 0.0, 128
        %5483 = vxpose.xlu0.b32.cont [4/16] 0.0, 128
        %5484 = vxpose.xlu0.b32.cont [5/16] 0.0, 128
        %5485 = vxpose.xlu0.b32.cont [6/16] 0.0, 128
        %5486 = vxpose.xlu0.b32.cont [7/16] 0.0, 128
        %5487 = vxpose.xlu0.b32.cont [8/16] 0.0, 128
        %5488 = vxpose.xlu0.b32.cont [9/16] 0.0, 128
        %5489 = vxpose.xlu0.b32.cont [10/16] 0.0, 128
        %5490 = vxpose.xlu0.b32.cont [11/16] 0.0, 128
        %5491 = vxpose.xlu0.b32.cont [12/16] 0.0, 128
        %5492 = vxpose.xlu0.b32.cont [13/16] 0.0, 128
        %5493 = vxpose.xlu0.b32.cont [14/16] 0.0, 128
        %5494 = vxpose.xlu0.b32.cont [15/16] 0.0, 128
        %5495 = vxpose.xlu0.b32.end [16/16] 0.0, 128
        %v5496 = vpop.trf.xlu0
        %v5497 = vpop.trf.xlu0
        %v5498 = vpop.trf.xlu0
        %v5499 = vpop.trf.xlu0
        %v5500 = vpop.trf.xlu0
        %v5501 = vpop.trf.xlu0
        %v5502 = vpop.trf.xlu0
        %v5503 = vpop.trf.xlu0
        %v5504 = vpop.trf.xlu0
        %v5505 = vpop.trf.xlu0
        %v5506 = vpop.trf.xlu0
        %v5507 = vpop.trf.xlu0
        %v5508 = vpop.trf.xlu0
        %v5509 = vpop.trf.xlu0
        %v5510 = vpop.trf.xlu0
        %v5511 = vpop.trf.xlu0
        %5512 = vxpose.xlu0.b32.start [1/16] %v5411, 128
        %5513 = vxpose.xlu0.b32.cont [2/16] 0.0, 128
        %5514 = vxpose.xlu0.b32.cont [3/16] 0.0, 128
        %5515 = vxpose.xlu0.b32.cont [4/16] 0.0, 128
        %5516 = vxpose.xlu0.b32.cont [5/16] 0.0, 128
        %5517 = vxpose.xlu0.b32.cont [6/16] 0.0, 128
        %5518 = vxpose.xlu0.b32.cont [7/16] 0.0, 128
        %5519 = vxpose.xlu0.b32.cont [8/16] 0.0, 128
        %5520 = vxpose.xlu0.b32.cont [9/16] 0.0, 128
        %5521 = vxpose.xlu0.b32.cont [10/16] 0.0, 128
        %5522 = vxpose.xlu0.b32.cont [11/16] 0.0, 128
        %5523 = vxpose.xlu0.b32.cont [12/16] 0.0, 128
        %5524 = vxpose.xlu0.b32.cont [13/16] 0.0, 128
        %5525 = vxpose.xlu0.b32.cont [14/16] 0.0, 128
        %5526 = vxpose.xlu0.b32.cont [15/16] 0.0, 128
        %5527 = vxpose.xlu0.b32.end [16/16] 0.0, 128
        %v5528 = vpop.trf.xlu0
        %v5529 = vpop.trf.xlu0
        %v5530 = vpop.trf.xlu0
        %v5531 = vpop.trf.xlu0
        %v5532 = vpop.trf.xlu0
        %v5533 = vpop.trf.xlu0
        %v5534 = vpop.trf.xlu0
        %v5535 = vpop.trf.xlu0
        %v5536 = vpop.trf.xlu0
        %v5537 = vpop.trf.xlu0
        %v5538 = vpop.trf.xlu0
        %v5539 = vpop.trf.xlu0
        %v5540 = vpop.trf.xlu0
        %v5541 = vpop.trf.xlu0
        %v5542 = vpop.trf.xlu0
        %v5543 = vpop.trf.xlu0
        %v5544 = vcombine.low %v5432, %v5496
        %v5545 = vcombine.high %v5432, %v5496
        %v5547 = vunpack.c.l.s4 1983009808
        %v5548 = vunpack.c.0.s8 %v5547
        %v5549 = vlaneseq
        %v5550 = vshrl.u32 %v5549, 7
        %v5551 = vsub.s32 %v5548, %v5550
        %v5552 = vrot.slane %v5544, %v5551
        %v5554 = vunpack.c.l.s4 1983009808
        %v5555 = vunpack.c.0.s8 %v5554
        %v5556 = vlaneseq
        %v5557 = vshrl.u32 %v5556, 7
        %v5558 = vsub.s32 %v5555, %v5557
        %v5559 = vrot.slane %v5545, %v5558
        %v5560 = vcombine.low %v5464, %v5528
        %v5561 = vcombine.high %v5464, %v5528
        %v5563 = vunpack.c.l.s4 1983009808
        %v5564 = vunpack.c.0.s8 %v5563
        %v5565 = vlaneseq
        %v5566 = vshrl.u32 %v5565, 7
        %v5567 = vsub.s32 %v5564, %v5566
        %v5568 = vrot.slane %v5560, %v5567
        %v5570 = vunpack.c.l.s4 1983009808
        %v5571 = vunpack.c.0.s8 %v5570
        %v5572 = vlaneseq
        %v5573 = vshrl.u32 %v5572, 7
        %v5574 = vsub.s32 %v5571, %v5573
        %v5575 = vrot.slane %v5561, %v5574
        %v5576 = vcombine.low %v5552, %v5568
        %v5577 = vcombine.high %v5552, %v5568
        %v5579 = vunpack.c.l.s4 1934713408
        %v5580 = vunpack.c.0.s8 %v5579
        %v5581 = vlaneseq
        %v5582 = vshrl.u32 %v5581, 7
        %v5583 = vsub.s32 %v5580, %v5582
        %v5584 = vrot.slane %v5576, %v5583
        %v5586 = vunpack.c.l.s4 1934713408
        %v5587 = vunpack.c.0.s8 %v5586
        %v5588 = vlaneseq
        %v5589 = vshrl.u32 %v5588, 7
        %v5590 = vsub.s32 %v5587, %v5589
        %v5591 = vrot.slane %v5577, %v5590
        %v5592 = vcombine.low %v5559, %v5575
        %v5593 = vcombine.high %v5559, %v5575
        %v5595 = vunpack.c.l.s4 1934713408
        %v5596 = vunpack.c.0.s8 %v5595
        %v5597 = vlaneseq
        %v5598 = vshrl.u32 %v5597, 7
        %v5599 = vsub.s32 %v5596, %v5598
        %v5600 = vrot.slane %v5592, %v5599
        %v5602 = vunpack.c.l.s4 1934713408
        %v5603 = vunpack.c.0.s8 %v5602
        %v5604 = vlaneseq
        %v5605 = vshrl.u32 %v5604, 7
        %v5606 = vsub.s32 %v5603, %v5605
        %v5607 = vrot.slane %v5593, %v5606
        %v5608 = vcombine.high %v5584, 0.0
        %v5609 = vcombine.high %v5591, 0.0
        %v5610 = vcombine.high %v5600, 0.0
        %v5611 = vcombine.high %v5607, 0.0
        %v5612 = vcombine.low %v5584, %v5591
        %v5614 = vunpack.c.l.s4 1983009808
        %v5615 = vunpack.c.0.s8 %v5614
        %v5616 = vlaneseq
        %v5617 = vshrl.u32 %v5616, 7
        %v5618 = vsub.s32 %v5615, %v5617
        %v5619 = vrot.slane %v5612, %v5618
        %v5620 = vcombine.low %v5608, %v5609
        %v5622 = vunpack.c.l.s4 1983009808
        %v5623 = vunpack.c.0.s8 %v5622
        %v5624 = vlaneseq
        %v5625 = vshrl.u32 %v5624, 7
        %v5626 = vsub.s32 %v5623, %v5625
        %v5627 = vrot.slane %v5620, %v5626
        %v5628 = vcombine.low %v5600, %v5607
        %v5630 = vunpack.c.l.s4 1983009808
        %v5631 = vunpack.c.0.s8 %v5630
        %v5632 = vlaneseq
        %v5633 = vshrl.u32 %v5632, 7
        %v5634 = vsub.s32 %v5631, %v5633
        %v5635 = vrot.slane %v5628, %v5634
        %v5636 = vcombine.low %v5610, %v5611
        %v5638 = vunpack.c.l.s4 1983009808
        %v5639 = vunpack.c.0.s8 %v5638
        %v5640 = vlaneseq
        %v5641 = vshrl.u32 %v5640, 7
        %v5642 = vsub.s32 %v5639, %v5641
        %v5643 = vrot.slane %v5636, %v5642
        %v5644 = vcombine.low %v5619, %v5627
        %v5645 = vcombine.high %v5619, %v5627
        %v5647 = vunpack.c.l.s4 1934713408
        %v5648 = vunpack.c.0.s8 %v5647
        %v5649 = vlaneseq
        %v5650 = vshrl.u32 %v5649, 7
        %v5651 = vsub.s32 %v5648, %v5650
        %v5652 = vrot.slane %v5644, %v5651
        %v5654 = vunpack.c.l.s4 1934713408
        %v5655 = vunpack.c.0.s8 %v5654
        %v5656 = vlaneseq
        %v5657 = vshrl.u32 %v5656, 7
        %v5658 = vsub.s32 %v5655, %v5657
        %v5659 = vrot.slane %v5645, %v5658
        %v5660 = vcombine.low %v5635, %v5643
        %v5661 = vcombine.high %v5635, %v5643
        %v5663 = vunpack.c.l.s4 1934713408
        %v5664 = vunpack.c.0.s8 %v5663
        %v5665 = vlaneseq
        %v5666 = vshrl.u32 %v5665, 7
        %v5667 = vsub.s32 %v5664, %v5666
        %v5668 = vrot.slane %v5660, %v5667
        %v5670 = vunpack.c.l.s4 1934713408
        %v5671 = vunpack.c.0.s8 %v5670
        %v5672 = vlaneseq
        %v5673 = vshrl.u32 %v5672, 7
        %v5674 = vsub.s32 %v5671, %v5673
        %v5675 = vrot.slane %v5661, %v5674
        %v5676 = vcombine.low %v5652, %v5668
        %v5677 = vcombine.high %v5652, %v5668
        %v5678 = vcombine.low %v5659, %v5675
        %v5679 = vcombine.high %v5659, %v5675
        %5681 = vrot.lane.b32.xlu0 %v5677, 8
        %v5682 = vpop.permute.xlu0 %5681
        %5685 = vrot.lane.b32.xlu0 %v5678, 16
        %v5686 = vpop.permute.xlu0 %5685
        %5689 = vrot.lane.b32.xlu0 %v5679, 24
        %v5690 = vpop.permute.xlu0 %5689
        %v5692 = vsel %vm1902, %v5676, %v5682
        %v5693 = vsel %vm3022, %v5692, %v5686
        %v5694 = vsel %vm3024, %v5693, %v5690
        %5695 = vst.msk [vmem:[%s1045] sm:$0xff] %vm3022, %v4607
        %5696 = vst.msk [vmem:[%s1045 + $0x8] sm:$0xff] %vm3022, %v4609
        %5697 = vst.msk [vmem:[%s1045 + $0x10] sm:$0xff] %vm3022, %v4611
        %5698 = vst.msk [vmem:[%s1045 + $0x18] sm:$0xff] %vm3022, %v4613
        %v5699 = vpack.c.bf16 %v5694, %v5694
        %v5700 = vld [vmem:[#allocation20] sm:$0xf]
        %v5701 = vld [vmem:[#allocation20 + $0x4] sm:$0xf]
        %v5702 = vld [vmem:[#allocation20 + $0x8] sm:$0xf]
        %v5703 = vld [vmem:[#allocation20 + $0xc] sm:$0xf]
        %v5704 = vld [vmem:[#allocation22] sm:$0x1]
        %v5706 = vlaneseq
        %v5707 = vshrl.u32 %v5706, 7
        %v5708 = vsub.s32 0, %v5707
        %v5709 = vrot.slane %v5704, %v5708
        %v5715 = vunpack.c.l.b16 %v5700
        %v5716 = vunpack.c.l.b16 %v5701
        %v5717 = vunpack.c.l.b16 %v5702
        %v5718 = vunpack.c.l.b16 %v5703
        %v5719 = vpack.c.b16 %v5716, %v5715
        %v5720 = vpack.c.b16 %v5718, %v5717
        %v5724 = vsel %vm1063, %v5699, 0
        %5726 = vmatprep.subr.bf16.mxu0 0
        %5727 = vmatpush1.bf16.msra.mxu0 0
        %5728 = vmatprep.subr.bf16.mxu0 0
        %5729 = vmatpush1.bf16.msra.mxu0 0
        %5730 = vmatprep.subr.bf16.mxu0 0
        %5731 = vmatpush1.bf16.msra.mxu0 0
        %5732 = vmatprep.subr.bf16.mxu0 0
        %5733 = vmatpush1.bf16.msra.mxu0 0
        %5734 = vmatprep.subr.bf16.mxu0 0
        %5735 = vmatpush1.bf16.msra.mxu0 0
        %5736 = vmatprep.subr.bf16.mxu0 0
        %5737 = vmatpush1.bf16.msra.mxu0 0
        %5738 = vmatprep.subr.bf16.mxu0 0
        %5739 = vmatpush1.bf16.msra.mxu0 %v5720
        %5740 = vmatprep.subr.bf16.mxu0 0
        %5741 = vmatpush1.bf16.msra.mxu0 %v5719
        %5742 = vmatprep.subr.bf16.mxu0 0
        %5743 = vmatpush2.bf16.msra.mxu0 0
        %5744 = vmatprep.subr.bf16.mxu0 0
        %5745 = vmatpush2.bf16.msra.mxu0 0
        %5746 = vmatprep.subr.bf16.mxu0 0
        %5747 = vmatpush2.bf16.msra.mxu0 0
        %5748 = vmatprep.subr.bf16.mxu0 0
        %5749 = vmatpush2.bf16.msra.mxu0 0
        %5750 = vmatprep.subr.bf16.mxu0 0
        %5751 = vmatpush2.bf16.msra.mxu0 0
        %5752 = vmatprep.subr.bf16.mxu0 0
        %5753 = vmatpush2.bf16.msra.mxu0 0
        %5754 = vmatprep.subr.bf16.mxu0 0
        %5755 = vmatpush2.bf16.msra.mxu0 0
        %5756 = vmatprep.subr.bf16.mxu0 0
        %5757 = vmatpush2.bf16.msra.mxu0 0
        %5758 = vmatprep.mubr.bf16.mxu0 0
        %5759 = vmatmul.mubr.bf16.gmra.mxu0 %v5724
        %v5760 = vpop.f32.mrf.mxu0
        %v5761 = vadd.f32 %v5709, %v5760
        %v5762 = vpop.f32.mrf.mxu0
        %v5763 = vpop.f32.mrf.mxu0
        %v5764 = vpop.f32.mrf.mxu0
        %5765 = vdwg.mxu0
        %v5766 = vadd.f32 %v3097, %v5761
        %v5767 = vld [vmem:[#allocation23] sm:$0x1]
        %v5768 = vld [vmem:[%s19] sm:$0x1]
        %v5769 = vsel %vm1063, %v5766, 0.0
        %5770 = vadd.xlane.f32.xlu0 %v5769
        %v5771 = vpop.xlane.xlu0 %5770
        %v5772 = vmul.f32 %v5771, %v1067
        %v5773 = vsub.f32 %v5766, %v5772
        %v5774 = vmul.f32 %v5773, %v5773
        %v5775 = vsel %vm1063, %v5774, 0.0
        %5776 = vadd.xlane.f32.xlu0 %v5775
        %v5777 = vpop.xlane.xlu0 %5776
        %v5778 = vmul.f32 %v5777, %v1067
        %v5779 = vadd.f32 %v5778, 1e-06
        %v5780 = vrsqrt.pop %v5779
        %v5781 = vmul.f32 %v5773, %v5780
        %v5783 = vlaneseq
        %v5784 = vshrl.u32 %v5783, 7
        %v5785 = vsub.s32 0, %v5784
        %v5786 = vrot.slane %v5767, %v5785
        %v5788 = vmul.f32 %v5781, %v5786
        %v5790 = vlaneseq
        %v5791 = vshrl.u32 %v5790, 7
        %v5792 = vsub.s32 0, %v5791
        %v5793 = vrot.slane %v5768, %v5792
        %v5795 = vadd.f32 %v5788, %v5793
        %v5796 = vpack.c.bf16 %v5795, %v5795
        %v5797 = vld [vmem:[#allocation25] sm:$0xf]
        %v5798 = vld [vmem:[#allocation25 + $0x4] sm:$0xf]
        %v5799 = vld [vmem:[#allocation25 + $0x8] sm:$0xf]
        %v5800 = vld [vmem:[#allocation25 + $0xc] sm:$0xf]
        %v5801 = vld [vmem:[%s21] sm:$0x1]
        %v5803 = vlaneseq
        %v5804 = vshrl.u32 %v5803, 7
        %v5805 = vsub.s32 0, %v5804
        %v5806 = vrot.slane %v5801, %v5805
        %v5812 = vunpack.c.l.b16 %v5797
        %v5813 = vunpack.c.l.b16 %v5798
        %v5814 = vunpack.c.l.b16 %v5799
        %v5815 = vunpack.c.l.b16 %v5800
        %v5816 = vpack.c.b16 %v5813, %v5812
        %v5817 = vpack.c.b16 %v5815, %v5814
        %v5821 = vsel %vm1063, %v5796, 0
        %5823 = vmatprep.subr.bf16.mxu0 0
        %5824 = vmatpush1.bf16.msra.mxu0 0
        %5825 = vmatprep.subr.bf16.mxu0 0
        %5826 = vmatpush1.bf16.msra.mxu0 0
        %5827 = vmatprep.subr.bf16.mxu0 0
        %5828 = vmatpush1.bf16.msra.mxu0 0
        %5829 = vmatprep.subr.bf16.mxu0 0
        %5830 = vmatpush1.bf16.msra.mxu0 0
        %5831 = vmatprep.subr.bf16.mxu0 0
        %5832 = vmatpush1.bf16.msra.mxu0 0
        %5833 = vmatprep.subr.bf16.mxu0 0
        %5834 = vmatpush1.bf16.msra.mxu0 0
        %5835 = vmatprep.subr.bf16.mxu0 0
        %5836 = vmatpush1.bf16.msra.mxu0 %v5817
        %5837 = vmatprep.subr.bf16.mxu0 0
        %5838 = vmatpush1.bf16.msra.mxu0 %v5816
        %5839 = vmatprep.subr.bf16.mxu0 0
        %5840 = vmatpush2.bf16.msra.mxu0 0
        %5841 = vmatprep.subr.bf16.mxu0 0
        %5842 = vmatpush2.bf16.msra.mxu0 0
        %5843 = vmatprep.subr.bf16.mxu0 0
        %5844 = vmatpush2.bf16.msra.mxu0 0
        %5845 = vmatprep.subr.bf16.mxu0 0
        %5846 = vmatpush2.bf16.msra.mxu0 0
        %5847 = vmatprep.subr.bf16.mxu0 0
        %5848 = vmatpush2.bf16.msra.mxu0 0
        %5849 = vmatprep.subr.bf16.mxu0 0
        %5850 = vmatpush2.bf16.msra.mxu0 0
        %5851 = vmatprep.subr.bf16.mxu0 0
        %5852 = vmatpush2.bf16.msra.mxu0 0
        %5853 = vmatprep.subr.bf16.mxu0 0
        %5854 = vmatpush2.bf16.msra.mxu0 0
        %5855 = vmatprep.mubr.bf16.mxu0 0
        %5856 = vmatmul.mubr.bf16.gmra.mxu0 %v5821
        %v5857 = vpop.f32.mrf.mxu0
        %v5858 = vadd.f32 %v5806, %v5857
        %v5859 = vpop.f32.mrf.mxu0
        %v5860 = vpop.f32.mrf.mxu0
        %v5861 = vpop.f32.mrf.mxu0
        %5862 = vdwg.mxu0
        %v5863 = vmax.f32 %v5858, 0.0
        %v5864 = vpack.c.bf16 %v5863, %v5863
        %v5865 = vld [vmem:[%s22] sm:$0xf]
        %v5866 = vld [vmem:[%s22 + $0x4] sm:$0xf]
        %v5867 = vld [vmem:[%s22 + $0x8] sm:$0xf]
        %v5868 = vld [vmem:[%s22 + $0xc] sm:$0xf]
        %v5869 = vld [vmem:[%s22 + $0x10] sm:$0xf]
        %v5870 = vld [vmem:[%s22 + $0x14] sm:$0xf]
        %v5871 = vld [vmem:[%s22 + $0x18] sm:$0xf]
        %v5872 = vld [vmem:[%s22 + $0x1c] sm:$0xf]
        %v5873 = vld [vmem:[%s22 + $0x20] sm:$0xf]
        %v5874 = vld [vmem:[%s22 + $0x24] sm:$0xf]
        %v5875 = vld [vmem:[%s22 + $0x28] sm:$0xf]
        %v5876 = vld [vmem:[%s22 + $0x2c] sm:$0xf]
        %v5877 = vld [vmem:[%s22 + $0x30] sm:$0xf]
        %v5878 = vld [vmem:[%s22 + $0x34] sm:$0xf]
        %v5879 = vld [vmem:[%s22 + $0x38] sm:$0xf]
        %v5880 = vld [vmem:[%s22 + $0x3c] sm:$0xf]
        %v5881 = vld [vmem:[%s23] sm:$0x1]
        %v5883 = vlaneseq
        %v5884 = vshrl.u32 %v5883, 7
        %v5885 = vsub.s32 0, %v5884
        %v5886 = vrot.slane %v5881, %v5885
        %v5904 = vunpack.c.l.b16 %v5865
        %v5905 = vunpack.c.l.b16 %v5866
        %v5906 = vunpack.c.l.b16 %v5867
        %v5907 = vunpack.c.l.b16 %v5868
        %v5908 = vunpack.c.l.b16 %v5869
        %v5909 = vunpack.c.l.b16 %v5870
        %v5910 = vunpack.c.l.b16 %v5871
        %v5911 = vunpack.c.l.b16 %v5872
        %v5912 = vunpack.c.l.b16 %v5873
        %v5913 = vunpack.c.l.b16 %v5874
        %v5914 = vunpack.c.l.b16 %v5875
        %v5915 = vunpack.c.l.b16 %v5876
        %v5916 = vunpack.c.l.b16 %v5877
        %v5917 = vunpack.c.l.b16 %v5878
        %v5918 = vunpack.c.l.b16 %v5879
        %v5919 = vunpack.c.l.b16 %v5880
        %v5920 = vpack.c.b16 %v5905, %v5904
        %v5921 = vpack.c.b16 %v5907, %v5906
        %v5922 = vpack.c.b16 %v5909, %v5908
        %v5923 = vpack.c.b16 %v5911, %v5910
        %v5924 = vpack.c.b16 %v5913, %v5912
        %v5925 = vpack.c.b16 %v5915, %v5914
        %v5926 = vpack.c.b16 %v5917, %v5916
        %v5927 = vpack.c.b16 %v5919, %v5918
        %5936 = vmatprep.subr.bf16.mxu0 0
        %5937 = vmatpush1.bf16.msra.mxu0 %v5927
        %5938 = vmatprep.subr.bf16.mxu0 0
        %5939 = vmatpush1.bf16.msra.mxu0 %v5926
        %5940 = vmatprep.subr.bf16.mxu0 0
        %5941 = vmatpush1.bf16.msra.mxu0 %v5925
        %5942 = vmatprep.subr.bf16.mxu0 0
        %5943 = vmatpush1.bf16.msra.mxu0 %v5924
        %5944 = vmatprep.subr.bf16.mxu0 0
        %5945 = vmatpush1.bf16.msra.mxu0 %v5923
        %5946 = vmatprep.subr.bf16.mxu0 0
        %5947 = vmatpush1.bf16.msra.mxu0 %v5922
        %5948 = vmatprep.subr.bf16.mxu0 0
        %5949 = vmatpush1.bf16.msra.mxu0 %v5921
        %5950 = vmatprep.subr.bf16.mxu0 0
        %5951 = vmatpush1.bf16.msra.mxu0 %v5920
        %5952 = vmatprep.subr.bf16.mxu0 0
        %5953 = vmatpush2.bf16.msra.mxu0 0
        %5954 = vmatprep.subr.bf16.mxu0 0
        %5955 = vmatpush2.bf16.msra.mxu0 0
        %5956 = vmatprep.subr.bf16.mxu0 0
        %5957 = vmatpush2.bf16.msra.mxu0 0
        %5958 = vmatprep.subr.bf16.mxu0 0
        %5959 = vmatpush2.bf16.msra.mxu0 0
        %5960 = vmatprep.subr.bf16.mxu0 0
        %5961 = vmatpush2.bf16.msra.mxu0 0
        %5962 = vmatprep.subr.bf16.mxu0 0
        %5963 = vmatpush2.bf16.msra.mxu0 0
        %5964 = vmatprep.subr.bf16.mxu0 0
        %5965 = vmatpush2.bf16.msra.mxu0 0
        %5966 = vmatprep.subr.bf16.mxu0 0
        %5967 = vmatpush2.bf16.msra.mxu0 0
        %5968 = vmatprep.mubr.bf16.mxu0 0
        %5969 = vmatmul.mubr.bf16.gmra.mxu0 %v5864
        %v5970 = vpop.f32.mrf.mxu0
        %v5971 = vadd.f32 %v5886, %v5970
        %v5972 = vpop.f32.mrf.mxu0
        %v5973 = vpop.f32.mrf.mxu0
        %v5974 = vpop.f32.mrf.mxu0
        %5975 = vdwg.mxu0
        %v5976 = vadd.f32 %v5766, %v5971
        %5977 = vst.msk [vmem:[%s1031] sm:$0xff] %vm1063, %v5976
        %s5978 = sand.u32 %s586, 1
        %s5979 = scalar_lea.sflag [#allocation4], %s5978
        %s5980 = sand.u32 %s586, 1
        %s5981 = smul.addr %s5980, 8
        %s5982 = scalar_lea.vmem [#allocation26], %s5981
        %s5983 = sand.u32 %s54, 1
        %s5984 = scalar_lea.sflag [#allocation28], %s5983
        %s5985 = sand.u32 %s612, 1
        %s5986 = smul.addr %s5985, 32
        %s5987 = scalar_lea.vmem [#allocation27], %s5986
        %s5988 = sand.u32 %s54, 1
        %s5989 = scalar_lea.sflag [#allocation28], %s5988
        %s5990 = sand.u32 %s638, 1
        %s5991 = smul.addr %s5990, 32
        %s5992 = scalar_lea.vmem [#allocation29], %s5991
        // Predicated region
        $region177: #{tpu_custom_call.1} parent=115 // pred_check
          %p5993 = pneg %p596
        $region178: #{tpu_custom_call.1} parent=115 // pred_check_branch
          %5995 = sbr.rel (%p5993) target = $region180
        $region179: #{tpu_custom_call.1} parent=115 // pred_region
          %s5997 = ssub.s32 128, 128
          %5998 = vsyncadd %s5979, %s5997
          %s5999 = smul.addr %s54, 128
          %s6000 = scalar_lea.hbm %s24, %s5999
          %s6002 = sshll.u32 %s5982, 4
          %s6003 = int_to_ptr.vmem [resolvable:$true] %s6002
          %6005 = dma.vmem_to_hbm [thread:$0]  %s6003, 128, %s6000, %s5979
        $region180: #{tpu_custom_call.1} parent=115 // pred_fallthru
          _
        // Predicated region
        $region181: #{tpu_custom_call.1} parent=115 // pred_check
          %p6006 = pneg %p622
        $region182: #{tpu_custom_call.1} parent=115 // pred_check_branch
          %6008 = sbr.rel (%p6006) target = $region184
        $region183: #{tpu_custom_call.1} parent=115 // pred_region
          %s6010 = ssub.s32 512, 512
          %6011 = vsyncadd %s5984, %s6010
          %s6012 = smul.addr %s54, 4
          %s6013 = smul.addr %s6012, 128
          %s6014 = scalar_lea.hbm %s25, %s6013
          %s6015 = sshll.u32 %s5987, 4
          %s6016 = int_to_ptr.vmem [resolvable:$true] %s6015
          %6021 = dma.vmem_to_hbm [thread:$0]  %s6016, 512, %s6014, %s5984, 128, 128, 8
        $region184: #{tpu_custom_call.1} parent=115 // pred_fallthru
          _
        // Predicated region
        $region185: #{tpu_custom_call.1} parent=115 // pred_check
          %p6022 = pneg %p648
        $region186: #{tpu_custom_call.1} parent=115 // pred_check_branch
          %6024 = sbr.rel (%p6022) target = $region188
        $region187: #{tpu_custom_call.1} parent=115 // pred_region
          %s6026 = ssub.s32 512, 512
          %6027 = vsyncadd %s5989, %s6026
          %s6028 = smul.addr %s54, 4
          %s6029 = smul.addr %s6028, 128
          %s6030 = scalar_lea.hbm %s26, %s6029
          %s6031 = sshll.u32 %s5992, 4
          %s6032 = int_to_ptr.vmem [resolvable:$true] %s6031
          %6037 = dma.vmem_to_hbm [thread:$0]  %s6032, 512, %s6030, %s5989, 128, 128, 8
        $region188: #{tpu_custom_call.1} parent=115 // pred_fallthru
          _
      $region116: #{tpu_custom_call.1} parent=5 // pred_fallthru
        _
      %p6038 = scmp.le.s32.totalorder 2, %s49
      // Predicated region
      $region189: #{tpu_custom_call.1} parent=5 // pred_check
        %p6039 = pneg %p6038
      $region190: #{tpu_custom_call.1} parent=5 // pred_check_branch
        %6041 = sbr.rel (%p6039) target = $region192
      $region191: #{tpu_custom_call.1} parent=5 // pred_region
        %s6042 = ssub.s32 %s49, 2
        // Predicated region
        $region193: #{tpu_custom_call.1} parent=191 // pred_check
          %p6043 = pneg %p602
        $region194: #{tpu_custom_call.1} parent=191 // pred_check_branch
          %6045 = sbr.rel (%p6043) target = $region196
        $region195: #{tpu_custom_call.1} parent=191 // pred_region
          %s6046 = sand.u32 %s587, 1
          %s6047 = scalar_lea.sflag [#allocation4], %s6046
          %s6048 = sand.u32 %s587, 1
          %s6049 = smul.addr %s6048, 8
          %s6050 = scalar_lea.vmem [#allocation26], %s6049
          %6051 = dma.done %s6047, 128
        $region196: #{tpu_custom_call.1} parent=191 // pred_fallthru
          _
        // Predicated region
        $region197: #{tpu_custom_call.1} parent=191 // pred_check
          %p6052 = pneg %p628
        $region198: #{tpu_custom_call.1} parent=191 // pred_check_branch
          %6054 = sbr.rel (%p6052) target = $region200
        $region199: #{tpu_custom_call.1} parent=191 // pred_region
          %s6055 = sand.u32 %s55, 1
          %s6056 = scalar_lea.sflag [#allocation28], %s6055
          %s6057 = sand.u32 %s613, 1
          %s6058 = smul.addr %s6057, 32
          %s6059 = scalar_lea.vmem [#allocation27], %s6058
          %6060 = dma.done %s6056, 512
        $region200: #{tpu_custom_call.1} parent=191 // pred_fallthru
          _
        // Predicated region
        $region201: #{tpu_custom_call.1} parent=191 // pred_check
          %p6061 = pneg %p654
        $region202: #{tpu_custom_call.1} parent=191 // pred_check_branch
          %6063 = sbr.rel (%p6061) target = $region204
        $region203: #{tpu_custom_call.1} parent=191 // pred_region
          %s6064 = sand.u32 %s55, 1
          %s6065 = scalar_lea.sflag [#allocation28], %s6064
          %s6066 = sand.u32 %s639, 1
          %s6067 = smul.addr %s6066, 32
          %s6068 = scalar_lea.vmem [#allocation29], %s6067
          %6069 = dma.done %s6065, 512
        $region204: #{tpu_custom_call.1} parent=191 // pred_fallthru
          _
      $region192: #{tpu_custom_call.1} parent=5 // pred_fallthru
        _
    $region6: #{tpu_custom_call.1} parent=1 // loop_footer
      %s53 = sadd.s32 1, %s49
    $region7: #{tpu_custom_call.1} parent=1 // loop_footer_branch
      %48 = sbr.rel target = $region3
    $region8: #{tpu_custom_call.1} parent=1 // loop_exit
      _
    %6070 = vsyncpa [#allocation3], 1
    %s6071 = scalar_lea.sflag [#allocation3], 1
    %6072 = vsyncpa %s6071, 1
    %6073 = vsyncpa [#allocation6], 1
    %6074 = vsyncpa [#allocation9], 1
    %6075 = vsyncpa [#allocation12], 1
    %6076 = vsyncpa [#allocation15], 1
    %6077 = vsyncpa [#allocation18], 1
    %6078 = vsyncpa [#allocation21], 1
    %6079 = vsyncpa [#allocation24], 1
    %6080 = vsyncpa [#allocation4], 1
    %s6081 = scalar_lea.sflag [#allocation4], 1
    %6082 = vsyncpa %s6081, 1
    %6083 = vsyncpa [#allocation28], 1
    %s6084 = scalar_lea.sflag [#allocation28], 1
    %6085 = vsyncpa %s6084, 1

</llo_original>
